<compile_context>
chip_gen: v5e
topology: v5e:2x2
jax: 0.10.0
libtpu: 0.0.40
codegen_flags: <defaults>
</compile_context>

<pallas_src>
import jax
import jax.numpy as jnp
from jax.experimental import pallas as pl
from jax.experimental.pallas import tpu as pltpu

_EPS = 1e-3  # matches BatchNorm2d(640, eps=0.001)


def _bn_kernel_2d(x_ref, gamma_ref, beta_ref, o_ref):
    # x_ref:     (TC, HW)  channels on sublanes, spatial on lanes (N == 1 case)
    # gamma_ref: (TC, 1)
    # beta_ref:  (TC, 1)
    # o_ref:     (TC, HW)
    x = x_ref[...]  # load once, reuse for stats and normalize
    inv_count = 1.0 / x.shape[1]

    # One-pass per-channel statistics along the lane axis.
    s = jnp.sum(x, axis=-1, keepdims=True)           # (TC, 1)
    sq = jnp.sum(x * x, axis=-1, keepdims=True)      # (TC, 1)

    mean = s * inv_count                              # (TC, 1)
    var = jnp.maximum(sq * inv_count - mean * mean, 0.0)  # biased, clamped >= 0
    inv_std = jax.lax.rsqrt(var + _EPS)               # (TC, 1)

    # Fold affine: out = x * scale + shift
    scale = gamma_ref[...] * inv_std                  # (TC, 1)
    shift = beta_ref[...] - mean * scale              # (TC, 1)

    o_ref[...] = x * scale + shift


def _bn_kernel_3d(x_ref, gamma_ref, beta_ref, o_ref):
    # General N > 1 fallback.
    # x_ref: (N, TC, HW), gamma/beta: (TC, 1), o_ref: (N, TC, HW)
    x = x_ref[...]
    n, _, hw = x.shape
    inv_count = 1.0 / (n * hw)

    s = jnp.sum(jnp.sum(x, axis=-1, keepdims=True), axis=0, keepdims=True)
    sq = jnp.sum(jnp.sum(x * x, axis=-1, keepdims=True), axis=0, keepdims=True)

    mean = s * inv_count                                   # (1, TC, 1)
    var = jnp.maximum(sq * inv_count - mean * mean, 0.0)
    inv_std = jax.lax.rsqrt(var + _EPS)

    scale = gamma_ref[...][None] * inv_std                 # (1, TC, 1)
    shift = beta_ref[...][None] - mean * scale             # (1, TC, 1)

    o_ref[...] = x * scale + shift


def _num_tensorcores():
    """2 on v7x (2 TCs/chip), 1 otherwise. Best-effort, safe fallback."""
    try:
        kind = jax.devices()[0].device_kind.lower()
        if "v7" in kind:
            return 2
    except Exception:
        pass
    return 1


def batchnorm2d_pallas(x_nchw, gamma, beta):
    """x_nchw: (N, C, H, W) float32; gamma, beta: (C,) float32."""
    n, c, h, w = x_nchw.shape
    hw = h * w

    gamma2d = gamma.reshape(c, 1)
    beta2d = beta.reshape(c, 1)

    # One block by default (kernel is step-overhead bound at this size).
    # On v7x, split the channel axis into 2 balanced blocks so both
    # TensorCores get work — only if the split keeps sublane tiling legal.
    blocks = _num_tensorcores()
    if blocks > 1 and c % blocks == 0 and (c // blocks) % 8 == 0:
        tc = c // blocks
    else:
        tc = c
    grid = (c // tc,)

    compiler_params = pltpu.CompilerParams(dimension_semantics=("parallel",))

    if n == 1:
        # Free view: NCHW with N==1  ->  (C, HW). No transposes.
        x2d = x_nchw.reshape(c, hw)
        out2d = pl.pallas_call(
            _bn_kernel_2d,
            out_shape=jax.ShapeDtypeStruct((c, hw), x_nchw.dtype),
            grid=grid,
            in_specs=[
                pl.BlockSpec((tc, hw), lambda i: (i, 0)),
                pl.BlockSpec((tc, 1), lambda i: (i, 0)),
                pl.BlockSpec((tc, 1), lambda i: (i, 0)),
            ],
            out_specs=pl.BlockSpec((tc, hw), lambda i: (i, 0)),
            compiler_params=compiler_params,
        )(x2d, gamma2d, beta2d)
        return out2d.reshape(n, c, h, w)

    # General N > 1 path: keep (N, C, HW), reduce lanes then batch axis.
    x3d = x_nchw.reshape(n, c, hw)
    out3d = pl.pallas_call(
        _bn_kernel_3d,
        out_shape=jax.ShapeDtypeStruct((n, c, hw), x_nchw.dtype),
        grid=grid,
        in_specs=[
            pl.BlockSpec((n, tc, hw), lambda i: (0, i, 0)),
            pl.BlockSpec((tc, 1), lambda i: (i, 0)),
            pl.BlockSpec((tc, 1), lambda i: (i, 0)),
        ],
        out_specs=pl.BlockSpec((n, tc, hw), lambda i: (0, i, 0)),
        compiler_params=compiler_params,
    )(x3d, gamma2d, beta2d)
    return out3d.reshape(n, c, h, w)


def batchnorm2d_ref(x_nchw, gamma, beta, eps=_EPS):
    mean = jnp.mean(x_nchw, axis=(0, 2, 3), keepdims=True)
    var = jnp.mean((x_nchw - mean) ** 2, axis=(0, 2, 3), keepdims=True)
    g = gamma.reshape(1, -1, 1, 1)
    b = beta.reshape(1, -1, 1, 1)
    return (x_nchw - mean) * jax.lax.rsqrt(var + eps) * g + b


if __name__ == "__main__":
    key = jax.random.PRNGKey(0)
    k1, k2, k3 = jax.random.split(key, 3)

    # Shape from the module's forward: BatchNorm2d(640) on [1, 640, 14, 14].
    N, C, H, W = 1, 640, 14, 14
    x = jax.random.normal(k1, (N, C, H, W), dtype=jnp.float32)
    # Non-trivial affine params to exercise the full scale/shift path
    # (PyTorch default init would be gamma=1, beta=0).
    gamma = 1.0 + 0.1 * jax.random.normal(k2, (C,), dtype=jnp.float32)
    beta = 0.1 * jax.random.normal(k3, (C,), dtype=jnp.float32)

    out = jax.block_until_ready(batchnorm2d_pallas(x, gamma, beta))

    ref = batchnorm2d_ref(x, gamma, beta)
    assert out.shape == (N, C, H, W)
    assert jnp.allclose(out, ref, atol=1e-4, rtol=1e-4), float(
        jnp.max(jnp.abs(out - ref))
    )

    print("KERNEL_OK")
</pallas_src>

<mosaic_0001>
module attributes {stable_mosaic.version = 11 : i64} {
  func.func @_bn_kernel_2d(%arg0: i32, %arg1: memref<640x196xf32, #tpu.memory_space<vmem>>, %arg2: memref<640x1xf32, #tpu.memory_space<vmem>>, %arg3: memref<640x1xf32, #tpu.memory_space<vmem>>, %arg4: memref<640x196xf32, #tpu.memory_space<vmem>>) attributes {dimension_semantics = [#tpu.dimension_semantics<parallel>], iteration_bounds = array<i64: 1>, scalar_prefetch = 0 : i64, scratch_operands = 0 : i64, tpu.core_type = #tpu.core_type<tc>, window_params = [{transform_indices = @transform_0, window_bounds = array<i64: 640, 196>}, {transform_indices = @transform_1, window_bounds = array<i64: 640, 1>}, {transform_indices = @transform_2, window_bounds = array<i64: 640, 1>}, {transform_indices = @transform_3, window_bounds = array<i64: 640, 196>}]} {
    %c0 = arith.constant 0 : index
    %c0_0 = arith.constant 0 : index
    %0 = vector.load %arg1[%c0, %c0_0] : memref<640x196xf32, #tpu.memory_space<vmem>>, vector<640x196xf32>
    %cst = arith.constant dense<0.000000e+00> : vector<640xf32>
    %1 = vector.multi_reduction <add>, %0, %cst [1] : vector<640x196xf32> to vector<640xf32>
    %2 = vector.shape_cast %1 : vector<640xf32> to vector<640x1xf32>
    %3 = arith.mulf %0, %0 : vector<640x196xf32>
    %cst_1 = arith.constant dense<0.000000e+00> : vector<640xf32>
    %4 = vector.multi_reduction <add>, %3, %cst_1 [1] : vector<640x196xf32> to vector<640xf32>
    %5 = vector.shape_cast %4 : vector<640xf32> to vector<640x1xf32>
    %cst_2 = arith.constant 0.00510204071 : f32
    %6 = vector.broadcast %cst_2 : f32 to vector<640x1xf32>
    %7 = arith.mulf %2, %6 : vector<640x1xf32>
    %cst_3 = arith.constant 0.00510204071 : f32
    %8 = vector.broadcast %cst_3 : f32 to vector<640x1xf32>
    %9 = arith.mulf %5, %8 : vector<640x1xf32>
    %10 = arith.mulf %7, %7 : vector<640x1xf32>
    %11 = arith.subf %9, %10 : vector<640x1xf32>
    %cst_4 = arith.constant 0.000000e+00 : f32
    %12 = vector.broadcast %cst_4 : f32 to vector<640x1xf32>
    %13 = arith.maximumf %11, %12 : vector<640x1xf32>
    %cst_5 = arith.constant 1.000000e-03 : f32
    %14 = vector.broadcast %cst_5 : f32 to vector<640x1xf32>
    %15 = arith.addf %13, %14 : vector<640x1xf32>
    %16 = math.rsqrt %15 : vector<640x1xf32>
    %c0_6 = arith.constant 0 : index
    %c0_7 = arith.constant 0 : index
    %17 = vector.load %arg2[%c0_6, %c0_7] : memref<640x1xf32, #tpu.memory_space<vmem>>, vector<640x1xf32>
    %18 = arith.mulf %17, %16 : vector<640x1xf32>
    %c0_8 = arith.constant 0 : index
    %c0_9 = arith.constant 0 : index
    %19 = vector.load %arg3[%c0_8, %c0_9] : memref<640x1xf32, #tpu.memory_space<vmem>>, vector<640x1xf32>
    %20 = arith.mulf %7, %18 : vector<640x1xf32>
    %21 = arith.subf %19, %20 : vector<640x1xf32>
    %22 = vector.broadcast %18 : vector<640x1xf32> to vector<640x196xf32>
    %23 = arith.mulf %0, %22 : vector<640x196xf32>
    %24 = vector.broadcast %21 : vector<640x1xf32> to vector<640x196xf32>
    %25 = arith.addf %23, %24 : vector<640x196xf32>
    %c0_10 = arith.constant 0 : index
    %c0_11 = arith.constant 0 : index
    %26 = vector.load %arg4[%c0_10, %c0_11] : memref<640x196xf32, #tpu.memory_space<vmem>>, vector<640x196xf32>
    tpu.vector_store %arg4[%c0_10, %c0_11], %25 {strides = array<i32>} : memref<640x196xf32, #tpu.memory_space<vmem>>, vector<640x196xf32>,
    return
  }
  func.func @transform_0(%arg0: i32) -> (i32, i32) {
    %c0_i32 = arith.constant 0 : i32
    %c0_i32_0 = arith.constant 0 : i32
    return %arg0, %c0_i32 : i32, i32
  }
  func.func @transform_1(%arg0: i32) -> (i32, i32) {
    %c0_i32 = arith.constant 0 : i32
    %c0_i32_0 = arith.constant 0 : i32
    return %arg0, %c0_i32 : i32, i32
  }
  func.func @transform_2(%arg0: i32) -> (i32, i32) {
    %c0_i32 = arith.constant 0 : i32
    %c0_i32_0 = arith.constant 0 : i32
    return %arg0, %c0_i32 : i32, i32
  }
  func.func @transform_3(%arg0: i32) -> (i32, i32) {
    %c0_i32 = arith.constant 0 : i32
    %c0_i32_0 = arith.constant 0 : i32
    return %arg0, %c0_i32 : i32, i32
  }
}

</mosaic_0001>

<llo_original>
// kernel: tpu_custom_call.1
$region0: #{tpu_custom_call.1}
  #allocation0 [shape = 'u32[]', space=smem, size = 0x4, offset = 0x4, fixed_abs, tag = 'smem constant byte address 0x4 - core index']
  #allocation1 [shape = 'u32[72,128]{1,0:T(1,128)}', space=vmem, size = 0x9000, scoped, tag = 'internal scratch']
  %s0 = inlined_call_operand.vmem [shape: f32[640,196], index: 0, kind: input, shape index: {}]
  %s1 = inlined_call_operand.vmem [shape: f32[640,1], index: 1, kind: input, shape index: {}]
  %s2 = inlined_call_operand.vmem [shape: f32[640,1], index: 2, kind: input, shape index: {}]
  %s3 = inlined_call_operand.vmem [shape: f32[640,196], index: 3, kind: output, shape index: {}]
  %s4 = sld [smem:[#allocation0]]
  $region22: #{tpu_custom_call.1} parent=0
    _
  %s6 = ssub.s32 1, %s4
  %s7 = scalar_select 0, %s6, %s4
  // Predicated region
  $region2: #{tpu_custom_call.1} parent=0 // pred_check
    _
  $region3: #{tpu_custom_call.1} parent=0 // pred_check_branch
    %9 = sbr.rel (0) target = $region5
  $region4: #{tpu_custom_call.1} parent=0 // pred_region
    _
  $region5: #{tpu_custom_call.1} parent=0 // pred_fallthru
    _
  // Predicated region
  $region6: #{tpu_custom_call.1} parent=0 // pred_check
    _
  $region7: #{tpu_custom_call.1} parent=0 // pred_check_branch
    %11 = sbr.rel (0) target = $region9
  $region8: #{tpu_custom_call.1} parent=0 // pred_region
    _
  $region9: #{tpu_custom_call.1} parent=0 // pred_fallthru
    _
  // Predicated region
  $region10: #{tpu_custom_call.1} parent=0 // pred_check
    _
  $region11: #{tpu_custom_call.1} parent=0 // pred_check_branch
    %13 = sbr.rel (0) target = $region13
  $region12: #{tpu_custom_call.1} parent=0 // pred_region
    _
  $region13: #{tpu_custom_call.1} parent=0 // pred_fallthru
    _
  %v14 = vld [vmem:[%s0] sm:$0xff]
  %v15 = vld [vmem:[%s0 + $0x8] sm:$0xff]
  %v16 = vld [vmem:[%s0 + $0x10] sm:$0xff]
  %v17 = vld [vmem:[%s0 + $0x18] sm:$0xff]
  %v18 = vld [vmem:[%s0 + $0x20] sm:$0xff]
  %v19 = vld [vmem:[%s0 + $0x28] sm:$0xff]
  %v20 = vld [vmem:[%s0 + $0x30] sm:$0xff]
  %v21 = vld [vmem:[%s0 + $0x38] sm:$0xff]
  %v22 = vld [vmem:[%s0 + $0x40] sm:$0xff]
  %v23 = vld [vmem:[%s0 + $0x48] sm:$0xff]
  %v24 = vld [vmem:[%s0 + $0x50] sm:$0xff]
  %v25 = vld [vmem:[%s0 + $0x58] sm:$0xff]
  %v26 = vld [vmem:[%s0 + $0x60] sm:$0xff]
  %v27 = vld [vmem:[%s0 + $0x68] sm:$0xff]
  %v28 = vld [vmem:[%s0 + $0x70] sm:$0xff]
  %v29 = vld [vmem:[%s0 + $0x78] sm:$0xff]
  %v30 = vld [vmem:[%s0 + $0x80] sm:$0xff]
  %v31 = vld [vmem:[%s0 + $0x88] sm:$0xff]
  %v32 = vld [vmem:[%s0 + $0x90] sm:$0xff]
  %v33 = vld [vmem:[%s0 + $0x98] sm:$0xff]
  %v34 = vld [vmem:[%s0 + $0xa0] sm:$0xff]
  %v35 = vld [vmem:[%s0 + $0xa8] sm:$0xff]
  %v36 = vld [vmem:[%s0 + $0xb0] sm:$0xff]
  %v37 = vld [vmem:[%s0 + $0xb8] sm:$0xff]
  %v38 = vld [vmem:[%s0 + $0xc0] sm:$0xff]
  %v39 = vld [vmem:[%s0 + $0xc8] sm:$0xff]
  %v40 = vld [vmem:[%s0 + $0xd0] sm:$0xff]
  %v41 = vld [vmem:[%s0 + $0xd8] sm:$0xff]
  %v42 = vld [vmem:[%s0 + $0xe0] sm:$0xff]
  %v43 = vld [vmem:[%s0 + $0xe8] sm:$0xff]
  %v44 = vld [vmem:[%s0 + $0xf0] sm:$0xff]
  %v45 = vld [vmem:[%s0 + $0xf8] sm:$0xff]
  %v46 = vld [vmem:[%s0 + $0x100] sm:$0xff]
  %v47 = vld [vmem:[%s0 + $0x108] sm:$0xff]
  %v48 = vld [vmem:[%s0 + $0x110] sm:$0xff]
  %v49 = vld [vmem:[%s0 + $0x118] sm:$0xff]
  %v50 = vld [vmem:[%s0 + $0x120] sm:$0xff]
  %v51 = vld [vmem:[%s0 + $0x128] sm:$0xff]
  %v52 = vld [vmem:[%s0 + $0x130] sm:$0xff]
  %v53 = vld [vmem:[%s0 + $0x138] sm:$0xff]
  %v54 = vld [vmem:[%s0 + $0x140] sm:$0xff]
  %v55 = vld [vmem:[%s0 + $0x148] sm:$0xff]
  %v56 = vld [vmem:[%s0 + $0x150] sm:$0xff]
  %v57 = vld [vmem:[%s0 + $0x158] sm:$0xff]
  %v58 = vld [vmem:[%s0 + $0x160] sm:$0xff]
  %v59 = vld [vmem:[%s0 + $0x168] sm:$0xff]
  %v60 = vld [vmem:[%s0 + $0x170] sm:$0xff]
  %v61 = vld [vmem:[%s0 + $0x178] sm:$0xff]
  %v62 = vld [vmem:[%s0 + $0x180] sm:$0xff]
  %v63 = vld [vmem:[%s0 + $0x188] sm:$0xff]
  %v64 = vld [vmem:[%s0 + $0x190] sm:$0xff]
  %v65 = vld [vmem:[%s0 + $0x198] sm:$0xff]
  %v66 = vld [vmem:[%s0 + $0x1a0] sm:$0xff]
  %v67 = vld [vmem:[%s0 + $0x1a8] sm:$0xff]
  %v68 = vld [vmem:[%s0 + $0x1b0] sm:$0xff]
  %v69 = vld [vmem:[%s0 + $0x1b8] sm:$0xff]
  %v70 = vld [vmem:[%s0 + $0x1c0] sm:$0xff]
  %v71 = vld [vmem:[%s0 + $0x1c8] sm:$0xff]
  %v72 = vld [vmem:[%s0 + $0x1d0] sm:$0xff]
  %v73 = vld [vmem:[%s0 + $0x1d8] sm:$0xff]
  %v74 = vld [vmem:[%s0 + $0x1e0] sm:$0xff]
  %v75 = vld [vmem:[%s0 + $0x1e8] sm:$0xff]
  %v76 = vld [vmem:[%s0 + $0x1f0] sm:$0xff]
  %v77 = vld [vmem:[%s0 + $0x1f8] sm:$0xff]
  %v78 = vld [vmem:[%s0 + $0x200] sm:$0xff]
  %v79 = vld [vmem:[%s0 + $0x208] sm:$0xff]
  %v80 = vld [vmem:[%s0 + $0x210] sm:$0xff]
  %v81 = vld [vmem:[%s0 + $0x218] sm:$0xff]
  %v82 = vld [vmem:[%s0 + $0x220] sm:$0xff]
  %v83 = vld [vmem:[%s0 + $0x228] sm:$0xff]
  %v84 = vld [vmem:[%s0 + $0x230] sm:$0xff]
  %v85 = vld [vmem:[%s0 + $0x238] sm:$0xff]
  %v86 = vld [vmem:[%s0 + $0x240] sm:$0xff]
  %v87 = vld [vmem:[%s0 + $0x248] sm:$0xff]
  %v88 = vld [vmem:[%s0 + $0x250] sm:$0xff]
  %v89 = vld [vmem:[%s0 + $0x258] sm:$0xff]
  %v90 = vld [vmem:[%s0 + $0x260] sm:$0xff]
  %v91 = vld [vmem:[%s0 + $0x268] sm:$0xff]
  %v92 = vld [vmem:[%s0 + $0x270] sm:$0xff]
  %v93 = vld [vmem:[%s0 + $0x278] sm:$0xff]
  %v94 = vld [vmem:[%s0 + $0x280] sm:$0xff]
  %v95 = vld [vmem:[%s0 + $0x288] sm:$0xff]
  %v96 = vld [vmem:[%s0 + $0x290] sm:$0xff]
  %v97 = vld [vmem:[%s0 + $0x298] sm:$0xff]
  %v98 = vld [vmem:[%s0 + $0x2a0] sm:$0xff]
  %v99 = vld [vmem:[%s0 + $0x2a8] sm:$0xff]
  %v100 = vld [vmem:[%s0 + $0x2b0] sm:$0xff]
  %v101 = vld [vmem:[%s0 + $0x2b8] sm:$0xff]
  %v102 = vld [vmem:[%s0 + $0x2c0] sm:$0xff]
  %v103 = vld [vmem:[%s0 + $0x2c8] sm:$0xff]
  %v104 = vld [vmem:[%s0 + $0x2d0] sm:$0xff]
  %v105 = vld [vmem:[%s0 + $0x2d8] sm:$0xff]
  %v106 = vld [vmem:[%s0 + $0x2e0] sm:$0xff]
  %v107 = vld [vmem:[%s0 + $0x2e8] sm:$0xff]
  %v108 = vld [vmem:[%s0 + $0x2f0] sm:$0xff]
  %v109 = vld [vmem:[%s0 + $0x2f8] sm:$0xff]
  %v110 = vld [vmem:[%s0 + $0x300] sm:$0xff]
  %v111 = vld [vmem:[%s0 + $0x308] sm:$0xff]
  %v112 = vld [vmem:[%s0 + $0x310] sm:$0xff]
  %v113 = vld [vmem:[%s0 + $0x318] sm:$0xff]
  %v114 = vld [vmem:[%s0 + $0x320] sm:$0xff]
  %v115 = vld [vmem:[%s0 + $0x328] sm:$0xff]
  %v116 = vld [vmem:[%s0 + $0x330] sm:$0xff]
  %v117 = vld [vmem:[%s0 + $0x338] sm:$0xff]
  %v118 = vld [vmem:[%s0 + $0x340] sm:$0xff]
  %v119 = vld [vmem:[%s0 + $0x348] sm:$0xff]
  %v120 = vld [vmem:[%s0 + $0x350] sm:$0xff]
  %v121 = vld [vmem:[%s0 + $0x358] sm:$0xff]
  %v122 = vld [vmem:[%s0 + $0x360] sm:$0xff]
  %v123 = vld [vmem:[%s0 + $0x368] sm:$0xff]
  %v124 = vld [vmem:[%s0 + $0x370] sm:$0xff]
  %v125 = vld [vmem:[%s0 + $0x378] sm:$0xff]
  %v126 = vld [vmem:[%s0 + $0x380] sm:$0xff]
  %v127 = vld [vmem:[%s0 + $0x388] sm:$0xff]
  %v128 = vld [vmem:[%s0 + $0x390] sm:$0xff]
  %v129 = vld [vmem:[%s0 + $0x398] sm:$0xff]
  %v130 = vld [vmem:[%s0 + $0x3a0] sm:$0xff]
  %v131 = vld [vmem:[%s0 + $0x3a8] sm:$0xff]
  %v132 = vld [vmem:[%s0 + $0x3b0] sm:$0xff]
  %v133 = vld [vmem:[%s0 + $0x3b8] sm:$0xff]
  %v134 = vld [vmem:[%s0 + $0x3c0] sm:$0xff]
  %v135 = vld [vmem:[%s0 + $0x3c8] sm:$0xff]
  %v136 = vld [vmem:[%s0 + $0x3d0] sm:$0xff]
  %v137 = vld [vmem:[%s0 + $0x3d8] sm:$0xff]
  %v138 = vld [vmem:[%s0 + $0x3e0] sm:$0xff]
  %v139 = vld [vmem:[%s0 + $0x3e8] sm:$0xff]
  %v140 = vld [vmem:[%s0 + $0x3f0] sm:$0xff]
  %v141 = vld [vmem:[%s0 + $0x3f8] sm:$0xff]
  %v142 = vld [vmem:[%s0 + $0x400] sm:$0xff]
  %v143 = vld [vmem:[%s0 + $0x408] sm:$0xff]
  %v144 = vld [vmem:[%s0 + $0x410] sm:$0xff]
  %v145 = vld [vmem:[%s0 + $0x418] sm:$0xff]
  %v146 = vld [vmem:[%s0 + $0x420] sm:$0xff]
  %v147 = vld [vmem:[%s0 + $0x428] sm:$0xff]
  %v148 = vld [vmem:[%s0 + $0x430] sm:$0xff]
  %v149 = vld [vmem:[%s0 + $0x438] sm:$0xff]
  %v150 = vld [vmem:[%s0 + $0x440] sm:$0xff]
  %v151 = vld [vmem:[%s0 + $0x448] sm:$0xff]
  %v152 = vld [vmem:[%s0 + $0x450] sm:$0xff]
  %v153 = vld [vmem:[%s0 + $0x458] sm:$0xff]
  %v154 = vld [vmem:[%s0 + $0x460] sm:$0xff]
  %v155 = vld [vmem:[%s0 + $0x468] sm:$0xff]
  %v156 = vld [vmem:[%s0 + $0x470] sm:$0xff]
  %v157 = vld [vmem:[%s0 + $0x478] sm:$0xff]
  %v158 = vld [vmem:[%s0 + $0x480] sm:$0xff]
  %v159 = vld [vmem:[%s0 + $0x488] sm:$0xff]
  %v160 = vld [vmem:[%s0 + $0x490] sm:$0xff]
  %v161 = vld [vmem:[%s0 + $0x498] sm:$0xff]
  %v162 = vld [vmem:[%s0 + $0x4a0] sm:$0xff]
  %v163 = vld [vmem:[%s0 + $0x4a8] sm:$0xff]
  %v164 = vld [vmem:[%s0 + $0x4b0] sm:$0xff]
  %v165 = vld [vmem:[%s0 + $0x4b8] sm:$0xff]
  %v166 = vld [vmem:[%s0 + $0x4c0] sm:$0xff]
  %v167 = vld [vmem:[%s0 + $0x4c8] sm:$0xff]
  %v168 = vld [vmem:[%s0 + $0x4d0] sm:$0xff]
  %v169 = vld [vmem:[%s0 + $0x4d8] sm:$0xff]
  %v170 = vld [vmem:[%s0 + $0x4e0] sm:$0xff]
  %v171 = vld [vmem:[%s0 + $0x4e8] sm:$0xff]
  %v172 = vld [vmem:[%s0 + $0x4f0] sm:$0xff]
  %v173 = vld [vmem:[%s0 + $0x4f8] sm:$0xff]
  %vm174 = vcmask 556032
  %v175 = vsel %vm174, %v15, 0.0
  %v176 = vadd.f32 %v14, %v175
  %177 = vadd.xlane.f32.xlu0 %v176
  %v178 = vpop.xlane.xlu0 %177
  %v179 = vsel %vm174, %v17, 0.0
  %v180 = vadd.f32 %v16, %v179
  %181 = vadd.xlane.f32.xlu0 %v180
  %v182 = vpop.xlane.xlu0 %181
  %v183 = vsel %vm174, %v19, 0.0
  %v184 = vadd.f32 %v18, %v183
  %185 = vadd.xlane.f32.xlu0 %v184
  %v186 = vpop.xlane.xlu0 %185
  %v187 = vsel %vm174, %v21, 0.0
  %v188 = vadd.f32 %v20, %v187
  %189 = vadd.xlane.f32.xlu0 %v188
  %v190 = vpop.xlane.xlu0 %189
  %v191 = vsel %vm174, %v23, 0.0
  %v192 = vadd.f32 %v22, %v191
  %193 = vadd.xlane.f32.xlu0 %v192
  %v194 = vpop.xlane.xlu0 %193
  %v195 = vsel %vm174, %v25, 0.0
  %v196 = vadd.f32 %v24, %v195
  %197 = vadd.xlane.f32.xlu0 %v196
  %v198 = vpop.xlane.xlu0 %197
  %v199 = vsel %vm174, %v27, 0.0
  %v200 = vadd.f32 %v26, %v199
  %201 = vadd.xlane.f32.xlu0 %v200
  %v202 = vpop.xlane.xlu0 %201
  %v203 = vsel %vm174, %v29, 0.0
  %v204 = vadd.f32 %v28, %v203
  %205 = vadd.xlane.f32.xlu0 %v204
  %v206 = vpop.xlane.xlu0 %205
  %v207 = vsel %vm174, %v31, 0.0
  %v208 = vadd.f32 %v30, %v207
  %209 = vadd.xlane.f32.xlu0 %v208
  %v210 = vpop.xlane.xlu0 %209
  %v211 = vsel %vm174, %v33, 0.0
  %v212 = vadd.f32 %v32, %v211
  %213 = vadd.xlane.f32.xlu0 %v212
  %v214 = vpop.xlane.xlu0 %213
  %v215 = vsel %vm174, %v35, 0.0
  %v216 = vadd.f32 %v34, %v215
  %217 = vadd.xlane.f32.xlu0 %v216
  %v218 = vpop.xlane.xlu0 %217
  %v219 = vsel %vm174, %v37, 0.0
  %v220 = vadd.f32 %v36, %v219
  %221 = vadd.xlane.f32.xlu0 %v220
  %v222 = vpop.xlane.xlu0 %221
  %v223 = vsel %vm174, %v39, 0.0
  %v224 = vadd.f32 %v38, %v223
  %225 = vadd.xlane.f32.xlu0 %v224
  %v226 = vpop.xlane.xlu0 %225
  %v227 = vsel %vm174, %v41, 0.0
  %v228 = vadd.f32 %v40, %v227
  %229 = vadd.xlane.f32.xlu0 %v228
  %v230 = vpop.xlane.xlu0 %229
  %v231 = vsel %vm174, %v43, 0.0
  %v232 = vadd.f32 %v42, %v231
  %233 = vadd.xlane.f32.xlu0 %v232
  %v234 = vpop.xlane.xlu0 %233
  %v235 = vsel %vm174, %v45, 0.0
  %v236 = vadd.f32 %v44, %v235
  %237 = vadd.xlane.f32.xlu0 %v236
  %v238 = vpop.xlane.xlu0 %237
  %v239 = vsel %vm174, %v47, 0.0
  %v240 = vadd.f32 %v46, %v239
  %241 = vadd.xlane.f32.xlu0 %v240
  %v242 = vpop.xlane.xlu0 %241
  %v243 = vsel %vm174, %v49, 0.0
  %v244 = vadd.f32 %v48, %v243
  %245 = vadd.xlane.f32.xlu0 %v244
  %v246 = vpop.xlane.xlu0 %245
  %v247 = vsel %vm174, %v51, 0.0
  %v248 = vadd.f32 %v50, %v247
  %249 = vadd.xlane.f32.xlu0 %v248
  %v250 = vpop.xlane.xlu0 %249
  %v251 = vsel %vm174, %v53, 0.0
  %v252 = vadd.f32 %v52, %v251
  %253 = vadd.xlane.f32.xlu0 %v252
  %v254 = vpop.xlane.xlu0 %253
  %v255 = vsel %vm174, %v55, 0.0
  %v256 = vadd.f32 %v54, %v255
  %257 = vadd.xlane.f32.xlu0 %v256
  %v258 = vpop.xlane.xlu0 %257
  %v259 = vsel %vm174, %v57, 0.0
  %v260 = vadd.f32 %v56, %v259
  %261 = vadd.xlane.f32.xlu0 %v260
  %v262 = vpop.xlane.xlu0 %261
  %v263 = vsel %vm174, %v59, 0.0
  %v264 = vadd.f32 %v58, %v263
  %265 = vadd.xlane.f32.xlu0 %v264
  %v266 = vpop.xlane.xlu0 %265
  %v267 = vsel %vm174, %v61, 0.0
  %v268 = vadd.f32 %v60, %v267
  %269 = vadd.xlane.f32.xlu0 %v268
  %v270 = vpop.xlane.xlu0 %269
  %v271 = vsel %vm174, %v63, 0.0
  %v272 = vadd.f32 %v62, %v271
  %273 = vadd.xlane.f32.xlu0 %v272
  %v274 = vpop.xlane.xlu0 %273
  %v275 = vsel %vm174, %v65, 0.0
  %v276 = vadd.f32 %v64, %v275
  %277 = vadd.xlane.f32.xlu0 %v276
  %v278 = vpop.xlane.xlu0 %277
  %v279 = vsel %vm174, %v67, 0.0
  %v280 = vadd.f32 %v66, %v279
  %281 = vadd.xlane.f32.xlu0 %v280
  %v282 = vpop.xlane.xlu0 %281
  %v283 = vsel %vm174, %v69, 0.0
  %v284 = vadd.f32 %v68, %v283
  %285 = vadd.xlane.f32.xlu0 %v284
  %v286 = vpop.xlane.xlu0 %285
  %v287 = vsel %vm174, %v71, 0.0
  %v288 = vadd.f32 %v70, %v287
  %289 = vadd.xlane.f32.xlu0 %v288
  %v290 = vpop.xlane.xlu0 %289
  %v291 = vsel %vm174, %v73, 0.0
  %v292 = vadd.f32 %v72, %v291
  %293 = vadd.xlane.f32.xlu0 %v292
  %v294 = vpop.xlane.xlu0 %293
  %v295 = vsel %vm174, %v75, 0.0
  %v296 = vadd.f32 %v74, %v295
  %297 = vadd.xlane.f32.xlu0 %v296
  %v298 = vpop.xlane.xlu0 %297
  %v299 = vsel %vm174, %v77, 0.0
  %v300 = vadd.f32 %v76, %v299
  %301 = vadd.xlane.f32.xlu0 %v300
  %v302 = vpop.xlane.xlu0 %301
  %v303 = vsel %vm174, %v79, 0.0
  %v304 = vadd.f32 %v78, %v303
  %305 = vadd.xlane.f32.xlu0 %v304
  %v306 = vpop.xlane.xlu0 %305
  %v307 = vsel %vm174, %v81, 0.0
  %v308 = vadd.f32 %v80, %v307
  %309 = vadd.xlane.f32.xlu0 %v308
  %v310 = vpop.xlane.xlu0 %309
  %v311 = vsel %vm174, %v83, 0.0
  %v312 = vadd.f32 %v82, %v311
  %313 = vadd.xlane.f32.xlu0 %v312
  %v314 = vpop.xlane.xlu0 %313
  %v315 = vsel %vm174, %v85, 0.0
  %v316 = vadd.f32 %v84, %v315
  %317 = vadd.xlane.f32.xlu0 %v316
  %v318 = vpop.xlane.xlu0 %317
  %v319 = vsel %vm174, %v87, 0.0
  %v320 = vadd.f32 %v86, %v319
  %321 = vadd.xlane.f32.xlu0 %v320
  %v322 = vpop.xlane.xlu0 %321
  %v323 = vsel %vm174, %v89, 0.0
  %v324 = vadd.f32 %v88, %v323
  %325 = vadd.xlane.f32.xlu0 %v324
  %v326 = vpop.xlane.xlu0 %325
  %v327 = vsel %vm174, %v91, 0.0
  %v328 = vadd.f32 %v90, %v327
  %329 = vadd.xlane.f32.xlu0 %v328
  %v330 = vpop.xlane.xlu0 %329
  %v331 = vsel %vm174, %v93, 0.0
  %v332 = vadd.f32 %v92, %v331
  %333 = vadd.xlane.f32.xlu0 %v332
  %v334 = vpop.xlane.xlu0 %333
  %v335 = vsel %vm174, %v95, 0.0
  %v336 = vadd.f32 %v94, %v335
  %337 = vadd.xlane.f32.xlu0 %v336
  %v338 = vpop.xlane.xlu0 %337
  %v339 = vsel %vm174, %v97, 0.0
  %v340 = vadd.f32 %v96, %v339
  %341 = vadd.xlane.f32.xlu0 %v340
  %v342 = vpop.xlane.xlu0 %341
  %v343 = vsel %vm174, %v99, 0.0
  %v344 = vadd.f32 %v98, %v343
  %345 = vadd.xlane.f32.xlu0 %v344
  %v346 = vpop.xlane.xlu0 %345
  %v347 = vsel %vm174, %v101, 0.0
  %v348 = vadd.f32 %v100, %v347
  %349 = vadd.xlane.f32.xlu0 %v348
  %v350 = vpop.xlane.xlu0 %349
  %v351 = vsel %vm174, %v103, 0.0
  %v352 = vadd.f32 %v102, %v351
  %353 = vadd.xlane.f32.xlu0 %v352
  %v354 = vpop.xlane.xlu0 %353
  %v355 = vsel %vm174, %v105, 0.0
  %v356 = vadd.f32 %v104, %v355
  %357 = vadd.xlane.f32.xlu0 %v356
  %v358 = vpop.xlane.xlu0 %357
  %v359 = vsel %vm174, %v107, 0.0
  %v360 = vadd.f32 %v106, %v359
  %361 = vadd.xlane.f32.xlu0 %v360
  %v362 = vpop.xlane.xlu0 %361
  %v363 = vsel %vm174, %v109, 0.0
  %v364 = vadd.f32 %v108, %v363
  %365 = vadd.xlane.f32.xlu0 %v364
  %v366 = vpop.xlane.xlu0 %365
  %v367 = vsel %vm174, %v111, 0.0
  %v368 = vadd.f32 %v110, %v367
  %369 = vadd.xlane.f32.xlu0 %v368
  %v370 = vpop.xlane.xlu0 %369
  %v371 = vsel %vm174, %v113, 0.0
  %v372 = vadd.f32 %v112, %v371
  %373 = vadd.xlane.f32.xlu0 %v372
  %v374 = vpop.xlane.xlu0 %373
  %v375 = vsel %vm174, %v115, 0.0
  %v376 = vadd.f32 %v114, %v375
  %377 = vadd.xlane.f32.xlu0 %v376
  %v378 = vpop.xlane.xlu0 %377
  %v379 = vsel %vm174, %v117, 0.0
  %v380 = vadd.f32 %v116, %v379
  %381 = vadd.xlane.f32.xlu0 %v380
  %v382 = vpop.xlane.xlu0 %381
  %v383 = vsel %vm174, %v119, 0.0
  %v384 = vadd.f32 %v118, %v383
  %385 = vadd.xlane.f32.xlu0 %v384
  %v386 = vpop.xlane.xlu0 %385
  %v387 = vsel %vm174, %v121, 0.0
  %v388 = vadd.f32 %v120, %v387
  %389 = vadd.xlane.f32.xlu0 %v388
  %v390 = vpop.xlane.xlu0 %389
  %v391 = vsel %vm174, %v123, 0.0
  %v392 = vadd.f32 %v122, %v391
  %393 = vadd.xlane.f32.xlu0 %v392
  %v394 = vpop.xlane.xlu0 %393
  %v395 = vsel %vm174, %v125, 0.0
  %v396 = vadd.f32 %v124, %v395
  %397 = vadd.xlane.f32.xlu0 %v396
  %v398 = vpop.xlane.xlu0 %397
  %v399 = vsel %vm174, %v127, 0.0
  %v400 = vadd.f32 %v126, %v399
  %401 = vadd.xlane.f32.xlu0 %v400
  %v402 = vpop.xlane.xlu0 %401
  %v403 = vsel %vm174, %v129, 0.0
  %v404 = vadd.f32 %v128, %v403
  %405 = vadd.xlane.f32.xlu0 %v404
  %v406 = vpop.xlane.xlu0 %405
  %v407 = vsel %vm174, %v131, 0.0
  %v408 = vadd.f32 %v130, %v407
  %409 = vadd.xlane.f32.xlu0 %v408
  %v410 = vpop.xlane.xlu0 %409
  %v411 = vsel %vm174, %v133, 0.0
  %v412 = vadd.f32 %v132, %v411
  %413 = vadd.xlane.f32.xlu0 %v412
  %v414 = vpop.xlane.xlu0 %413
  %v415 = vsel %vm174, %v135, 0.0
  %v416 = vadd.f32 %v134, %v415
  %417 = vadd.xlane.f32.xlu0 %v416
  %v418 = vpop.xlane.xlu0 %417
  %v419 = vsel %vm174, %v137, 0.0
  %v420 = vadd.f32 %v136, %v419
  %421 = vadd.xlane.f32.xlu0 %v420
  %v422 = vpop.xlane.xlu0 %421
  %v423 = vsel %vm174, %v139, 0.0
  %v424 = vadd.f32 %v138, %v423
  %425 = vadd.xlane.f32.xlu0 %v424
  %v426 = vpop.xlane.xlu0 %425
  %v427 = vsel %vm174, %v141, 0.0
  %v428 = vadd.f32 %v140, %v427
  %429 = vadd.xlane.f32.xlu0 %v428
  %v430 = vpop.xlane.xlu0 %429
  %v431 = vsel %vm174, %v143, 0.0
  %v432 = vadd.f32 %v142, %v431
  %433 = vadd.xlane.f32.xlu0 %v432
  %v434 = vpop.xlane.xlu0 %433
  %v435 = vsel %vm174, %v145, 0.0
  %v436 = vadd.f32 %v144, %v435
  %437 = vadd.xlane.f32.xlu0 %v436
  %v438 = vpop.xlane.xlu0 %437
  %v439 = vsel %vm174, %v147, 0.0
  %v440 = vadd.f32 %v146, %v439
  %441 = vadd.xlane.f32.xlu0 %v440
  %v442 = vpop.xlane.xlu0 %441
  %v443 = vsel %vm174, %v149, 0.0
  %v444 = vadd.f32 %v148, %v443
  %445 = vadd.xlane.f32.xlu0 %v444
  %v446 = vpop.xlane.xlu0 %445
  %v447 = vsel %vm174, %v151, 0.0
  %v448 = vadd.f32 %v150, %v447
  %449 = vadd.xlane.f32.xlu0 %v448
  %v450 = vpop.xlane.xlu0 %449
  %v451 = vsel %vm174, %v153, 0.0
  %v452 = vadd.f32 %v152, %v451
  %453 = vadd.xlane.f32.xlu0 %v452
  %v454 = vpop.xlane.xlu0 %453
  %v455 = vsel %vm174, %v155, 0.0
  %v456 = vadd.f32 %v154, %v455
  %457 = vadd.xlane.f32.xlu0 %v456
  %v458 = vpop.xlane.xlu0 %457
  %v459 = vsel %vm174, %v157, 0.0
  %v460 = vadd.f32 %v156, %v459
  %461 = vadd.xlane.f32.xlu0 %v460
  %v462 = vpop.xlane.xlu0 %461
  %v463 = vsel %vm174, %v159, 0.0
  %v464 = vadd.f32 %v158, %v463
  %465 = vadd.xlane.f32.xlu0 %v464
  %v466 = vpop.xlane.xlu0 %465
  %v467 = vsel %vm174, %v161, 0.0
  %v468 = vadd.f32 %v160, %v467
  %469 = vadd.xlane.f32.xlu0 %v468
  %v470 = vpop.xlane.xlu0 %469
  %v471 = vsel %vm174, %v163, 0.0
  %v472 = vadd.f32 %v162, %v471
  %473 = vadd.xlane.f32.xlu0 %v472
  %v474 = vpop.xlane.xlu0 %473
  %v475 = vsel %vm174, %v165, 0.0
  %v476 = vadd.f32 %v164, %v475
  %477 = vadd.xlane.f32.xlu0 %v476
  %v478 = vpop.xlane.xlu0 %477
  %v479 = vsel %vm174, %v167, 0.0
  %v480 = vadd.f32 %v166, %v479
  %481 = vadd.xlane.f32.xlu0 %v480
  %v482 = vpop.xlane.xlu0 %481
  %v483 = vsel %vm174, %v169, 0.0
  %v484 = vadd.f32 %v168, %v483
  %485 = vadd.xlane.f32.xlu0 %v484
  %v486 = vpop.xlane.xlu0 %485
  %v487 = vsel %vm174, %v171, 0.0
  %v488 = vadd.f32 %v170, %v487
  %489 = vadd.xlane.f32.xlu0 %v488
  %v490 = vpop.xlane.xlu0 %489
  %v491 = vsel %vm174, %v173, 0.0
  %v492 = vadd.f32 %v172, %v491
  %493 = vadd.xlane.f32.xlu0 %v492
  %v494 = vpop.xlane.xlu0 %493
  %v495 = vmul.f32 %v14, %v14
  %v496 = vmul.f32 %v15, %v15
  %v497 = vmul.f32 %v16, %v16
  %v498 = vmul.f32 %v17, %v17
  %v499 = vmul.f32 %v18, %v18
  %v500 = vmul.f32 %v19, %v19
  %v501 = vmul.f32 %v20, %v20
  %v502 = vmul.f32 %v21, %v21
  %v503 = vmul.f32 %v22, %v22
  %v504 = vmul.f32 %v23, %v23
  %v505 = vmul.f32 %v24, %v24
  %v506 = vmul.f32 %v25, %v25
  %v507 = vmul.f32 %v26, %v26
  %v508 = vmul.f32 %v27, %v27
  %v509 = vmul.f32 %v28, %v28
  %v510 = vmul.f32 %v29, %v29
  %v511 = vmul.f32 %v30, %v30
  %v512 = vmul.f32 %v31, %v31
  %v513 = vmul.f32 %v32, %v32
  %v514 = vmul.f32 %v33, %v33
  %v515 = vmul.f32 %v34, %v34
  %v516 = vmul.f32 %v35, %v35
  %v517 = vmul.f32 %v36, %v36
  %v518 = vmul.f32 %v37, %v37
  %v519 = vmul.f32 %v38, %v38
  %v520 = vmul.f32 %v39, %v39
  %v521 = vmul.f32 %v40, %v40
  %v522 = vmul.f32 %v41, %v41
  %v523 = vmul.f32 %v42, %v42
  %v524 = vmul.f32 %v43, %v43
  %v525 = vmul.f32 %v44, %v44
  %v526 = vmul.f32 %v45, %v45
  %v527 = vmul.f32 %v46, %v46
  %v528 = vmul.f32 %v47, %v47
  %v529 = vmul.f32 %v48, %v48
  %v530 = vmul.f32 %v49, %v49
  %v531 = vmul.f32 %v50, %v50
  %v532 = vmul.f32 %v51, %v51
  %v533 = vmul.f32 %v52, %v52
  %v534 = vmul.f32 %v53, %v53
  %v535 = vmul.f32 %v54, %v54
  %v536 = vmul.f32 %v55, %v55
  %v537 = vmul.f32 %v56, %v56
  %v538 = vmul.f32 %v57, %v57
  %v539 = vmul.f32 %v58, %v58
  %v540 = vmul.f32 %v59, %v59
  %v541 = vmul.f32 %v60, %v60
  %v542 = vmul.f32 %v61, %v61
  %v543 = vmul.f32 %v62, %v62
  %v544 = vmul.f32 %v63, %v63
  %v545 = vmul.f32 %v64, %v64
  %v546 = vmul.f32 %v65, %v65
  %v547 = vmul.f32 %v66, %v66
  %v548 = vmul.f32 %v67, %v67
  %v549 = vmul.f32 %v68, %v68
  %v550 = vmul.f32 %v69, %v69
  %v551 = vmul.f32 %v70, %v70
  %v552 = vmul.f32 %v71, %v71
  %v553 = vmul.f32 %v72, %v72
  %v554 = vmul.f32 %v73, %v73
  %v555 = vmul.f32 %v74, %v74
  %v556 = vmul.f32 %v75, %v75
  %v557 = vmul.f32 %v76, %v76
  %v558 = vmul.f32 %v77, %v77
  %v559 = vmul.f32 %v78, %v78
  %v560 = vmul.f32 %v79, %v79
  %v561 = vmul.f32 %v80, %v80
  %v562 = vmul.f32 %v81, %v81
  %v563 = vmul.f32 %v82, %v82
  %v564 = vmul.f32 %v83, %v83
  %v565 = vmul.f32 %v84, %v84
  %v566 = vmul.f32 %v85, %v85
  %v567 = vmul.f32 %v86, %v86
  %v568 = vmul.f32 %v87, %v87
  %v569 = vmul.f32 %v88, %v88
  %v570 = vmul.f32 %v89, %v89
  %v571 = vmul.f32 %v90, %v90
  %v572 = vmul.f32 %v91, %v91
  %v573 = vmul.f32 %v92, %v92
  %v574 = vmul.f32 %v93, %v93
  %v575 = vmul.f32 %v94, %v94
  %v576 = vmul.f32 %v95, %v95
  %v577 = vmul.f32 %v96, %v96
  %v578 = vmul.f32 %v97, %v97
  %v579 = vmul.f32 %v98, %v98
  %v580 = vmul.f32 %v99, %v99
  %v581 = vmul.f32 %v100, %v100
  %v582 = vmul.f32 %v101, %v101
  %v583 = vmul.f32 %v102, %v102
  %v584 = vmul.f32 %v103, %v103
  %v585 = vmul.f32 %v104, %v104
  %v586 = vmul.f32 %v105, %v105
  %v587 = vmul.f32 %v106, %v106
  %v588 = vmul.f32 %v107, %v107
  %v589 = vmul.f32 %v108, %v108
  %v590 = vmul.f32 %v109, %v109
  %v591 = vmul.f32 %v110, %v110
  %v592 = vmul.f32 %v111, %v111
  %v593 = vmul.f32 %v112, %v112
  %v594 = vmul.f32 %v113, %v113
  %v595 = vmul.f32 %v114, %v114
  %v596 = vmul.f32 %v115, %v115
  %v597 = vmul.f32 %v116, %v116
  %v598 = vmul.f32 %v117, %v117
  %v599 = vmul.f32 %v118, %v118
  %v600 = vmul.f32 %v119, %v119
  %v601 = vmul.f32 %v120, %v120
  %v602 = vmul.f32 %v121, %v121
  %v603 = vmul.f32 %v122, %v122
  %v604 = vmul.f32 %v123, %v123
  %v605 = vmul.f32 %v124, %v124
  %v606 = vmul.f32 %v125, %v125
  %v607 = vmul.f32 %v126, %v126
  %v608 = vmul.f32 %v127, %v127
  %v609 = vmul.f32 %v128, %v128
  %v610 = vmul.f32 %v129, %v129
  %v611 = vmul.f32 %v130, %v130
  %v612 = vmul.f32 %v131, %v131
  %v613 = vmul.f32 %v132, %v132
  %v614 = vmul.f32 %v133, %v133
  %v615 = vmul.f32 %v134, %v134
  %v616 = vmul.f32 %v135, %v135
  %v617 = vmul.f32 %v136, %v136
  %v618 = vmul.f32 %v137, %v137
  %v619 = vmul.f32 %v138, %v138
  %v620 = vmul.f32 %v139, %v139
  %v621 = vmul.f32 %v140, %v140
  %v622 = vmul.f32 %v141, %v141
  %v623 = vmul.f32 %v142, %v142
  %v624 = vmul.f32 %v143, %v143
  %v625 = vmul.f32 %v144, %v144
  %v626 = vmul.f32 %v145, %v145
  %v627 = vmul.f32 %v146, %v146
  %v628 = vmul.f32 %v147, %v147
  %v629 = vmul.f32 %v148, %v148
  %v630 = vmul.f32 %v149, %v149
  %v631 = vmul.f32 %v150, %v150
  %v632 = vmul.f32 %v151, %v151
  %v633 = vmul.f32 %v152, %v152
  %v634 = vmul.f32 %v153, %v153
  %v635 = vmul.f32 %v154, %v154
  %v636 = vmul.f32 %v155, %v155
  %v637 = vmul.f32 %v156, %v156
  %v638 = vmul.f32 %v157, %v157
  %v639 = vmul.f32 %v158, %v158
  %v640 = vmul.f32 %v159, %v159
  %v641 = vmul.f32 %v160, %v160
  %v642 = vmul.f32 %v161, %v161
  %v643 = vmul.f32 %v162, %v162
  %v644 = vmul.f32 %v163, %v163
  %v645 = vmul.f32 %v164, %v164
  %v646 = vmul.f32 %v165, %v165
  %v647 = vmul.f32 %v166, %v166
  %v648 = vmul.f32 %v167, %v167
  %v649 = vmul.f32 %v168, %v168
  %v650 = vmul.f32 %v169, %v169
  %v651 = vmul.f32 %v170, %v170
  %v652 = vmul.f32 %v171, %v171
  %v653 = vmul.f32 %v172, %v172
  %v654 = vmul.f32 %v173, %v173
  %v655 = vsel %vm174, %v496, 0.0
  %v656 = vadd.f32 %v495, %v655
  %657 = vadd.xlane.f32.xlu0 %v656
  %v658 = vpop.xlane.xlu0 %657
  %v659 = vsel %vm174, %v498, 0.0
  %v660 = vadd.f32 %v497, %v659
  %661 = vadd.xlane.f32.xlu0 %v660
  %v662 = vpop.xlane.xlu0 %661
  %v663 = vsel %vm174, %v500, 0.0
  %v664 = vadd.f32 %v499, %v663
  %665 = vadd.xlane.f32.xlu0 %v664
  %v666 = vpop.xlane.xlu0 %665
  %v667 = vsel %vm174, %v502, 0.0
  %v668 = vadd.f32 %v501, %v667
  %669 = vadd.xlane.f32.xlu0 %v668
  %v670 = vpop.xlane.xlu0 %669
  %v671 = vsel %vm174, %v504, 0.0
  %v672 = vadd.f32 %v503, %v671
  %673 = vadd.xlane.f32.xlu0 %v672
  %v674 = vpop.xlane.xlu0 %673
  %v675 = vsel %vm174, %v506, 0.0
  %v676 = vadd.f32 %v505, %v675
  %677 = vadd.xlane.f32.xlu0 %v676
  %v678 = vpop.xlane.xlu0 %677
  %v679 = vsel %vm174, %v508, 0.0
  %v680 = vadd.f32 %v507, %v679
  %681 = vadd.xlane.f32.xlu0 %v680
  %v682 = vpop.xlane.xlu0 %681
  %v683 = vsel %vm174, %v510, 0.0
  %v684 = vadd.f32 %v509, %v683
  %685 = vadd.xlane.f32.xlu0 %v684
  %v686 = vpop.xlane.xlu0 %685
  %v687 = vsel %vm174, %v512, 0.0
  %v688 = vadd.f32 %v511, %v687
  %689 = vadd.xlane.f32.xlu0 %v688
  %v690 = vpop.xlane.xlu0 %689
  %v691 = vsel %vm174, %v514, 0.0
  %v692 = vadd.f32 %v513, %v691
  %693 = vadd.xlane.f32.xlu0 %v692
  %v694 = vpop.xlane.xlu0 %693
  %v695 = vsel %vm174, %v516, 0.0
  %v696 = vadd.f32 %v515, %v695
  %697 = vadd.xlane.f32.xlu0 %v696
  %v698 = vpop.xlane.xlu0 %697
  %v699 = vsel %vm174, %v518, 0.0
  %v700 = vadd.f32 %v517, %v699
  %701 = vadd.xlane.f32.xlu0 %v700
  %v702 = vpop.xlane.xlu0 %701
  %v703 = vsel %vm174, %v520, 0.0
  %v704 = vadd.f32 %v519, %v703
  %705 = vadd.xlane.f32.xlu0 %v704
  %v706 = vpop.xlane.xlu0 %705
  %v707 = vsel %vm174, %v522, 0.0
  %v708 = vadd.f32 %v521, %v707
  %709 = vadd.xlane.f32.xlu0 %v708
  %v710 = vpop.xlane.xlu0 %709
  %v711 = vsel %vm174, %v524, 0.0
  %v712 = vadd.f32 %v523, %v711
  %713 = vadd.xlane.f32.xlu0 %v712
  %v714 = vpop.xlane.xlu0 %713
  %v715 = vsel %vm174, %v526, 0.0
  %v716 = vadd.f32 %v525, %v715
  %717 = vadd.xlane.f32.xlu0 %v716
  %v718 = vpop.xlane.xlu0 %717
  %v719 = vsel %vm174, %v528, 0.0
  %v720 = vadd.f32 %v527, %v719
  %721 = vadd.xlane.f32.xlu0 %v720
  %v722 = vpop.xlane.xlu0 %721
  %v723 = vsel %vm174, %v530, 0.0
  %v724 = vadd.f32 %v529, %v723
  %725 = vadd.xlane.f32.xlu0 %v724
  %v726 = vpop.xlane.xlu0 %725
  %v727 = vsel %vm174, %v532, 0.0
  %v728 = vadd.f32 %v531, %v727
  %729 = vadd.xlane.f32.xlu0 %v728
  %v730 = vpop.xlane.xlu0 %729
  %v731 = vsel %vm174, %v534, 0.0
  %v732 = vadd.f32 %v533, %v731
  %733 = vadd.xlane.f32.xlu0 %v732
  %v734 = vpop.xlane.xlu0 %733
  %v735 = vsel %vm174, %v536, 0.0
  %v736 = vadd.f32 %v535, %v735
  %737 = vadd.xlane.f32.xlu0 %v736
  %v738 = vpop.xlane.xlu0 %737
  %v739 = vsel %vm174, %v538, 0.0
  %v740 = vadd.f32 %v537, %v739
  %741 = vadd.xlane.f32.xlu0 %v740
  %v742 = vpop.xlane.xlu0 %741
  %v743 = vsel %vm174, %v540, 0.0
  %v744 = vadd.f32 %v539, %v743
  %745 = vadd.xlane.f32.xlu0 %v744
  %v746 = vpop.xlane.xlu0 %745
  %v747 = vsel %vm174, %v542, 0.0
  %v748 = vadd.f32 %v541, %v747
  %749 = vadd.xlane.f32.xlu0 %v748
  %v750 = vpop.xlane.xlu0 %749
  %v751 = vsel %vm174, %v544, 0.0
  %v752 = vadd.f32 %v543, %v751
  %753 = vadd.xlane.f32.xlu0 %v752
  %v754 = vpop.xlane.xlu0 %753
  %v755 = vsel %vm174, %v546, 0.0
  %v756 = vadd.f32 %v545, %v755
  %757 = vadd.xlane.f32.xlu0 %v756
  %v758 = vpop.xlane.xlu0 %757
  %v759 = vsel %vm174, %v548, 0.0
  %v760 = vadd.f32 %v547, %v759
  %761 = vadd.xlane.f32.xlu0 %v760
  %v762 = vpop.xlane.xlu0 %761
  %v763 = vsel %vm174, %v550, 0.0
  %v764 = vadd.f32 %v549, %v763
  %765 = vadd.xlane.f32.xlu0 %v764
  %v766 = vpop.xlane.xlu0 %765
  %v767 = vsel %vm174, %v552, 0.0
  %v768 = vadd.f32 %v551, %v767
  %769 = vadd.xlane.f32.xlu0 %v768
  %v770 = vpop.xlane.xlu0 %769
  %v771 = vsel %vm174, %v554, 0.0
  %v772 = vadd.f32 %v553, %v771
  %773 = vadd.xlane.f32.xlu0 %v772
  %v774 = vpop.xlane.xlu0 %773
  %v775 = vsel %vm174, %v556, 0.0
  %v776 = vadd.f32 %v555, %v775
  %777 = vadd.xlane.f32.xlu0 %v776
  %v778 = vpop.xlane.xlu0 %777
  %v779 = vsel %vm174, %v558, 0.0
  %v780 = vadd.f32 %v557, %v779
  %781 = vadd.xlane.f32.xlu0 %v780
  %v782 = vpop.xlane.xlu0 %781
  %v783 = vsel %vm174, %v560, 0.0
  %v784 = vadd.f32 %v559, %v783
  %785 = vadd.xlane.f32.xlu0 %v784
  %v786 = vpop.xlane.xlu0 %785
  %v787 = vsel %vm174, %v562, 0.0
  %v788 = vadd.f32 %v561, %v787
  %789 = vadd.xlane.f32.xlu0 %v788
  %v790 = vpop.xlane.xlu0 %789
  %v791 = vsel %vm174, %v564, 0.0
  %v792 = vadd.f32 %v563, %v791
  %793 = vadd.xlane.f32.xlu0 %v792
  %v794 = vpop.xlane.xlu0 %793
  %v795 = vsel %vm174, %v566, 0.0
  %v796 = vadd.f32 %v565, %v795
  %797 = vadd.xlane.f32.xlu0 %v796
  %v798 = vpop.xlane.xlu0 %797
  %v799 = vsel %vm174, %v568, 0.0
  %v800 = vadd.f32 %v567, %v799
  %801 = vadd.xlane.f32.xlu0 %v800
  %v802 = vpop.xlane.xlu0 %801
  %v803 = vsel %vm174, %v570, 0.0
  %v804 = vadd.f32 %v569, %v803
  %805 = vadd.xlane.f32.xlu0 %v804
  %v806 = vpop.xlane.xlu0 %805
  %v807 = vsel %vm174, %v572, 0.0
  %v808 = vadd.f32 %v571, %v807
  %809 = vadd.xlane.f32.xlu0 %v808
  %v810 = vpop.xlane.xlu0 %809
  %v811 = vsel %vm174, %v574, 0.0
  %v812 = vadd.f32 %v573, %v811
  %813 = vadd.xlane.f32.xlu0 %v812
  %v814 = vpop.xlane.xlu0 %813
  %v815 = vsel %vm174, %v576, 0.0
  %v816 = vadd.f32 %v575, %v815
  %817 = vadd.xlane.f32.xlu0 %v816
  %v818 = vpop.xlane.xlu0 %817
  %v819 = vsel %vm174, %v578, 0.0
  %v820 = vadd.f32 %v577, %v819
  %821 = vadd.xlane.f32.xlu0 %v820
  %v822 = vpop.xlane.xlu0 %821
  %v823 = vsel %vm174, %v580, 0.0
  %v824 = vadd.f32 %v579, %v823
  %825 = vadd.xlane.f32.xlu0 %v824
  %v826 = vpop.xlane.xlu0 %825
  %v827 = vsel %vm174, %v582, 0.0
  %v828 = vadd.f32 %v581, %v827
  %829 = vadd.xlane.f32.xlu0 %v828
  %v830 = vpop.xlane.xlu0 %829
  %v831 = vsel %vm174, %v584, 0.0
  %v832 = vadd.f32 %v583, %v831
  %833 = vadd.xlane.f32.xlu0 %v832
  %v834 = vpop.xlane.xlu0 %833
  %v835 = vsel %vm174, %v586, 0.0
  %v836 = vadd.f32 %v585, %v835
  %837 = vadd.xlane.f32.xlu0 %v836
  %v838 = vpop.xlane.xlu0 %837
  %v839 = vsel %vm174, %v588, 0.0
  %v840 = vadd.f32 %v587, %v839
  %841 = vadd.xlane.f32.xlu0 %v840
  %v842 = vpop.xlane.xlu0 %841
  %v843 = vsel %vm174, %v590, 0.0
  %v844 = vadd.f32 %v589, %v843
  %845 = vadd.xlane.f32.xlu0 %v844
  %v846 = vpop.xlane.xlu0 %845
  %v847 = vsel %vm174, %v592, 0.0
  %v848 = vadd.f32 %v591, %v847
  %849 = vadd.xlane.f32.xlu0 %v848
  %v850 = vpop.xlane.xlu0 %849
  %v851 = vsel %vm174, %v594, 0.0
  %v852 = vadd.f32 %v593, %v851
  %853 = vadd.xlane.f32.xlu0 %v852
  %v854 = vpop.xlane.xlu0 %853
  %v855 = vsel %vm174, %v596, 0.0
  %v856 = vadd.f32 %v595, %v855
  %857 = vadd.xlane.f32.xlu0 %v856
  %v858 = vpop.xlane.xlu0 %857
  %v859 = vsel %vm174, %v598, 0.0
  %v860 = vadd.f32 %v597, %v859
  %861 = vadd.xlane.f32.xlu0 %v860
  %v862 = vpop.xlane.xlu0 %861
  %v863 = vsel %vm174, %v600, 0.0
  %v864 = vadd.f32 %v599, %v863
  %865 = vadd.xlane.f32.xlu0 %v864
  %v866 = vpop.xlane.xlu0 %865
  %v867 = vsel %vm174, %v602, 0.0
  %v868 = vadd.f32 %v601, %v867
  %869 = vadd.xlane.f32.xlu0 %v868
  %v870 = vpop.xlane.xlu0 %869
  %v871 = vsel %vm174, %v604, 0.0
  %v872 = vadd.f32 %v603, %v871
  %873 = vadd.xlane.f32.xlu0 %v872
  %v874 = vpop.xlane.xlu0 %873
  %v875 = vsel %vm174, %v606, 0.0
  %v876 = vadd.f32 %v605, %v875
  %877 = vadd.xlane.f32.xlu0 %v876
  %v878 = vpop.xlane.xlu0 %877
  %v879 = vsel %vm174, %v608, 0.0
  %v880 = vadd.f32 %v607, %v879
  %881 = vadd.xlane.f32.xlu0 %v880
  %v882 = vpop.xlane.xlu0 %881
  %v883 = vsel %vm174, %v610, 0.0
  %v884 = vadd.f32 %v609, %v883
  %885 = vadd.xlane.f32.xlu0 %v884
  %v886 = vpop.xlane.xlu0 %885
  %v887 = vsel %vm174, %v612, 0.0
  %v888 = vadd.f32 %v611, %v887
  %889 = vadd.xlane.f32.xlu0 %v888
  %v890 = vpop.xlane.xlu0 %889
  %v891 = vsel %vm174, %v614, 0.0
  %v892 = vadd.f32 %v613, %v891
  %893 = vadd.xlane.f32.xlu0 %v892
  %v894 = vpop.xlane.xlu0 %893
  %v895 = vsel %vm174, %v616, 0.0
  %v896 = vadd.f32 %v615, %v895
  %897 = vadd.xlane.f32.xlu0 %v896
  %v898 = vpop.xlane.xlu0 %897
  %v899 = vsel %vm174, %v618, 0.0
  %v900 = vadd.f32 %v617, %v899
  %901 = vadd.xlane.f32.xlu0 %v900
  %v902 = vpop.xlane.xlu0 %901
  %v903 = vsel %vm174, %v620, 0.0
  %v904 = vadd.f32 %v619, %v903
  %905 = vadd.xlane.f32.xlu0 %v904
  %v906 = vpop.xlane.xlu0 %905
  %v907 = vsel %vm174, %v622, 0.0
  %v908 = vadd.f32 %v621, %v907
  %909 = vadd.xlane.f32.xlu0 %v908
  %v910 = vpop.xlane.xlu0 %909
  %v911 = vsel %vm174, %v624, 0.0
  %v912 = vadd.f32 %v623, %v911
  %913 = vadd.xlane.f32.xlu0 %v912
  %v914 = vpop.xlane.xlu0 %913
  %v915 = vsel %vm174, %v626, 0.0
  %v916 = vadd.f32 %v625, %v915
  %917 = vadd.xlane.f32.xlu0 %v916
  %v918 = vpop.xlane.xlu0 %917
  %v919 = vsel %vm174, %v628, 0.0
  %v920 = vadd.f32 %v627, %v919
  %921 = vadd.xlane.f32.xlu0 %v920
  %v922 = vpop.xlane.xlu0 %921
  %v923 = vsel %vm174, %v630, 0.0
  %v924 = vadd.f32 %v629, %v923
  %925 = vadd.xlane.f32.xlu0 %v924
  %v926 = vpop.xlane.xlu0 %925
  %v927 = vsel %vm174, %v632, 0.0
  %v928 = vadd.f32 %v631, %v927
  %929 = vadd.xlane.f32.xlu0 %v928
  %v930 = vpop.xlane.xlu0 %929
  %v931 = vsel %vm174, %v634, 0.0
  %v932 = vadd.f32 %v633, %v931
  %933 = vadd.xlane.f32.xlu0 %v932
  %v934 = vpop.xlane.xlu0 %933
  %v935 = vsel %vm174, %v636, 0.0
  %v936 = vadd.f32 %v635, %v935
  %937 = vadd.xlane.f32.xlu0 %v936
  %v938 = vpop.xlane.xlu0 %937
  %v939 = vsel %vm174, %v638, 0.0
  %v940 = vadd.f32 %v637, %v939
  %941 = vadd.xlane.f32.xlu0 %v940
  %v942 = vpop.xlane.xlu0 %941
  %v943 = vsel %vm174, %v640, 0.0
  %v944 = vadd.f32 %v639, %v943
  %945 = vadd.xlane.f32.xlu0 %v944
  %v946 = vpop.xlane.xlu0 %945
  %v947 = vsel %vm174, %v642, 0.0
  %v948 = vadd.f32 %v641, %v947
  %949 = vadd.xlane.f32.xlu0 %v948
  %v950 = vpop.xlane.xlu0 %949
  %v951 = vsel %vm174, %v644, 0.0
  %v952 = vadd.f32 %v643, %v951
  %953 = vadd.xlane.f32.xlu0 %v952
  %v954 = vpop.xlane.xlu0 %953
  %v955 = vsel %vm174, %v646, 0.0
  %v956 = vadd.f32 %v645, %v955
  %957 = vadd.xlane.f32.xlu0 %v956
  %v958 = vpop.xlane.xlu0 %957
  %v959 = vsel %vm174, %v648, 0.0
  %v960 = vadd.f32 %v647, %v959
  %961 = vadd.xlane.f32.xlu0 %v960
  %v962 = vpop.xlane.xlu0 %961
  %v963 = vsel %vm174, %v650, 0.0
  %v964 = vadd.f32 %v649, %v963
  %965 = vadd.xlane.f32.xlu0 %v964
  %v966 = vpop.xlane.xlu0 %965
  %v967 = vsel %vm174, %v652, 0.0
  %v968 = vadd.f32 %v651, %v967
  %969 = vadd.xlane.f32.xlu0 %v968
  %v970 = vpop.xlane.xlu0 %969
  %v971 = vsel %vm174, %v654, 0.0
  %v972 = vadd.f32 %v653, %v971
  %973 = vadd.xlane.f32.xlu0 %v972
  %v974 = vpop.xlane.xlu0 %973
  %v975 = vmul.f32 %v178, 0.0051020407
  %v976 = vmul.f32 %v182, 0.0051020407
  %v977 = vmul.f32 %v186, 0.0051020407
  %v978 = vmul.f32 %v190, 0.0051020407
  %v979 = vmul.f32 %v194, 0.0051020407
  %v980 = vmul.f32 %v198, 0.0051020407
  %v981 = vmul.f32 %v202, 0.0051020407
  %v982 = vmul.f32 %v206, 0.0051020407
  %v983 = vmul.f32 %v210, 0.0051020407
  %v984 = vmul.f32 %v214, 0.0051020407
  %v985 = vmul.f32 %v218, 0.0051020407
  %v986 = vmul.f32 %v222, 0.0051020407
  %v987 = vmul.f32 %v226, 0.0051020407
  %v988 = vmul.f32 %v230, 0.0051020407
  %v989 = vmul.f32 %v234, 0.0051020407
  %v990 = vmul.f32 %v238, 0.0051020407
  %v991 = vmul.f32 %v242, 0.0051020407
  %v992 = vmul.f32 %v246, 0.0051020407
  %v993 = vmul.f32 %v250, 0.0051020407
  %v994 = vmul.f32 %v254, 0.0051020407
  %v995 = vmul.f32 %v258, 0.0051020407
  %v996 = vmul.f32 %v262, 0.0051020407
  %v997 = vmul.f32 %v266, 0.0051020407
  %v998 = vmul.f32 %v270, 0.0051020407
  %v999 = vmul.f32 %v274, 0.0051020407
  %v1000 = vmul.f32 %v278, 0.0051020407
  %v1001 = vmul.f32 %v282, 0.0051020407
  %v1002 = vmul.f32 %v286, 0.0051020407
  %v1003 = vmul.f32 %v290, 0.0051020407
  %v1004 = vmul.f32 %v294, 0.0051020407
  %v1005 = vmul.f32 %v298, 0.0051020407
  %v1006 = vmul.f32 %v302, 0.0051020407
  %v1007 = vmul.f32 %v306, 0.0051020407
  %v1008 = vmul.f32 %v310, 0.0051020407
  %v1009 = vmul.f32 %v314, 0.0051020407
  %v1010 = vmul.f32 %v318, 0.0051020407
  %v1011 = vmul.f32 %v322, 0.0051020407
  %v1012 = vmul.f32 %v326, 0.0051020407
  %v1013 = vmul.f32 %v330, 0.0051020407
  %v1014 = vmul.f32 %v334, 0.0051020407
  %v1015 = vmul.f32 %v338, 0.0051020407
  %v1016 = vmul.f32 %v342, 0.0051020407
  %v1017 = vmul.f32 %v346, 0.0051020407
  %v1018 = vmul.f32 %v350, 0.0051020407
  %v1019 = vmul.f32 %v354, 0.0051020407
  %v1020 = vmul.f32 %v358, 0.0051020407
  %v1021 = vmul.f32 %v362, 0.0051020407
  %v1022 = vmul.f32 %v366, 0.0051020407
  %v1023 = vmul.f32 %v370, 0.0051020407
  %v1024 = vmul.f32 %v374, 0.0051020407
  %v1025 = vmul.f32 %v378, 0.0051020407
  %v1026 = vmul.f32 %v382, 0.0051020407
  %v1027 = vmul.f32 %v386, 0.0051020407
  %v1028 = vmul.f32 %v390, 0.0051020407
  %v1029 = vmul.f32 %v394, 0.0051020407
  %v1030 = vmul.f32 %v398, 0.0051020407
  %v1031 = vmul.f32 %v402, 0.0051020407
  %v1032 = vmul.f32 %v406, 0.0051020407
  %v1033 = vmul.f32 %v410, 0.0051020407
  %v1034 = vmul.f32 %v414, 0.0051020407
  %v1035 = vmul.f32 %v418, 0.0051020407
  %v1036 = vmul.f32 %v422, 0.0051020407
  %v1037 = vmul.f32 %v426, 0.0051020407
  %v1038 = vmul.f32 %v430, 0.0051020407
  %v1039 = vmul.f32 %v434, 0.0051020407
  %v1040 = vmul.f32 %v438, 0.0051020407
  %v1041 = vmul.f32 %v442, 0.0051020407
  %v1042 = vmul.f32 %v446, 0.0051020407
  %v1043 = vmul.f32 %v450, 0.0051020407
  %v1044 = vmul.f32 %v454, 0.0051020407
  %v1045 = vmul.f32 %v458, 0.0051020407
  %v1046 = vmul.f32 %v462, 0.0051020407
  %v1047 = vmul.f32 %v466, 0.0051020407
  %v1048 = vmul.f32 %v470, 0.0051020407
  %v1049 = vmul.f32 %v474, 0.0051020407
  %v1050 = vmul.f32 %v478, 0.0051020407
  %v1051 = vmul.f32 %v482, 0.0051020407
  %v1052 = vmul.f32 %v486, 0.0051020407
  %v1053 = vmul.f32 %v490, 0.0051020407
  %v1054 = vmul.f32 %v494, 0.0051020407
  %v1055 = vmul.f32 %v658, 0.0051020407
  %v1056 = vmul.f32 %v662, 0.0051020407
  %v1057 = vmul.f32 %v666, 0.0051020407
  %v1058 = vmul.f32 %v670, 0.0051020407
  %v1059 = vmul.f32 %v674, 0.0051020407
  %v1060 = vmul.f32 %v678, 0.0051020407
  %v1061 = vmul.f32 %v682, 0.0051020407
  %v1062 = vmul.f32 %v686, 0.0051020407
  %v1063 = vmul.f32 %v690, 0.0051020407
  %v1064 = vmul.f32 %v694, 0.0051020407
  %v1065 = vmul.f32 %v698, 0.0051020407
  %v1066 = vmul.f32 %v702, 0.0051020407
  %v1067 = vmul.f32 %v706, 0.0051020407
  %v1068 = vmul.f32 %v710, 0.0051020407
  %v1069 = vmul.f32 %v714, 0.0051020407
  %v1070 = vmul.f32 %v718, 0.0051020407
  %v1071 = vmul.f32 %v722, 0.0051020407
  %v1072 = vmul.f32 %v726, 0.0051020407
  %v1073 = vmul.f32 %v730, 0.0051020407
  %v1074 = vmul.f32 %v734, 0.0051020407
  %v1075 = vmul.f32 %v738, 0.0051020407
  %v1076 = vmul.f32 %v742, 0.0051020407
  %v1077 = vmul.f32 %v746, 0.0051020407
  %v1078 = vmul.f32 %v750, 0.0051020407
  %v1079 = vmul.f32 %v754, 0.0051020407
  %v1080 = vmul.f32 %v758, 0.0051020407
  %v1081 = vmul.f32 %v762, 0.0051020407
  %v1082 = vmul.f32 %v766, 0.0051020407
  %v1083 = vmul.f32 %v770, 0.0051020407
  %v1084 = vmul.f32 %v774, 0.0051020407
  %v1085 = vmul.f32 %v778, 0.0051020407
  %v1086 = vmul.f32 %v782, 0.0051020407
  %v1087 = vmul.f32 %v786, 0.0051020407
  %v1088 = vmul.f32 %v790, 0.0051020407
  %v1089 = vmul.f32 %v794, 0.0051020407
  %v1090 = vmul.f32 %v798, 0.0051020407
  %v1091 = vmul.f32 %v802, 0.0051020407
  %v1092 = vmul.f32 %v806, 0.0051020407
  %v1093 = vmul.f32 %v810, 0.0051020407
  %v1094 = vmul.f32 %v814, 0.0051020407
  %v1095 = vmul.f32 %v818, 0.0051020407
  %v1096 = vmul.f32 %v822, 0.0051020407
  %v1097 = vmul.f32 %v826, 0.0051020407
  %v1098 = vmul.f32 %v830, 0.0051020407
  %v1099 = vmul.f32 %v834, 0.0051020407
  %v1100 = vmul.f32 %v838, 0.0051020407
  %v1101 = vmul.f32 %v842, 0.0051020407
  %v1102 = vmul.f32 %v846, 0.0051020407
  %v1103 = vmul.f32 %v850, 0.0051020407
  %v1104 = vmul.f32 %v854, 0.0051020407
  %v1105 = vmul.f32 %v858, 0.0051020407
  %v1106 = vmul.f32 %v862, 0.0051020407
  %v1107 = vmul.f32 %v866, 0.0051020407
  %v1108 = vmul.f32 %v870, 0.0051020407
  %v1109 = vmul.f32 %v874, 0.0051020407
  %v1110 = vmul.f32 %v878, 0.0051020407
  %v1111 = vmul.f32 %v882, 0.0051020407
  %v1112 = vmul.f32 %v886, 0.0051020407
  %v1113 = vmul.f32 %v890, 0.0051020407
  %v1114 = vmul.f32 %v894, 0.0051020407
  %v1115 = vmul.f32 %v898, 0.0051020407
  %v1116 = vmul.f32 %v902, 0.0051020407
  %v1117 = vmul.f32 %v906, 0.0051020407
  %v1118 = vmul.f32 %v910, 0.0051020407
  %v1119 = vmul.f32 %v914, 0.0051020407
  %v1120 = vmul.f32 %v918, 0.0051020407
  %v1121 = vmul.f32 %v922, 0.0051020407
  %v1122 = vmul.f32 %v926, 0.0051020407
  %v1123 = vmul.f32 %v930, 0.0051020407
  %v1124 = vmul.f32 %v934, 0.0051020407
  %v1125 = vmul.f32 %v938, 0.0051020407
  %v1126 = vmul.f32 %v942, 0.0051020407
  %v1127 = vmul.f32 %v946, 0.0051020407
  %v1128 = vmul.f32 %v950, 0.0051020407
  %v1129 = vmul.f32 %v954, 0.0051020407
  %v1130 = vmul.f32 %v958, 0.0051020407
  %v1131 = vmul.f32 %v962, 0.0051020407
  %v1132 = vmul.f32 %v966, 0.0051020407
  %v1133 = vmul.f32 %v970, 0.0051020407
  %v1134 = vmul.f32 %v974, 0.0051020407
  %v1135 = vmul.f32 %v975, %v975
  %v1136 = vmul.f32 %v976, %v976
  %v1137 = vmul.f32 %v977, %v977
  %v1138 = vmul.f32 %v978, %v978
  %v1139 = vmul.f32 %v979, %v979
  %v1140 = vmul.f32 %v980, %v980
  %v1141 = vmul.f32 %v981, %v981
  %v1142 = vmul.f32 %v982, %v982
  %v1143 = vmul.f32 %v983, %v983
  %v1144 = vmul.f32 %v984, %v984
  %v1145 = vmul.f32 %v985, %v985
  %v1146 = vmul.f32 %v986, %v986
  %v1147 = vmul.f32 %v987, %v987
  %v1148 = vmul.f32 %v988, %v988
  %v1149 = vmul.f32 %v989, %v989
  %v1150 = vmul.f32 %v990, %v990
  %v1151 = vmul.f32 %v991, %v991
  %v1152 = vmul.f32 %v992, %v992
  %v1153 = vmul.f32 %v993, %v993
  %v1154 = vmul.f32 %v994, %v994
  %v1155 = vmul.f32 %v995, %v995
  %v1156 = vmul.f32 %v996, %v996
  %v1157 = vmul.f32 %v997, %v997
  %v1158 = vmul.f32 %v998, %v998
  %v1159 = vmul.f32 %v999, %v999
  %v1160 = vmul.f32 %v1000, %v1000
  %v1161 = vmul.f32 %v1001, %v1001
  %v1162 = vmul.f32 %v1002, %v1002
  %v1163 = vmul.f32 %v1003, %v1003
  %v1164 = vmul.f32 %v1004, %v1004
  %v1165 = vmul.f32 %v1005, %v1005
  %v1166 = vmul.f32 %v1006, %v1006
  %v1167 = vmul.f32 %v1007, %v1007
  %v1168 = vmul.f32 %v1008, %v1008
  %v1169 = vmul.f32 %v1009, %v1009
  %v1170 = vmul.f32 %v1010, %v1010
  %v1171 = vmul.f32 %v1011, %v1011
  %v1172 = vmul.f32 %v1012, %v1012
  %v1173 = vmul.f32 %v1013, %v1013
  %v1174 = vmul.f32 %v1014, %v1014
  %v1175 = vmul.f32 %v1015, %v1015
  %v1176 = vmul.f32 %v1016, %v1016
  %v1177 = vmul.f32 %v1017, %v1017
  %v1178 = vmul.f32 %v1018, %v1018
  %v1179 = vmul.f32 %v1019, %v1019
  %v1180 = vmul.f32 %v1020, %v1020
  %v1181 = vmul.f32 %v1021, %v1021
  %v1182 = vmul.f32 %v1022, %v1022
  %v1183 = vmul.f32 %v1023, %v1023
  %v1184 = vmul.f32 %v1024, %v1024
  %v1185 = vmul.f32 %v1025, %v1025
  %v1186 = vmul.f32 %v1026, %v1026
  %v1187 = vmul.f32 %v1027, %v1027
  %v1188 = vmul.f32 %v1028, %v1028
  %v1189 = vmul.f32 %v1029, %v1029
  %v1190 = vmul.f32 %v1030, %v1030
  %v1191 = vmul.f32 %v1031, %v1031
  %v1192 = vmul.f32 %v1032, %v1032
  %v1193 = vmul.f32 %v1033, %v1033
  %v1194 = vmul.f32 %v1034, %v1034
  %v1195 = vmul.f32 %v1035, %v1035
  %v1196 = vmul.f32 %v1036, %v1036
  %v1197 = vmul.f32 %v1037, %v1037
  %v1198 = vmul.f32 %v1038, %v1038
  %v1199 = vmul.f32 %v1039, %v1039
  %v1200 = vmul.f32 %v1040, %v1040
  %v1201 = vmul.f32 %v1041, %v1041
  %v1202 = vmul.f32 %v1042, %v1042
  %v1203 = vmul.f32 %v1043, %v1043
  %v1204 = vmul.f32 %v1044, %v1044
  %v1205 = vmul.f32 %v1045, %v1045
  %v1206 = vmul.f32 %v1046, %v1046
  %v1207 = vmul.f32 %v1047, %v1047
  %v1208 = vmul.f32 %v1048, %v1048
  %v1209 = vmul.f32 %v1049, %v1049
  %v1210 = vmul.f32 %v1050, %v1050
  %v1211 = vmul.f32 %v1051, %v1051
  %v1212 = vmul.f32 %v1052, %v1052
  %v1213 = vmul.f32 %v1053, %v1053
  %v1214 = vmul.f32 %v1054, %v1054
  %v1215 = vsub.f32 %v1055, %v1135
  %v1216 = vsub.f32 %v1056, %v1136
  %v1217 = vsub.f32 %v1057, %v1137
  %v1218 = vsub.f32 %v1058, %v1138
  %v1219 = vsub.f32 %v1059, %v1139
  %v1220 = vsub.f32 %v1060, %v1140
  %v1221 = vsub.f32 %v1061, %v1141
  %v1222 = vsub.f32 %v1062, %v1142
  %v1223 = vsub.f32 %v1063, %v1143
  %v1224 = vsub.f32 %v1064, %v1144
  %v1225 = vsub.f32 %v1065, %v1145
  %v1226 = vsub.f32 %v1066, %v1146
  %v1227 = vsub.f32 %v1067, %v1147
  %v1228 = vsub.f32 %v1068, %v1148
  %v1229 = vsub.f32 %v1069, %v1149
  %v1230 = vsub.f32 %v1070, %v1150
  %v1231 = vsub.f32 %v1071, %v1151
  %v1232 = vsub.f32 %v1072, %v1152
  %v1233 = vsub.f32 %v1073, %v1153
  %v1234 = vsub.f32 %v1074, %v1154
  %v1235 = vsub.f32 %v1075, %v1155
  %v1236 = vsub.f32 %v1076, %v1156
  %v1237 = vsub.f32 %v1077, %v1157
  %v1238 = vsub.f32 %v1078, %v1158
  %v1239 = vsub.f32 %v1079, %v1159
  %v1240 = vsub.f32 %v1080, %v1160
  %v1241 = vsub.f32 %v1081, %v1161
  %v1242 = vsub.f32 %v1082, %v1162
  %v1243 = vsub.f32 %v1083, %v1163
  %v1244 = vsub.f32 %v1084, %v1164
  %v1245 = vsub.f32 %v1085, %v1165
  %v1246 = vsub.f32 %v1086, %v1166
  %v1247 = vsub.f32 %v1087, %v1167
  %v1248 = vsub.f32 %v1088, %v1168
  %v1249 = vsub.f32 %v1089, %v1169
  %v1250 = vsub.f32 %v1090, %v1170
  %v1251 = vsub.f32 %v1091, %v1171
  %v1252 = vsub.f32 %v1092, %v1172
  %v1253 = vsub.f32 %v1093, %v1173
  %v1254 = vsub.f32 %v1094, %v1174
  %v1255 = vsub.f32 %v1095, %v1175
  %v1256 = vsub.f32 %v1096, %v1176
  %v1257 = vsub.f32 %v1097, %v1177
  %v1258 = vsub.f32 %v1098, %v1178
  %v1259 = vsub.f32 %v1099, %v1179
  %v1260 = vsub.f32 %v1100, %v1180
  %v1261 = vsub.f32 %v1101, %v1181
  %v1262 = vsub.f32 %v1102, %v1182
  %v1263 = vsub.f32 %v1103, %v1183
  %v1264 = vsub.f32 %v1104, %v1184
  %v1265 = vsub.f32 %v1105, %v1185
  %v1266 = vsub.f32 %v1106, %v1186
  %v1267 = vsub.f32 %v1107, %v1187
  %v1268 = vsub.f32 %v1108, %v1188
  %v1269 = vsub.f32 %v1109, %v1189
  %v1270 = vsub.f32 %v1110, %v1190
  %v1271 = vsub.f32 %v1111, %v1191
  %v1272 = vsub.f32 %v1112, %v1192
  %v1273 = vsub.f32 %v1113, %v1193
  %v1274 = vsub.f32 %v1114, %v1194
  %v1275 = vsub.f32 %v1115, %v1195
  %v1276 = vsub.f32 %v1116, %v1196
  %v1277 = vsub.f32 %v1117, %v1197
  %v1278 = vsub.f32 %v1118, %v1198
  %v1279 = vsub.f32 %v1119, %v1199
  %v1280 = vsub.f32 %v1120, %v1200
  %v1281 = vsub.f32 %v1121, %v1201
  %v1282 = vsub.f32 %v1122, %v1202
  %v1283 = vsub.f32 %v1123, %v1203
  %v1284 = vsub.f32 %v1124, %v1204
  %v1285 = vsub.f32 %v1125, %v1205
  %v1286 = vsub.f32 %v1126, %v1206
  %v1287 = vsub.f32 %v1127, %v1207
  %v1288 = vsub.f32 %v1128, %v1208
  %v1289 = vsub.f32 %v1129, %v1209
  %v1290 = vsub.f32 %v1130, %v1210
  %v1291 = vsub.f32 %v1131, %v1211
  %v1292 = vsub.f32 %v1132, %v1212
  %v1293 = vsub.f32 %v1133, %v1213
  %v1294 = vsub.f32 %v1134, %v1214
  %v1295 = vmax.f32 %v1215, 0.0
  %v1296 = vmax.f32 %v1216, 0.0
  %v1297 = vmax.f32 %v1217, 0.0
  %v1298 = vmax.f32 %v1218, 0.0
  %v1299 = vmax.f32 %v1219, 0.0
  %v1300 = vmax.f32 %v1220, 0.0
  %v1301 = vmax.f32 %v1221, 0.0
  %v1302 = vmax.f32 %v1222, 0.0
  %v1303 = vmax.f32 %v1223, 0.0
  %v1304 = vmax.f32 %v1224, 0.0
  %v1305 = vmax.f32 %v1225, 0.0
  %v1306 = vmax.f32 %v1226, 0.0
  %v1307 = vmax.f32 %v1227, 0.0
  %v1308 = vmax.f32 %v1228, 0.0
  %v1309 = vmax.f32 %v1229, 0.0
  %v1310 = vmax.f32 %v1230, 0.0
  %v1311 = vmax.f32 %v1231, 0.0
  %v1312 = vmax.f32 %v1232, 0.0
  %v1313 = vmax.f32 %v1233, 0.0
  %v1314 = vmax.f32 %v1234, 0.0
  %v1315 = vmax.f32 %v1235, 0.0
  %v1316 = vmax.f32 %v1236, 0.0
  %v1317 = vmax.f32 %v1237, 0.0
  %v1318 = vmax.f32 %v1238, 0.0
  %v1319 = vmax.f32 %v1239, 0.0
  %v1320 = vmax.f32 %v1240, 0.0
  %v1321 = vmax.f32 %v1241, 0.0
  %v1322 = vmax.f32 %v1242, 0.0
  %v1323 = vmax.f32 %v1243, 0.0
  %v1324 = vmax.f32 %v1244, 0.0
  %v1325 = vmax.f32 %v1245, 0.0
  %v1326 = vmax.f32 %v1246, 0.0
  %v1327 = vmax.f32 %v1247, 0.0
  %v1328 = vmax.f32 %v1248, 0.0
  %v1329 = vmax.f32 %v1249, 0.0
  %v1330 = vmax.f32 %v1250, 0.0
  %v1331 = vmax.f32 %v1251, 0.0
  %v1332 = vmax.f32 %v1252, 0.0
  %v1333 = vmax.f32 %v1253, 0.0
  %v1334 = vmax.f32 %v1254, 0.0
  %v1335 = vmax.f32 %v1255, 0.0
  %v1336 = vmax.f32 %v1256, 0.0
  %v1337 = vmax.f32 %v1257, 0.0
  %v1338 = vmax.f32 %v1258, 0.0
  %v1339 = vmax.f32 %v1259, 0.0
  %v1340 = vmax.f32 %v1260, 0.0
  %v1341 = vmax.f32 %v1261, 0.0
  %v1342 = vmax.f32 %v1262, 0.0
  %v1343 = vmax.f32 %v1263, 0.0
  %v1344 = vmax.f32 %v1264, 0.0
  %v1345 = vmax.f32 %v1265, 0.0
  %v1346 = vmax.f32 %v1266, 0.0
  %v1347 = vmax.f32 %v1267, 0.0
  %v1348 = vmax.f32 %v1268, 0.0
  %v1349 = vmax.f32 %v1269, 0.0
  %v1350 = vmax.f32 %v1270, 0.0
  %v1351 = vmax.f32 %v1271, 0.0
  %v1352 = vmax.f32 %v1272, 0.0
  %v1353 = vmax.f32 %v1273, 0.0
  %v1354 = vmax.f32 %v1274, 0.0
  %v1355 = vmax.f32 %v1275, 0.0
  %v1356 = vmax.f32 %v1276, 0.0
  %v1357 = vmax.f32 %v1277, 0.0
  %v1358 = vmax.f32 %v1278, 0.0
  %v1359 = vmax.f32 %v1279, 0.0
  %v1360 = vmax.f32 %v1280, 0.0
  %v1361 = vmax.f32 %v1281, 0.0
  %v1362 = vmax.f32 %v1282, 0.0
  %v1363 = vmax.f32 %v1283, 0.0
  %v1364 = vmax.f32 %v1284, 0.0
  %v1365 = vmax.f32 %v1285, 0.0
  %v1366 = vmax.f32 %v1286, 0.0
  %v1367 = vmax.f32 %v1287, 0.0
  %v1368 = vmax.f32 %v1288, 0.0
  %v1369 = vmax.f32 %v1289, 0.0
  %v1370 = vmax.f32 %v1290, 0.0
  %v1371 = vmax.f32 %v1291, 0.0
  %v1372 = vmax.f32 %v1292, 0.0
  %v1373 = vmax.f32 %v1293, 0.0
  %v1374 = vmax.f32 %v1294, 0.0
  %v1375 = vadd.f32 %v1295, 0.001
  %v1376 = vadd.f32 %v1296, 0.001
  %v1377 = vadd.f32 %v1297, 0.001
  %v1378 = vadd.f32 %v1298, 0.001
  %v1379 = vadd.f32 %v1299, 0.001
  %v1380 = vadd.f32 %v1300, 0.001
  %v1381 = vadd.f32 %v1301, 0.001
  %v1382 = vadd.f32 %v1302, 0.001
  %v1383 = vadd.f32 %v1303, 0.001
  %v1384 = vadd.f32 %v1304, 0.001
  %v1385 = vadd.f32 %v1305, 0.001
  %v1386 = vadd.f32 %v1306, 0.001
  %v1387 = vadd.f32 %v1307, 0.001
  %v1388 = vadd.f32 %v1308, 0.001
  %v1389 = vadd.f32 %v1309, 0.001
  %v1390 = vadd.f32 %v1310, 0.001
  %v1391 = vadd.f32 %v1311, 0.001
  %v1392 = vadd.f32 %v1312, 0.001
  %v1393 = vadd.f32 %v1313, 0.001
  %v1394 = vadd.f32 %v1314, 0.001
  %v1395 = vadd.f32 %v1315, 0.001
  %v1396 = vadd.f32 %v1316, 0.001
  %v1397 = vadd.f32 %v1317, 0.001
  %v1398 = vadd.f32 %v1318, 0.001
  %v1399 = vadd.f32 %v1319, 0.001
  %v1400 = vadd.f32 %v1320, 0.001
  %v1401 = vadd.f32 %v1321, 0.001
  %v1402 = vadd.f32 %v1322, 0.001
  %v1403 = vadd.f32 %v1323, 0.001
  %v1404 = vadd.f32 %v1324, 0.001
  %v1405 = vadd.f32 %v1325, 0.001
  %v1406 = vadd.f32 %v1326, 0.001
  %v1407 = vadd.f32 %v1327, 0.001
  %v1408 = vadd.f32 %v1328, 0.001
  %v1409 = vadd.f32 %v1329, 0.001
  %v1410 = vadd.f32 %v1330, 0.001
  %v1411 = vadd.f32 %v1331, 0.001
  %v1412 = vadd.f32 %v1332, 0.001
  %v1413 = vadd.f32 %v1333, 0.001
  %v1414 = vadd.f32 %v1334, 0.001
  %v1415 = vadd.f32 %v1335, 0.001
  %v1416 = vadd.f32 %v1336, 0.001
  %v1417 = vadd.f32 %v1337, 0.001
  %v1418 = vadd.f32 %v1338, 0.001
  %v1419 = vadd.f32 %v1339, 0.001
  %v1420 = vadd.f32 %v1340, 0.001
  %v1421 = vadd.f32 %v1341, 0.001
  %v1422 = vadd.f32 %v1342, 0.001
  %v1423 = vadd.f32 %v1343, 0.001
  %v1424 = vadd.f32 %v1344, 0.001
  %v1425 = vadd.f32 %v1345, 0.001
  %v1426 = vadd.f32 %v1346, 0.001
  %v1427 = vadd.f32 %v1347, 0.001
  %v1428 = vadd.f32 %v1348, 0.001
  %v1429 = vadd.f32 %v1349, 0.001
  %v1430 = vadd.f32 %v1350, 0.001
  %v1431 = vadd.f32 %v1351, 0.001
  %v1432 = vadd.f32 %v1352, 0.001
  %v1433 = vadd.f32 %v1353, 0.001
  %v1434 = vadd.f32 %v1354, 0.001
  %v1435 = vadd.f32 %v1355, 0.001
  %v1436 = vadd.f32 %v1356, 0.001
  %v1437 = vadd.f32 %v1357, 0.001
  %v1438 = vadd.f32 %v1358, 0.001
  %v1439 = vadd.f32 %v1359, 0.001
  %v1440 = vadd.f32 %v1360, 0.001
  %v1441 = vadd.f32 %v1361, 0.001
  %v1442 = vadd.f32 %v1362, 0.001
  %v1443 = vadd.f32 %v1363, 0.001
  %v1444 = vadd.f32 %v1364, 0.001
  %v1445 = vadd.f32 %v1365, 0.001
  %v1446 = vadd.f32 %v1366, 0.001
  %v1447 = vadd.f32 %v1367, 0.001
  %v1448 = vadd.f32 %v1368, 0.001
  %v1449 = vadd.f32 %v1369, 0.001
  %v1450 = vadd.f32 %v1370, 0.001
  %v1451 = vadd.f32 %v1371, 0.001
  %v1452 = vadd.f32 %v1372, 0.001
  %v1453 = vadd.f32 %v1373, 0.001
  %v1454 = vadd.f32 %v1374, 0.001
  %v1455 = vrsqrt.pop %v1375
  %v1456 = vmul.f32 %v1455, %v1375
  %v1457 = vmul.f32 %v1456, %v1455
  %v1458 = vmul.f32 0.5, %v1457
  %v1459 = vsub.f32 1.5, %v1458
  %v1460 = vmul.f32 %v1455, %v1459
  %vm1461 = vweird.f32 %v1375
  %vm1462 = vweird.f32 %v1455
  %vm1463 = vmor %vm1461, %vm1462
  %v1464 = vsel %vm1463, %v1455, %v1460
  %v1465 = vrsqrt.pop %v1376
  %v1466 = vmul.f32 %v1465, %v1376
  %v1467 = vmul.f32 %v1466, %v1465
  %v1468 = vmul.f32 0.5, %v1467
  %v1469 = vsub.f32 1.5, %v1468
  %v1470 = vmul.f32 %v1465, %v1469
  %vm1471 = vweird.f32 %v1376
  %vm1472 = vweird.f32 %v1465
  %vm1473 = vmor %vm1471, %vm1472
  %v1474 = vsel %vm1473, %v1465, %v1470
  %v1475 = vrsqrt.pop %v1377
  %v1476 = vmul.f32 %v1475, %v1377
  %v1477 = vmul.f32 %v1476, %v1475
  %v1478 = vmul.f32 0.5, %v1477
  %v1479 = vsub.f32 1.5, %v1478
  %v1480 = vmul.f32 %v1475, %v1479
  %vm1481 = vweird.f32 %v1377
  %vm1482 = vweird.f32 %v1475
  %vm1483 = vmor %vm1481, %vm1482
  %v1484 = vsel %vm1483, %v1475, %v1480
  %v1485 = vrsqrt.pop %v1378
  %v1486 = vmul.f32 %v1485, %v1378
  %v1487 = vmul.f32 %v1486, %v1485
  %v1488 = vmul.f32 0.5, %v1487
  %v1489 = vsub.f32 1.5, %v1488
  %v1490 = vmul.f32 %v1485, %v1489
  %vm1491 = vweird.f32 %v1378
  %vm1492 = vweird.f32 %v1485
  %vm1493 = vmor %vm1491, %vm1492
  %v1494 = vsel %vm1493, %v1485, %v1490
  %v1495 = vrsqrt.pop %v1379
  %v1496 = vmul.f32 %v1495, %v1379
  %v1497 = vmul.f32 %v1496, %v1495
  %v1498 = vmul.f32 0.5, %v1497
  %v1499 = vsub.f32 1.5, %v1498
  %v1500 = vmul.f32 %v1495, %v1499
  %vm1501 = vweird.f32 %v1379
  %vm1502 = vweird.f32 %v1495
  %vm1503 = vmor %vm1501, %vm1502
  %v1504 = vsel %vm1503, %v1495, %v1500
  %v1505 = vrsqrt.pop %v1380
  %v1506 = vmul.f32 %v1505, %v1380
  %v1507 = vmul.f32 %v1506, %v1505
  %v1508 = vmul.f32 0.5, %v1507
  %v1509 = vsub.f32 1.5, %v1508
  %v1510 = vmul.f32 %v1505, %v1509
  %vm1511 = vweird.f32 %v1380
  %vm1512 = vweird.f32 %v1505
  %vm1513 = vmor %vm1511, %vm1512
  %v1514 = vsel %vm1513, %v1505, %v1510
  %v1515 = vrsqrt.pop %v1381
  %v1516 = vmul.f32 %v1515, %v1381
  %v1517 = vmul.f32 %v1516, %v1515
  %v1518 = vmul.f32 0.5, %v1517
  %v1519 = vsub.f32 1.5, %v1518
  %v1520 = vmul.f32 %v1515, %v1519
  %vm1521 = vweird.f32 %v1381
  %vm1522 = vweird.f32 %v1515
  %vm1523 = vmor %vm1521, %vm1522
  %v1524 = vsel %vm1523, %v1515, %v1520
  %v1525 = vrsqrt.pop %v1382
  %v1526 = vmul.f32 %v1525, %v1382
  %v1527 = vmul.f32 %v1526, %v1525
  %v1528 = vmul.f32 0.5, %v1527
  %v1529 = vsub.f32 1.5, %v1528
  %v1530 = vmul.f32 %v1525, %v1529
  %vm1531 = vweird.f32 %v1382
  %vm1532 = vweird.f32 %v1525
  %vm1533 = vmor %vm1531, %vm1532
  %v1534 = vsel %vm1533, %v1525, %v1530
  %v1535 = vrsqrt.pop %v1383
  %v1536 = vmul.f32 %v1535, %v1383
  %v1537 = vmul.f32 %v1536, %v1535
  %v1538 = vmul.f32 0.5, %v1537
  %v1539 = vsub.f32 1.5, %v1538
  %v1540 = vmul.f32 %v1535, %v1539
  %vm1541 = vweird.f32 %v1383
  %vm1542 = vweird.f32 %v1535
  %vm1543 = vmor %vm1541, %vm1542
  %v1544 = vsel %vm1543, %v1535, %v1540
  %v1545 = vrsqrt.pop %v1384
  %v1546 = vmul.f32 %v1545, %v1384
  %v1547 = vmul.f32 %v1546, %v1545
  %v1548 = vmul.f32 0.5, %v1547
  %v1549 = vsub.f32 1.5, %v1548
  %v1550 = vmul.f32 %v1545, %v1549
  %vm1551 = vweird.f32 %v1384
  %vm1552 = vweird.f32 %v1545
  %vm1553 = vmor %vm1551, %vm1552
  %v1554 = vsel %vm1553, %v1545, %v1550
  %v1555 = vrsqrt.pop %v1385
  %v1556 = vmul.f32 %v1555, %v1385
  %v1557 = vmul.f32 %v1556, %v1555
  %v1558 = vmul.f32 0.5, %v1557
  %v1559 = vsub.f32 1.5, %v1558
  %v1560 = vmul.f32 %v1555, %v1559
  %vm1561 = vweird.f32 %v1385
  %vm1562 = vweird.f32 %v1555
  %vm1563 = vmor %vm1561, %vm1562
  %v1564 = vsel %vm1563, %v1555, %v1560
  %v1565 = vrsqrt.pop %v1386
  %v1566 = vmul.f32 %v1565, %v1386
  %v1567 = vmul.f32 %v1566, %v1565
  %v1568 = vmul.f32 0.5, %v1567
  %v1569 = vsub.f32 1.5, %v1568
  %v1570 = vmul.f32 %v1565, %v1569
  %vm1571 = vweird.f32 %v1386
  %vm1572 = vweird.f32 %v1565
  %vm1573 = vmor %vm1571, %vm1572
  %v1574 = vsel %vm1573, %v1565, %v1570
  %v1575 = vrsqrt.pop %v1387
  %v1576 = vmul.f32 %v1575, %v1387
  %v1577 = vmul.f32 %v1576, %v1575
  %v1578 = vmul.f32 0.5, %v1577
  %v1579 = vsub.f32 1.5, %v1578
  %v1580 = vmul.f32 %v1575, %v1579
  %vm1581 = vweird.f32 %v1387
  %vm1582 = vweird.f32 %v1575
  %vm1583 = vmor %vm1581, %vm1582
  %v1584 = vsel %vm1583, %v1575, %v1580
  %v1585 = vrsqrt.pop %v1388
  %v1586 = vmul.f32 %v1585, %v1388
  %v1587 = vmul.f32 %v1586, %v1585
  %v1588 = vmul.f32 0.5, %v1587
  %v1589 = vsub.f32 1.5, %v1588
  %v1590 = vmul.f32 %v1585, %v1589
  %vm1591 = vweird.f32 %v1388
  %vm1592 = vweird.f32 %v1585
  %vm1593 = vmor %vm1591, %vm1592
  %v1594 = vsel %vm1593, %v1585, %v1590
  %v1595 = vrsqrt.pop %v1389
  %v1596 = vmul.f32 %v1595, %v1389
  %v1597 = vmul.f32 %v1596, %v1595
  %v1598 = vmul.f32 0.5, %v1597
  %v1599 = vsub.f32 1.5, %v1598
  %v1600 = vmul.f32 %v1595, %v1599
  %vm1601 = vweird.f32 %v1389
  %vm1602 = vweird.f32 %v1595
  %vm1603 = vmor %vm1601, %vm1602
  %v1604 = vsel %vm1603, %v1595, %v1600
  %v1605 = vrsqrt.pop %v1390
  %v1606 = vmul.f32 %v1605, %v1390
  %v1607 = vmul.f32 %v1606, %v1605
  %v1608 = vmul.f32 0.5, %v1607
  %v1609 = vsub.f32 1.5, %v1608
  %v1610 = vmul.f32 %v1605, %v1609
  %vm1611 = vweird.f32 %v1390
  %vm1612 = vweird.f32 %v1605
  %vm1613 = vmor %vm1611, %vm1612
  %v1614 = vsel %vm1613, %v1605, %v1610
  %v1615 = vrsqrt.pop %v1391
  %v1616 = vmul.f32 %v1615, %v1391
  %v1617 = vmul.f32 %v1616, %v1615
  %v1618 = vmul.f32 0.5, %v1617
  %v1619 = vsub.f32 1.5, %v1618
  %v1620 = vmul.f32 %v1615, %v1619
  %vm1621 = vweird.f32 %v1391
  %vm1622 = vweird.f32 %v1615
  %vm1623 = vmor %vm1621, %vm1622
  %v1624 = vsel %vm1623, %v1615, %v1620
  %v1625 = vrsqrt.pop %v1392
  %v1626 = vmul.f32 %v1625, %v1392
  %v1627 = vmul.f32 %v1626, %v1625
  %v1628 = vmul.f32 0.5, %v1627
  %v1629 = vsub.f32 1.5, %v1628
  %v1630 = vmul.f32 %v1625, %v1629
  %vm1631 = vweird.f32 %v1392
  %vm1632 = vweird.f32 %v1625
  %vm1633 = vmor %vm1631, %vm1632
  %v1634 = vsel %vm1633, %v1625, %v1630
  %v1635 = vrsqrt.pop %v1393
  %v1636 = vmul.f32 %v1635, %v1393
  %v1637 = vmul.f32 %v1636, %v1635
  %v1638 = vmul.f32 0.5, %v1637
  %v1639 = vsub.f32 1.5, %v1638
  %v1640 = vmul.f32 %v1635, %v1639
  %vm1641 = vweird.f32 %v1393
  %vm1642 = vweird.f32 %v1635
  %vm1643 = vmor %vm1641, %vm1642
  %v1644 = vsel %vm1643, %v1635, %v1640
  %v1645 = vrsqrt.pop %v1394
  %v1646 = vmul.f32 %v1645, %v1394
  %v1647 = vmul.f32 %v1646, %v1645
  %v1648 = vmul.f32 0.5, %v1647
  %v1649 = vsub.f32 1.5, %v1648
  %v1650 = vmul.f32 %v1645, %v1649
  %vm1651 = vweird.f32 %v1394
  %vm1652 = vweird.f32 %v1645
  %vm1653 = vmor %vm1651, %vm1652
  %v1654 = vsel %vm1653, %v1645, %v1650
  %v1655 = vrsqrt.pop %v1395
  %v1656 = vmul.f32 %v1655, %v1395
  %v1657 = vmul.f32 %v1656, %v1655
  %v1658 = vmul.f32 0.5, %v1657
  %v1659 = vsub.f32 1.5, %v1658
  %v1660 = vmul.f32 %v1655, %v1659
  %vm1661 = vweird.f32 %v1395
  %vm1662 = vweird.f32 %v1655
  %vm1663 = vmor %vm1661, %vm1662
  %v1664 = vsel %vm1663, %v1655, %v1660
  %v1665 = vrsqrt.pop %v1396
  %v1666 = vmul.f32 %v1665, %v1396
  %v1667 = vmul.f32 %v1666, %v1665
  %v1668 = vmul.f32 0.5, %v1667
  %v1669 = vsub.f32 1.5, %v1668
  %v1670 = vmul.f32 %v1665, %v1669
  %vm1671 = vweird.f32 %v1396
  %vm1672 = vweird.f32 %v1665
  %vm1673 = vmor %vm1671, %vm1672
  %v1674 = vsel %vm1673, %v1665, %v1670
  %v1675 = vrsqrt.pop %v1397
  %v1676 = vmul.f32 %v1675, %v1397
  %v1677 = vmul.f32 %v1676, %v1675
  %v1678 = vmul.f32 0.5, %v1677
  %v1679 = vsub.f32 1.5, %v1678
  %v1680 = vmul.f32 %v1675, %v1679
  %vm1681 = vweird.f32 %v1397
  %vm1682 = vweird.f32 %v1675
  %vm1683 = vmor %vm1681, %vm1682
  %v1684 = vsel %vm1683, %v1675, %v1680
  %v1685 = vrsqrt.pop %v1398
  %v1686 = vmul.f32 %v1685, %v1398
  %v1687 = vmul.f32 %v1686, %v1685
  %v1688 = vmul.f32 0.5, %v1687
  %v1689 = vsub.f32 1.5, %v1688
  %v1690 = vmul.f32 %v1685, %v1689
  %vm1691 = vweird.f32 %v1398
  %vm1692 = vweird.f32 %v1685
  %vm1693 = vmor %vm1691, %vm1692
  %v1694 = vsel %vm1693, %v1685, %v1690
  %v1695 = vrsqrt.pop %v1399
  %v1696 = vmul.f32 %v1695, %v1399
  %v1697 = vmul.f32 %v1696, %v1695
  %v1698 = vmul.f32 0.5, %v1697
  %v1699 = vsub.f32 1.5, %v1698
  %v1700 = vmul.f32 %v1695, %v1699
  %vm1701 = vweird.f32 %v1399
  %vm1702 = vweird.f32 %v1695
  %vm1703 = vmor %vm1701, %vm1702
  %v1704 = vsel %vm1703, %v1695, %v1700
  %v1705 = vrsqrt.pop %v1400
  %v1706 = vmul.f32 %v1705, %v1400
  %v1707 = vmul.f32 %v1706, %v1705
  %v1708 = vmul.f32 0.5, %v1707
  %v1709 = vsub.f32 1.5, %v1708
  %v1710 = vmul.f32 %v1705, %v1709
  %vm1711 = vweird.f32 %v1400
  %vm1712 = vweird.f32 %v1705
  %vm1713 = vmor %vm1711, %vm1712
  %v1714 = vsel %vm1713, %v1705, %v1710
  %v1715 = vrsqrt.pop %v1401
  %v1716 = vmul.f32 %v1715, %v1401
  %v1717 = vmul.f32 %v1716, %v1715
  %v1718 = vmul.f32 0.5, %v1717
  %v1719 = vsub.f32 1.5, %v1718
  %v1720 = vmul.f32 %v1715, %v1719
  %vm1721 = vweird.f32 %v1401
  %vm1722 = vweird.f32 %v1715
  %vm1723 = vmor %vm1721, %vm1722
  %v1724 = vsel %vm1723, %v1715, %v1720
  %v1725 = vrsqrt.pop %v1402
  %v1726 = vmul.f32 %v1725, %v1402
  %v1727 = vmul.f32 %v1726, %v1725
  %v1728 = vmul.f32 0.5, %v1727
  %v1729 = vsub.f32 1.5, %v1728
  %v1730 = vmul.f32 %v1725, %v1729
  %vm1731 = vweird.f32 %v1402
  %vm1732 = vweird.f32 %v1725
  %vm1733 = vmor %vm1731, %vm1732
  %v1734 = vsel %vm1733, %v1725, %v1730
  %v1735 = vrsqrt.pop %v1403
  %v1736 = vmul.f32 %v1735, %v1403
  %v1737 = vmul.f32 %v1736, %v1735
  %v1738 = vmul.f32 0.5, %v1737
  %v1739 = vsub.f32 1.5, %v1738
  %v1740 = vmul.f32 %v1735, %v1739
  %vm1741 = vweird.f32 %v1403
  %vm1742 = vweird.f32 %v1735
  %vm1743 = vmor %vm1741, %vm1742
  %v1744 = vsel %vm1743, %v1735, %v1740
  %v1745 = vrsqrt.pop %v1404
  %v1746 = vmul.f32 %v1745, %v1404
  %v1747 = vmul.f32 %v1746, %v1745
  %v1748 = vmul.f32 0.5, %v1747
  %v1749 = vsub.f32 1.5, %v1748
  %v1750 = vmul.f32 %v1745, %v1749
  %vm1751 = vweird.f32 %v1404
  %vm1752 = vweird.f32 %v1745
  %vm1753 = vmor %vm1751, %vm1752
  %v1754 = vsel %vm1753, %v1745, %v1750
  %v1755 = vrsqrt.pop %v1405
  %v1756 = vmul.f32 %v1755, %v1405
  %v1757 = vmul.f32 %v1756, %v1755
  %v1758 = vmul.f32 0.5, %v1757
  %v1759 = vsub.f32 1.5, %v1758
  %v1760 = vmul.f32 %v1755, %v1759
  %vm1761 = vweird.f32 %v1405
  %vm1762 = vweird.f32 %v1755
  %vm1763 = vmor %vm1761, %vm1762
  %v1764 = vsel %vm1763, %v1755, %v1760
  %v1765 = vrsqrt.pop %v1406
  %v1766 = vmul.f32 %v1765, %v1406
  %v1767 = vmul.f32 %v1766, %v1765
  %v1768 = vmul.f32 0.5, %v1767
  %v1769 = vsub.f32 1.5, %v1768
  %v1770 = vmul.f32 %v1765, %v1769
  %vm1771 = vweird.f32 %v1406
  %vm1772 = vweird.f32 %v1765
  %vm1773 = vmor %vm1771, %vm1772
  %v1774 = vsel %vm1773, %v1765, %v1770
  %v1775 = vrsqrt.pop %v1407
  %v1776 = vmul.f32 %v1775, %v1407
  %v1777 = vmul.f32 %v1776, %v1775
  %v1778 = vmul.f32 0.5, %v1777
  %v1779 = vsub.f32 1.5, %v1778
  %v1780 = vmul.f32 %v1775, %v1779
  %vm1781 = vweird.f32 %v1407
  %vm1782 = vweird.f32 %v1775
  %vm1783 = vmor %vm1781, %vm1782
  %v1784 = vsel %vm1783, %v1775, %v1780
  %v1785 = vrsqrt.pop %v1408
  %v1786 = vmul.f32 %v1785, %v1408
  %v1787 = vmul.f32 %v1786, %v1785
  %v1788 = vmul.f32 0.5, %v1787
  %v1789 = vsub.f32 1.5, %v1788
  %v1790 = vmul.f32 %v1785, %v1789
  %vm1791 = vweird.f32 %v1408
  %vm1792 = vweird.f32 %v1785
  %vm1793 = vmor %vm1791, %vm1792
  %v1794 = vsel %vm1793, %v1785, %v1790
  %v1795 = vrsqrt.pop %v1409
  %v1796 = vmul.f32 %v1795, %v1409
  %v1797 = vmul.f32 %v1796, %v1795
  %v1798 = vmul.f32 0.5, %v1797
  %v1799 = vsub.f32 1.5, %v1798
  %v1800 = vmul.f32 %v1795, %v1799
  %vm1801 = vweird.f32 %v1409
  %vm1802 = vweird.f32 %v1795
  %vm1803 = vmor %vm1801, %vm1802
  %v1804 = vsel %vm1803, %v1795, %v1800
  %v1805 = vrsqrt.pop %v1410
  %v1806 = vmul.f32 %v1805, %v1410
  %v1807 = vmul.f32 %v1806, %v1805
  %v1808 = vmul.f32 0.5, %v1807
  %v1809 = vsub.f32 1.5, %v1808
  %v1810 = vmul.f32 %v1805, %v1809
  %vm1811 = vweird.f32 %v1410
  %vm1812 = vweird.f32 %v1805
  %vm1813 = vmor %vm1811, %vm1812
  %v1814 = vsel %vm1813, %v1805, %v1810
  %v1815 = vrsqrt.pop %v1411
  %v1816 = vmul.f32 %v1815, %v1411
  %v1817 = vmul.f32 %v1816, %v1815
  %v1818 = vmul.f32 0.5, %v1817
  %v1819 = vsub.f32 1.5, %v1818
  %v1820 = vmul.f32 %v1815, %v1819
  %vm1821 = vweird.f32 %v1411
  %vm1822 = vweird.f32 %v1815
  %vm1823 = vmor %vm1821, %vm1822
  %v1824 = vsel %vm1823, %v1815, %v1820
  %v1825 = vrsqrt.pop %v1412
  %v1826 = vmul.f32 %v1825, %v1412
  %v1827 = vmul.f32 %v1826, %v1825
  %v1828 = vmul.f32 0.5, %v1827
  %v1829 = vsub.f32 1.5, %v1828
  %v1830 = vmul.f32 %v1825, %v1829
  %vm1831 = vweird.f32 %v1412
  %vm1832 = vweird.f32 %v1825
  %vm1833 = vmor %vm1831, %vm1832
  %v1834 = vsel %vm1833, %v1825, %v1830
  %v1835 = vrsqrt.pop %v1413
  %v1836 = vmul.f32 %v1835, %v1413
  %v1837 = vmul.f32 %v1836, %v1835
  %v1838 = vmul.f32 0.5, %v1837
  %v1839 = vsub.f32 1.5, %v1838
  %v1840 = vmul.f32 %v1835, %v1839
  %vm1841 = vweird.f32 %v1413
  %vm1842 = vweird.f32 %v1835
  %vm1843 = vmor %vm1841, %vm1842
  %v1844 = vsel %vm1843, %v1835, %v1840
  %v1845 = vrsqrt.pop %v1414
  %v1846 = vmul.f32 %v1845, %v1414
  %v1847 = vmul.f32 %v1846, %v1845
  %v1848 = vmul.f32 0.5, %v1847
  %v1849 = vsub.f32 1.5, %v1848
  %v1850 = vmul.f32 %v1845, %v1849
  %vm1851 = vweird.f32 %v1414
  %vm1852 = vweird.f32 %v1845
  %vm1853 = vmor %vm1851, %vm1852
  %v1854 = vsel %vm1853, %v1845, %v1850
  %v1855 = vrsqrt.pop %v1415
  %v1856 = vmul.f32 %v1855, %v1415
  %v1857 = vmul.f32 %v1856, %v1855
  %v1858 = vmul.f32 0.5, %v1857
  %v1859 = vsub.f32 1.5, %v1858
  %v1860 = vmul.f32 %v1855, %v1859
  %vm1861 = vweird.f32 %v1415
  %vm1862 = vweird.f32 %v1855
  %vm1863 = vmor %vm1861, %vm1862
  %v1864 = vsel %vm1863, %v1855, %v1860
  %v1865 = vrsqrt.pop %v1416
  %v1866 = vmul.f32 %v1865, %v1416
  %v1867 = vmul.f32 %v1866, %v1865
  %v1868 = vmul.f32 0.5, %v1867
  %v1869 = vsub.f32 1.5, %v1868
  %v1870 = vmul.f32 %v1865, %v1869
  %vm1871 = vweird.f32 %v1416
  %vm1872 = vweird.f32 %v1865
  %vm1873 = vmor %vm1871, %vm1872
  %v1874 = vsel %vm1873, %v1865, %v1870
  %v1875 = vrsqrt.pop %v1417
  %v1876 = vmul.f32 %v1875, %v1417
  %v1877 = vmul.f32 %v1876, %v1875
  %v1878 = vmul.f32 0.5, %v1877
  %v1879 = vsub.f32 1.5, %v1878
  %v1880 = vmul.f32 %v1875, %v1879
  %vm1881 = vweird.f32 %v1417
  %vm1882 = vweird.f32 %v1875
  %vm1883 = vmor %vm1881, %vm1882
  %v1884 = vsel %vm1883, %v1875, %v1880
  %v1885 = vrsqrt.pop %v1418
  %v1886 = vmul.f32 %v1885, %v1418
  %v1887 = vmul.f32 %v1886, %v1885
  %v1888 = vmul.f32 0.5, %v1887
  %v1889 = vsub.f32 1.5, %v1888
  %v1890 = vmul.f32 %v1885, %v1889
  %vm1891 = vweird.f32 %v1418
  %vm1892 = vweird.f32 %v1885
  %vm1893 = vmor %vm1891, %vm1892
  %v1894 = vsel %vm1893, %v1885, %v1890
  %v1895 = vrsqrt.pop %v1419
  %v1896 = vmul.f32 %v1895, %v1419
  %v1897 = vmul.f32 %v1896, %v1895
  %v1898 = vmul.f32 0.5, %v1897
  %v1899 = vsub.f32 1.5, %v1898
  %v1900 = vmul.f32 %v1895, %v1899
  %vm1901 = vweird.f32 %v1419
  %vm1902 = vweird.f32 %v1895
  %vm1903 = vmor %vm1901, %vm1902
  %v1904 = vsel %vm1903, %v1895, %v1900
  %v1905 = vrsqrt.pop %v1420
  %v1906 = vmul.f32 %v1905, %v1420
  %v1907 = vmul.f32 %v1906, %v1905
  %v1908 = vmul.f32 0.5, %v1907
  %v1909 = vsub.f32 1.5, %v1908
  %v1910 = vmul.f32 %v1905, %v1909
  %vm1911 = vweird.f32 %v1420
  %vm1912 = vweird.f32 %v1905
  %vm1913 = vmor %vm1911, %vm1912
  %v1914 = vsel %vm1913, %v1905, %v1910
  %v1915 = vrsqrt.pop %v1421
  %v1916 = vmul.f32 %v1915, %v1421
  %v1917 = vmul.f32 %v1916, %v1915
  %v1918 = vmul.f32 0.5, %v1917
  %v1919 = vsub.f32 1.5, %v1918
  %v1920 = vmul.f32 %v1915, %v1919
  %vm1921 = vweird.f32 %v1421
  %vm1922 = vweird.f32 %v1915
  %vm1923 = vmor %vm1921, %vm1922
  %v1924 = vsel %vm1923, %v1915, %v1920
  %v1925 = vrsqrt.pop %v1422
  %v1926 = vmul.f32 %v1925, %v1422
  %v1927 = vmul.f32 %v1926, %v1925
  %v1928 = vmul.f32 0.5, %v1927
  %v1929 = vsub.f32 1.5, %v1928
  %v1930 = vmul.f32 %v1925, %v1929
  %vm1931 = vweird.f32 %v1422
  %vm1932 = vweird.f32 %v1925
  %vm1933 = vmor %vm1931, %vm1932
  %v1934 = vsel %vm1933, %v1925, %v1930
  %v1935 = vrsqrt.pop %v1423
  %v1936 = vmul.f32 %v1935, %v1423
  %v1937 = vmul.f32 %v1936, %v1935
  %v1938 = vmul.f32 0.5, %v1937
  %v1939 = vsub.f32 1.5, %v1938
  %v1940 = vmul.f32 %v1935, %v1939
  %vm1941 = vweird.f32 %v1423
  %vm1942 = vweird.f32 %v1935
  %vm1943 = vmor %vm1941, %vm1942
  %v1944 = vsel %vm1943, %v1935, %v1940
  %v1945 = vrsqrt.pop %v1424
  %v1946 = vmul.f32 %v1945, %v1424
  %v1947 = vmul.f32 %v1946, %v1945
  %v1948 = vmul.f32 0.5, %v1947
  %v1949 = vsub.f32 1.5, %v1948
  %v1950 = vmul.f32 %v1945, %v1949
  %vm1951 = vweird.f32 %v1424
  %vm1952 = vweird.f32 %v1945
  %vm1953 = vmor %vm1951, %vm1952
  %v1954 = vsel %vm1953, %v1945, %v1950
  %v1955 = vrsqrt.pop %v1425
  %v1956 = vmul.f32 %v1955, %v1425
  %v1957 = vmul.f32 %v1956, %v1955
  %v1958 = vmul.f32 0.5, %v1957
  %v1959 = vsub.f32 1.5, %v1958
  %v1960 = vmul.f32 %v1955, %v1959
  %vm1961 = vweird.f32 %v1425
  %vm1962 = vweird.f32 %v1955
  %vm1963 = vmor %vm1961, %vm1962
  %v1964 = vsel %vm1963, %v1955, %v1960
  %v1965 = vrsqrt.pop %v1426
  %v1966 = vmul.f32 %v1965, %v1426
  %v1967 = vmul.f32 %v1966, %v1965
  %v1968 = vmul.f32 0.5, %v1967
  %v1969 = vsub.f32 1.5, %v1968
  %v1970 = vmul.f32 %v1965, %v1969
  %vm1971 = vweird.f32 %v1426
  %vm1972 = vweird.f32 %v1965
  %vm1973 = vmor %vm1971, %vm1972
  %v1974 = vsel %vm1973, %v1965, %v1970
  %v1975 = vrsqrt.pop %v1427
  %v1976 = vmul.f32 %v1975, %v1427
  %v1977 = vmul.f32 %v1976, %v1975
  %v1978 = vmul.f32 0.5, %v1977
  %v1979 = vsub.f32 1.5, %v1978
  %v1980 = vmul.f32 %v1975, %v1979
  %vm1981 = vweird.f32 %v1427
  %vm1982 = vweird.f32 %v1975
  %vm1983 = vmor %vm1981, %vm1982
  %v1984 = vsel %vm1983, %v1975, %v1980
  %v1985 = vrsqrt.pop %v1428
  %v1986 = vmul.f32 %v1985, %v1428
  %v1987 = vmul.f32 %v1986, %v1985
  %v1988 = vmul.f32 0.5, %v1987
  %v1989 = vsub.f32 1.5, %v1988
  %v1990 = vmul.f32 %v1985, %v1989
  %vm1991 = vweird.f32 %v1428
  %vm1992 = vweird.f32 %v1985
  %vm1993 = vmor %vm1991, %vm1992
  %v1994 = vsel %vm1993, %v1985, %v1990
  %v1995 = vrsqrt.pop %v1429
  %v1996 = vmul.f32 %v1995, %v1429
  %v1997 = vmul.f32 %v1996, %v1995
  %v1998 = vmul.f32 0.5, %v1997
  %v1999 = vsub.f32 1.5, %v1998
  %v2000 = vmul.f32 %v1995, %v1999
  %vm2001 = vweird.f32 %v1429
  %vm2002 = vweird.f32 %v1995
  %vm2003 = vmor %vm2001, %vm2002
  %v2004 = vsel %vm2003, %v1995, %v2000
  %v2005 = vrsqrt.pop %v1430
  %v2006 = vmul.f32 %v2005, %v1430
  %v2007 = vmul.f32 %v2006, %v2005
  %v2008 = vmul.f32 0.5, %v2007
  %v2009 = vsub.f32 1.5, %v2008
  %v2010 = vmul.f32 %v2005, %v2009
  %vm2011 = vweird.f32 %v1430
  %vm2012 = vweird.f32 %v2005
  %vm2013 = vmor %vm2011, %vm2012
  %v2014 = vsel %vm2013, %v2005, %v2010
  %v2015 = vrsqrt.pop %v1431
  %v2016 = vmul.f32 %v2015, %v1431
  %v2017 = vmul.f32 %v2016, %v2015
  %v2018 = vmul.f32 0.5, %v2017
  %v2019 = vsub.f32 1.5, %v2018
  %v2020 = vmul.f32 %v2015, %v2019
  %vm2021 = vweird.f32 %v1431
  %vm2022 = vweird.f32 %v2015
  %vm2023 = vmor %vm2021, %vm2022
  %v2024 = vsel %vm2023, %v2015, %v2020
  %v2025 = vrsqrt.pop %v1432
  %v2026 = vmul.f32 %v2025, %v1432
  %v2027 = vmul.f32 %v2026, %v2025
  %v2028 = vmul.f32 0.5, %v2027
  %v2029 = vsub.f32 1.5, %v2028
  %v2030 = vmul.f32 %v2025, %v2029
  %vm2031 = vweird.f32 %v1432
  %vm2032 = vweird.f32 %v2025
  %vm2033 = vmor %vm2031, %vm2032
  %v2034 = vsel %vm2033, %v2025, %v2030
  %v2035 = vrsqrt.pop %v1433
  %v2036 = vmul.f32 %v2035, %v1433
  %v2037 = vmul.f32 %v2036, %v2035
  %v2038 = vmul.f32 0.5, %v2037
  %v2039 = vsub.f32 1.5, %v2038
  %v2040 = vmul.f32 %v2035, %v2039
  %vm2041 = vweird.f32 %v1433
  %vm2042 = vweird.f32 %v2035
  %vm2043 = vmor %vm2041, %vm2042
  %v2044 = vsel %vm2043, %v2035, %v2040
  %v2045 = vrsqrt.pop %v1434
  %v2046 = vmul.f32 %v2045, %v1434
  %v2047 = vmul.f32 %v2046, %v2045
  %v2048 = vmul.f32 0.5, %v2047
  %v2049 = vsub.f32 1.5, %v2048
  %v2050 = vmul.f32 %v2045, %v2049
  %vm2051 = vweird.f32 %v1434
  %vm2052 = vweird.f32 %v2045
  %vm2053 = vmor %vm2051, %vm2052
  %v2054 = vsel %vm2053, %v2045, %v2050
  %v2055 = vrsqrt.pop %v1435
  %v2056 = vmul.f32 %v2055, %v1435
  %v2057 = vmul.f32 %v2056, %v2055
  %v2058 = vmul.f32 0.5, %v2057
  %v2059 = vsub.f32 1.5, %v2058
  %v2060 = vmul.f32 %v2055, %v2059
  %vm2061 = vweird.f32 %v1435
  %vm2062 = vweird.f32 %v2055
  %vm2063 = vmor %vm2061, %vm2062
  %v2064 = vsel %vm2063, %v2055, %v2060
  %v2065 = vrsqrt.pop %v1436
  %v2066 = vmul.f32 %v2065, %v1436
  %v2067 = vmul.f32 %v2066, %v2065
  %v2068 = vmul.f32 0.5, %v2067
  %v2069 = vsub.f32 1.5, %v2068
  %v2070 = vmul.f32 %v2065, %v2069
  %vm2071 = vweird.f32 %v1436
  %vm2072 = vweird.f32 %v2065
  %vm2073 = vmor %vm2071, %vm2072
  %v2074 = vsel %vm2073, %v2065, %v2070
  %v2075 = vrsqrt.pop %v1437
  %v2076 = vmul.f32 %v2075, %v1437
  %v2077 = vmul.f32 %v2076, %v2075
  %v2078 = vmul.f32 0.5, %v2077
  %v2079 = vsub.f32 1.5, %v2078
  %v2080 = vmul.f32 %v2075, %v2079
  %vm2081 = vweird.f32 %v1437
  %vm2082 = vweird.f32 %v2075
  %vm2083 = vmor %vm2081, %vm2082
  %v2084 = vsel %vm2083, %v2075, %v2080
  %v2085 = vrsqrt.pop %v1438
  %v2086 = vmul.f32 %v2085, %v1438
  %v2087 = vmul.f32 %v2086, %v2085
  %v2088 = vmul.f32 0.5, %v2087
  %v2089 = vsub.f32 1.5, %v2088
  %v2090 = vmul.f32 %v2085, %v2089
  %vm2091 = vweird.f32 %v1438
  %vm2092 = vweird.f32 %v2085
  %vm2093 = vmor %vm2091, %vm2092
  %v2094 = vsel %vm2093, %v2085, %v2090
  %v2095 = vrsqrt.pop %v1439
  %v2096 = vmul.f32 %v2095, %v1439
  %v2097 = vmul.f32 %v2096, %v2095
  %v2098 = vmul.f32 0.5, %v2097
  %v2099 = vsub.f32 1.5, %v2098
  %v2100 = vmul.f32 %v2095, %v2099
  %vm2101 = vweird.f32 %v1439
  %vm2102 = vweird.f32 %v2095
  %vm2103 = vmor %vm2101, %vm2102
  %v2104 = vsel %vm2103, %v2095, %v2100
  %v2105 = vrsqrt.pop %v1440
  %v2106 = vmul.f32 %v2105, %v1440
  %v2107 = vmul.f32 %v2106, %v2105
  %v2108 = vmul.f32 0.5, %v2107
  %v2109 = vsub.f32 1.5, %v2108
  %v2110 = vmul.f32 %v2105, %v2109
  %vm2111 = vweird.f32 %v1440
  %vm2112 = vweird.f32 %v2105
  %vm2113 = vmor %vm2111, %vm2112
  %v2114 = vsel %vm2113, %v2105, %v2110
  %v2115 = vrsqrt.pop %v1441
  %v2116 = vmul.f32 %v2115, %v1441
  %v2117 = vmul.f32 %v2116, %v2115
  %v2118 = vmul.f32 0.5, %v2117
  %v2119 = vsub.f32 1.5, %v2118
  %v2120 = vmul.f32 %v2115, %v2119
  %vm2121 = vweird.f32 %v1441
  %vm2122 = vweird.f32 %v2115
  %vm2123 = vmor %vm2121, %vm2122
  %v2124 = vsel %vm2123, %v2115, %v2120
  %v2125 = vrsqrt.pop %v1442
  %v2126 = vmul.f32 %v2125, %v1442
  %v2127 = vmul.f32 %v2126, %v2125
  %v2128 = vmul.f32 0.5, %v2127
  %v2129 = vsub.f32 1.5, %v2128
  %v2130 = vmul.f32 %v2125, %v2129
  %vm2131 = vweird.f32 %v1442
  %vm2132 = vweird.f32 %v2125
  %vm2133 = vmor %vm2131, %vm2132
  %v2134 = vsel %vm2133, %v2125, %v2130
  %v2135 = vrsqrt.pop %v1443
  %v2136 = vmul.f32 %v2135, %v1443
  %v2137 = vmul.f32 %v2136, %v2135
  %v2138 = vmul.f32 0.5, %v2137
  %v2139 = vsub.f32 1.5, %v2138
  %v2140 = vmul.f32 %v2135, %v2139
  %vm2141 = vweird.f32 %v1443
  %vm2142 = vweird.f32 %v2135
  %vm2143 = vmor %vm2141, %vm2142
  %v2144 = vsel %vm2143, %v2135, %v2140
  %v2145 = vrsqrt.pop %v1444
  %v2146 = vmul.f32 %v2145, %v1444
  %v2147 = vmul.f32 %v2146, %v2145
  %v2148 = vmul.f32 0.5, %v2147
  %v2149 = vsub.f32 1.5, %v2148
  %v2150 = vmul.f32 %v2145, %v2149
  %vm2151 = vweird.f32 %v1444
  %vm2152 = vweird.f32 %v2145
  %vm2153 = vmor %vm2151, %vm2152
  %v2154 = vsel %vm2153, %v2145, %v2150
  %v2155 = vrsqrt.pop %v1445
  %v2156 = vmul.f32 %v2155, %v1445
  %v2157 = vmul.f32 %v2156, %v2155
  %v2158 = vmul.f32 0.5, %v2157
  %v2159 = vsub.f32 1.5, %v2158
  %v2160 = vmul.f32 %v2155, %v2159
  %vm2161 = vweird.f32 %v1445
  %vm2162 = vweird.f32 %v2155
  %vm2163 = vmor %vm2161, %vm2162
  %v2164 = vsel %vm2163, %v2155, %v2160
  %v2165 = vrsqrt.pop %v1446
  %v2166 = vmul.f32 %v2165, %v1446
  %v2167 = vmul.f32 %v2166, %v2165
  %v2168 = vmul.f32 0.5, %v2167
  %v2169 = vsub.f32 1.5, %v2168
  %v2170 = vmul.f32 %v2165, %v2169
  %vm2171 = vweird.f32 %v1446
  %vm2172 = vweird.f32 %v2165
  %vm2173 = vmor %vm2171, %vm2172
  %v2174 = vsel %vm2173, %v2165, %v2170
  %v2175 = vrsqrt.pop %v1447
  %v2176 = vmul.f32 %v2175, %v1447
  %v2177 = vmul.f32 %v2176, %v2175
  %v2178 = vmul.f32 0.5, %v2177
  %v2179 = vsub.f32 1.5, %v2178
  %v2180 = vmul.f32 %v2175, %v2179
  %vm2181 = vweird.f32 %v1447
  %vm2182 = vweird.f32 %v2175
  %vm2183 = vmor %vm2181, %vm2182
  %v2184 = vsel %vm2183, %v2175, %v2180
  %v2185 = vrsqrt.pop %v1448
  %v2186 = vmul.f32 %v2185, %v1448
  %v2187 = vmul.f32 %v2186, %v2185
  %v2188 = vmul.f32 0.5, %v2187
  %v2189 = vsub.f32 1.5, %v2188
  %v2190 = vmul.f32 %v2185, %v2189
  %vm2191 = vweird.f32 %v1448
  %vm2192 = vweird.f32 %v2185
  %vm2193 = vmor %vm2191, %vm2192
  %v2194 = vsel %vm2193, %v2185, %v2190
  %v2195 = vrsqrt.pop %v1449
  %v2196 = vmul.f32 %v2195, %v1449
  %v2197 = vmul.f32 %v2196, %v2195
  %v2198 = vmul.f32 0.5, %v2197
  %v2199 = vsub.f32 1.5, %v2198
  %v2200 = vmul.f32 %v2195, %v2199
  %vm2201 = vweird.f32 %v1449
  %vm2202 = vweird.f32 %v2195
  %vm2203 = vmor %vm2201, %vm2202
  %v2204 = vsel %vm2203, %v2195, %v2200
  %v2205 = vrsqrt.pop %v1450
  %v2206 = vmul.f32 %v2205, %v1450
  %v2207 = vmul.f32 %v2206, %v2205
  %v2208 = vmul.f32 0.5, %v2207
  %v2209 = vsub.f32 1.5, %v2208
  %v2210 = vmul.f32 %v2205, %v2209
  %vm2211 = vweird.f32 %v1450
  %vm2212 = vweird.f32 %v2205
  %vm2213 = vmor %vm2211, %vm2212
  %v2214 = vsel %vm2213, %v2205, %v2210
  %v2215 = vrsqrt.pop %v1451
  %v2216 = vmul.f32 %v2215, %v1451
  %v2217 = vmul.f32 %v2216, %v2215
  %v2218 = vmul.f32 0.5, %v2217
  %v2219 = vsub.f32 1.5, %v2218
  %v2220 = vmul.f32 %v2215, %v2219
  %vm2221 = vweird.f32 %v1451
  %vm2222 = vweird.f32 %v2215
  %vm2223 = vmor %vm2221, %vm2222
  %v2224 = vsel %vm2223, %v2215, %v2220
  %v2225 = vrsqrt.pop %v1452
  %v2226 = vmul.f32 %v2225, %v1452
  %v2227 = vmul.f32 %v2226, %v2225
  %v2228 = vmul.f32 0.5, %v2227
  %v2229 = vsub.f32 1.5, %v2228
  %v2230 = vmul.f32 %v2225, %v2229
  %vm2231 = vweird.f32 %v1452
  %vm2232 = vweird.f32 %v2225
  %vm2233 = vmor %vm2231, %vm2232
  %v2234 = vsel %vm2233, %v2225, %v2230
  %v2235 = vrsqrt.pop %v1453
  %v2236 = vmul.f32 %v2235, %v1453
  %v2237 = vmul.f32 %v2236, %v2235
  %v2238 = vmul.f32 0.5, %v2237
  %v2239 = vsub.f32 1.5, %v2238
  %v2240 = vmul.f32 %v2235, %v2239
  %vm2241 = vweird.f32 %v1453
  %vm2242 = vweird.f32 %v2235
  %vm2243 = vmor %vm2241, %vm2242
  %v2244 = vsel %vm2243, %v2235, %v2240
  %v2245 = vrsqrt.pop %v1454
  %v2246 = vmul.f32 %v2245, %v1454
  %v2247 = vmul.f32 %v2246, %v2245
  %v2248 = vmul.f32 0.5, %v2247
  %v2249 = vsub.f32 1.5, %v2248
  %v2250 = vmul.f32 %v2245, %v2249
  %vm2251 = vweird.f32 %v1454
  %vm2252 = vweird.f32 %v2245
  %vm2253 = vmor %vm2251, %vm2252
  %v2254 = vsel %vm2253, %v2245, %v2250
  %v2255 = vld [vmem:[%s1] sm:$0xff]
  %v2256 = vld [vmem:[%s1 + $0x8] sm:$0xff]
  %v2257 = vld [vmem:[%s1 + $0x10] sm:$0xff]
  %v2258 = vld [vmem:[%s1 + $0x18] sm:$0xff]
  %v2259 = vld [vmem:[%s1 + $0x20] sm:$0xff]
  %v2260 = vld [vmem:[%s1 + $0x28] sm:$0xff]
  %v2261 = vld [vmem:[%s1 + $0x30] sm:$0xff]
  %v2262 = vld [vmem:[%s1 + $0x38] sm:$0xff]
  %v2263 = vld [vmem:[%s1 + $0x40] sm:$0xff]
  %v2264 = vld [vmem:[%s1 + $0x48] sm:$0xff]
  %v2265 = vld [vmem:[%s1 + $0x50] sm:$0xff]
  %v2266 = vld [vmem:[%s1 + $0x58] sm:$0xff]
  %v2267 = vld [vmem:[%s1 + $0x60] sm:$0xff]
  %v2268 = vld [vmem:[%s1 + $0x68] sm:$0xff]
  %v2269 = vld [vmem:[%s1 + $0x70] sm:$0xff]
  %v2270 = vld [vmem:[%s1 + $0x78] sm:$0xff]
  %v2271 = vld [vmem:[%s1 + $0x80] sm:$0xff]
  %v2272 = vld [vmem:[%s1 + $0x88] sm:$0xff]
  %v2273 = vld [vmem:[%s1 + $0x90] sm:$0xff]
  %v2274 = vld [vmem:[%s1 + $0x98] sm:$0xff]
  %v2275 = vld [vmem:[%s1 + $0xa0] sm:$0xff]
  %v2276 = vld [vmem:[%s1 + $0xa8] sm:$0xff]
  %v2277 = vld [vmem:[%s1 + $0xb0] sm:$0xff]
  %v2278 = vld [vmem:[%s1 + $0xb8] sm:$0xff]
  %v2279 = vld [vmem:[%s1 + $0xc0] sm:$0xff]
  %v2280 = vld [vmem:[%s1 + $0xc8] sm:$0xff]
  %v2281 = vld [vmem:[%s1 + $0xd0] sm:$0xff]
  %v2282 = vld [vmem:[%s1 + $0xd8] sm:$0xff]
  %v2283 = vld [vmem:[%s1 + $0xe0] sm:$0xff]
  %v2284 = vld [vmem:[%s1 + $0xe8] sm:$0xff]
  %v2285 = vld [vmem:[%s1 + $0xf0] sm:$0xff]
  %v2286 = vld [vmem:[%s1 + $0xf8] sm:$0xff]
  %v2287 = vld [vmem:[%s1 + $0x100] sm:$0xff]
  %v2288 = vld [vmem:[%s1 + $0x108] sm:$0xff]
  %v2289 = vld [vmem:[%s1 + $0x110] sm:$0xff]
  %v2290 = vld [vmem:[%s1 + $0x118] sm:$0xff]
  %v2291 = vld [vmem:[%s1 + $0x120] sm:$0xff]
  %v2292 = vld [vmem:[%s1 + $0x128] sm:$0xff]
  %v2293 = vld [vmem:[%s1 + $0x130] sm:$0xff]
  %v2294 = vld [vmem:[%s1 + $0x138] sm:$0xff]
  %v2295 = vld [vmem:[%s1 + $0x140] sm:$0xff]
  %v2296 = vld [vmem:[%s1 + $0x148] sm:$0xff]
  %v2297 = vld [vmem:[%s1 + $0x150] sm:$0xff]
  %v2298 = vld [vmem:[%s1 + $0x158] sm:$0xff]
  %v2299 = vld [vmem:[%s1 + $0x160] sm:$0xff]
  %v2300 = vld [vmem:[%s1 + $0x168] sm:$0xff]
  %v2301 = vld [vmem:[%s1 + $0x170] sm:$0xff]
  %v2302 = vld [vmem:[%s1 + $0x178] sm:$0xff]
  %v2303 = vld [vmem:[%s1 + $0x180] sm:$0xff]
  %v2304 = vld [vmem:[%s1 + $0x188] sm:$0xff]
  %v2305 = vld [vmem:[%s1 + $0x190] sm:$0xff]
  %v2306 = vld [vmem:[%s1 + $0x198] sm:$0xff]
  %v2307 = vld [vmem:[%s1 + $0x1a0] sm:$0xff]
  %v2308 = vld [vmem:[%s1 + $0x1a8] sm:$0xff]
  %v2309 = vld [vmem:[%s1 + $0x1b0] sm:$0xff]
  %v2310 = vld [vmem:[%s1 + $0x1b8] sm:$0xff]
  %v2311 = vld [vmem:[%s1 + $0x1c0] sm:$0xff]
  %v2312 = vld [vmem:[%s1 + $0x1c8] sm:$0xff]
  %v2313 = vld [vmem:[%s1 + $0x1d0] sm:$0xff]
  %v2314 = vld [vmem:[%s1 + $0x1d8] sm:$0xff]
  %v2315 = vld [vmem:[%s1 + $0x1e0] sm:$0xff]
  %v2316 = vld [vmem:[%s1 + $0x1e8] sm:$0xff]
  %v2317 = vld [vmem:[%s1 + $0x1f0] sm:$0xff]
  %v2318 = vld [vmem:[%s1 + $0x1f8] sm:$0xff]
  %v2319 = vld [vmem:[%s1 + $0x200] sm:$0xff]
  %v2320 = vld [vmem:[%s1 + $0x208] sm:$0xff]
  %v2321 = vld [vmem:[%s1 + $0x210] sm:$0xff]
  %v2322 = vld [vmem:[%s1 + $0x218] sm:$0xff]
  %v2323 = vld [vmem:[%s1 + $0x220] sm:$0xff]
  %v2324 = vld [vmem:[%s1 + $0x228] sm:$0xff]
  %v2325 = vld [vmem:[%s1 + $0x230] sm:$0xff]
  %v2326 = vld [vmem:[%s1 + $0x238] sm:$0xff]
  %v2327 = vld [vmem:[%s1 + $0x240] sm:$0xff]
  %v2328 = vld [vmem:[%s1 + $0x248] sm:$0xff]
  %v2329 = vld [vmem:[%s1 + $0x250] sm:$0xff]
  %v2330 = vld [vmem:[%s1 + $0x258] sm:$0xff]
  %v2331 = vld [vmem:[%s1 + $0x260] sm:$0xff]
  %v2332 = vld [vmem:[%s1 + $0x268] sm:$0xff]
  %v2333 = vld [vmem:[%s1 + $0x270] sm:$0xff]
  %v2334 = vld [vmem:[%s1 + $0x278] sm:$0xff]
  %v2335 = vmul.f32 %v2255, %v1464
  %v2336 = vmul.f32 %v2256, %v1474
  %v2337 = vmul.f32 %v2257, %v1484
  %v2338 = vmul.f32 %v2258, %v1494
  %v2339 = vmul.f32 %v2259, %v1504
  %v2340 = vmul.f32 %v2260, %v1514
  %v2341 = vmul.f32 %v2261, %v1524
  %v2342 = vmul.f32 %v2262, %v1534
  %v2343 = vmul.f32 %v2263, %v1544
  %v2344 = vmul.f32 %v2264, %v1554
  %v2345 = vmul.f32 %v2265, %v1564
  %v2346 = vmul.f32 %v2266, %v1574
  %v2347 = vmul.f32 %v2267, %v1584
  %v2348 = vmul.f32 %v2268, %v1594
  %v2349 = vmul.f32 %v2269, %v1604
  %v2350 = vmul.f32 %v2270, %v1614
  %v2351 = vmul.f32 %v2271, %v1624
  %v2352 = vmul.f32 %v2272, %v1634
  %v2353 = vmul.f32 %v2273, %v1644
  %v2354 = vmul.f32 %v2274, %v1654
  %v2355 = vmul.f32 %v2275, %v1664
  %v2356 = vmul.f32 %v2276, %v1674
  %v2357 = vmul.f32 %v2277, %v1684
  %v2358 = vmul.f32 %v2278, %v1694
  %v2359 = vmul.f32 %v2279, %v1704
  %v2360 = vmul.f32 %v2280, %v1714
  %v2361 = vmul.f32 %v2281, %v1724
  %v2362 = vmul.f32 %v2282, %v1734
  %v2363 = vmul.f32 %v2283, %v1744
  %v2364 = vmul.f32 %v2284, %v1754
  %v2365 = vmul.f32 %v2285, %v1764
  %v2366 = vmul.f32 %v2286, %v1774
  %v2367 = vmul.f32 %v2287, %v1784
  %v2368 = vmul.f32 %v2288, %v1794
  %v2369 = vmul.f32 %v2289, %v1804
  %v2370 = vmul.f32 %v2290, %v1814
  %v2371 = vmul.f32 %v2291, %v1824
  %v2372 = vmul.f32 %v2292, %v1834
  %v2373 = vmul.f32 %v2293, %v1844
  %v2374 = vmul.f32 %v2294, %v1854
  %v2375 = vmul.f32 %v2295, %v1864
  %v2376 = vmul.f32 %v2296, %v1874
  %v2377 = vmul.f32 %v2297, %v1884
  %v2378 = vmul.f32 %v2298, %v1894
  %v2379 = vmul.f32 %v2299, %v1904
  %v2380 = vmul.f32 %v2300, %v1914
  %v2381 = vmul.f32 %v2301, %v1924
  %v2382 = vmul.f32 %v2302, %v1934
  %v2383 = vmul.f32 %v2303, %v1944
  %v2384 = vmul.f32 %v2304, %v1954
  %v2385 = vmul.f32 %v2305, %v1964
  %v2386 = vmul.f32 %v2306, %v1974
  %v2387 = vmul.f32 %v2307, %v1984
  %v2388 = vmul.f32 %v2308, %v1994
  %v2389 = vmul.f32 %v2309, %v2004
  %v2390 = vmul.f32 %v2310, %v2014
  %v2391 = vmul.f32 %v2311, %v2024
  %v2392 = vmul.f32 %v2312, %v2034
  %v2393 = vmul.f32 %v2313, %v2044
  %v2394 = vmul.f32 %v2314, %v2054
  %v2395 = vmul.f32 %v2315, %v2064
  %v2396 = vmul.f32 %v2316, %v2074
  %v2397 = vmul.f32 %v2317, %v2084
  %v2398 = vmul.f32 %v2318, %v2094
  %v2399 = vmul.f32 %v2319, %v2104
  %v2400 = vmul.f32 %v2320, %v2114
  %v2401 = vmul.f32 %v2321, %v2124
  %v2402 = vmul.f32 %v2322, %v2134
  %v2403 = vmul.f32 %v2323, %v2144
  %v2404 = vmul.f32 %v2324, %v2154
  %v2405 = vmul.f32 %v2325, %v2164
  %v2406 = vmul.f32 %v2326, %v2174
  %v2407 = vmul.f32 %v2327, %v2184
  %v2408 = vmul.f32 %v2328, %v2194
  %v2409 = vmul.f32 %v2329, %v2204
  %v2410 = vmul.f32 %v2330, %v2214
  %v2411 = vmul.f32 %v2331, %v2224
  %v2412 = vmul.f32 %v2332, %v2234
  %v2413 = vmul.f32 %v2333, %v2244
  %v2414 = vmul.f32 %v2334, %v2254
  %v2415 = vld [vmem:[%s2] sm:$0xff]
  %v2416 = vld [vmem:[%s2 + $0x8] sm:$0xff]
  %v2417 = vld [vmem:[%s2 + $0x10] sm:$0xff]
  %v2418 = vld [vmem:[%s2 + $0x18] sm:$0xff]
  %v2419 = vld [vmem:[%s2 + $0x20] sm:$0xff]
  %v2420 = vld [vmem:[%s2 + $0x28] sm:$0xff]
  %v2421 = vld [vmem:[%s2 + $0x30] sm:$0xff]
  %v2422 = vld [vmem:[%s2 + $0x38] sm:$0xff]
  %v2423 = vld [vmem:[%s2 + $0x40] sm:$0xff]
  %v2424 = vld [vmem:[%s2 + $0x48] sm:$0xff]
  %v2425 = vld [vmem:[%s2 + $0x50] sm:$0xff]
  %v2426 = vld [vmem:[%s2 + $0x58] sm:$0xff]
  %v2427 = vld [vmem:[%s2 + $0x60] sm:$0xff]
  %v2428 = vld [vmem:[%s2 + $0x68] sm:$0xff]
  %v2429 = vld [vmem:[%s2 + $0x70] sm:$0xff]
  %v2430 = vld [vmem:[%s2 + $0x78] sm:$0xff]
  %v2431 = vld [vmem:[%s2 + $0x80] sm:$0xff]
  %v2432 = vld [vmem:[%s2 + $0x88] sm:$0xff]
  %v2433 = vld [vmem:[%s2 + $0x90] sm:$0xff]
  %v2434 = vld [vmem:[%s2 + $0x98] sm:$0xff]
  %v2435 = vld [vmem:[%s2 + $0xa0] sm:$0xff]
  %v2436 = vld [vmem:[%s2 + $0xa8] sm:$0xff]
  %v2437 = vld [vmem:[%s2 + $0xb0] sm:$0xff]
  %v2438 = vld [vmem:[%s2 + $0xb8] sm:$0xff]
  %v2439 = vld [vmem:[%s2 + $0xc0] sm:$0xff]
  %v2440 = vld [vmem:[%s2 + $0xc8] sm:$0xff]
  %v2441 = vld [vmem:[%s2 + $0xd0] sm:$0xff]
  %v2442 = vld [vmem:[%s2 + $0xd8] sm:$0xff]
  %v2443 = vld [vmem:[%s2 + $0xe0] sm:$0xff]
  %v2444 = vld [vmem:[%s2 + $0xe8] sm:$0xff]
  %v2445 = vld [vmem:[%s2 + $0xf0] sm:$0xff]
  %v2446 = vld [vmem:[%s2 + $0xf8] sm:$0xff]
  %v2447 = vld [vmem:[%s2 + $0x100] sm:$0xff]
  %v2448 = vld [vmem:[%s2 + $0x108] sm:$0xff]
  %v2449 = vld [vmem:[%s2 + $0x110] sm:$0xff]
  %v2450 = vld [vmem:[%s2 + $0x118] sm:$0xff]
  %v2451 = vld [vmem:[%s2 + $0x120] sm:$0xff]
  %v2452 = vld [vmem:[%s2 + $0x128] sm:$0xff]
  %v2453 = vld [vmem:[%s2 + $0x130] sm:$0xff]
  %v2454 = vld [vmem:[%s2 + $0x138] sm:$0xff]
  %v2455 = vld [vmem:[%s2 + $0x140] sm:$0xff]
  %v2456 = vld [vmem:[%s2 + $0x148] sm:$0xff]
  %v2457 = vld [vmem:[%s2 + $0x150] sm:$0xff]
  %v2458 = vld [vmem:[%s2 + $0x158] sm:$0xff]
  %v2459 = vld [vmem:[%s2 + $0x160] sm:$0xff]
  %v2460 = vld [vmem:[%s2 + $0x168] sm:$0xff]
  %v2461 = vld [vmem:[%s2 + $0x170] sm:$0xff]
  %v2462 = vld [vmem:[%s2 + $0x178] sm:$0xff]
  %v2463 = vld [vmem:[%s2 + $0x180] sm:$0xff]
  %v2464 = vld [vmem:[%s2 + $0x188] sm:$0xff]
  %v2465 = vld [vmem:[%s2 + $0x190] sm:$0xff]
  %v2466 = vld [vmem:[%s2 + $0x198] sm:$0xff]
  %v2467 = vld [vmem:[%s2 + $0x1a0] sm:$0xff]
  %v2468 = vld [vmem:[%s2 + $0x1a8] sm:$0xff]
  %v2469 = vld [vmem:[%s2 + $0x1b0] sm:$0xff]
  %v2470 = vld [vmem:[%s2 + $0x1b8] sm:$0xff]
  %v2471 = vld [vmem:[%s2 + $0x1c0] sm:$0xff]
  %v2472 = vld [vmem:[%s2 + $0x1c8] sm:$0xff]
  %v2473 = vld [vmem:[%s2 + $0x1d0] sm:$0xff]
  %v2474 = vld [vmem:[%s2 + $0x1d8] sm:$0xff]
  %v2475 = vld [vmem:[%s2 + $0x1e0] sm:$0xff]
  %v2476 = vld [vmem:[%s2 + $0x1e8] sm:$0xff]
  %v2477 = vld [vmem:[%s2 + $0x1f0] sm:$0xff]
  %v2478 = vld [vmem:[%s2 + $0x1f8] sm:$0xff]
  %v2479 = vld [vmem:[%s2 + $0x200] sm:$0xff]
  %v2480 = vld [vmem:[%s2 + $0x208] sm:$0xff]
  %v2481 = vld [vmem:[%s2 + $0x210] sm:$0xff]
  %v2482 = vld [vmem:[%s2 + $0x218] sm:$0xff]
  %v2483 = vld [vmem:[%s2 + $0x220] sm:$0xff]
  %v2484 = vld [vmem:[%s2 + $0x228] sm:$0xff]
  %v2485 = vld [vmem:[%s2 + $0x230] sm:$0xff]
  %v2486 = vld [vmem:[%s2 + $0x238] sm:$0xff]
  %v2487 = vld [vmem:[%s2 + $0x240] sm:$0xff]
  %v2488 = vld [vmem:[%s2 + $0x248] sm:$0xff]
  %v2489 = vld [vmem:[%s2 + $0x250] sm:$0xff]
  %v2490 = vld [vmem:[%s2 + $0x258] sm:$0xff]
  %v2491 = vld [vmem:[%s2 + $0x260] sm:$0xff]
  %v2492 = vld [vmem:[%s2 + $0x268] sm:$0xff]
  %v2493 = vld [vmem:[%s2 + $0x270] sm:$0xff]
  %v2494 = vld [vmem:[%s2 + $0x278] sm:$0xff]
  %v2495 = vmul.f32 %v975, %v2335
  %v2496 = vmul.f32 %v976, %v2336
  %v2497 = vmul.f32 %v977, %v2337
  %v2498 = vmul.f32 %v978, %v2338
  %v2499 = vmul.f32 %v979, %v2339
  %v2500 = vmul.f32 %v980, %v2340
  %v2501 = vmul.f32 %v981, %v2341
  %v2502 = vmul.f32 %v982, %v2342
  %v2503 = vmul.f32 %v983, %v2343
  %v2504 = vmul.f32 %v984, %v2344
  %v2505 = vmul.f32 %v985, %v2345
  %v2506 = vmul.f32 %v986, %v2346
  %v2507 = vmul.f32 %v987, %v2347
  %v2508 = vmul.f32 %v988, %v2348
  %v2509 = vmul.f32 %v989, %v2349
  %v2510 = vmul.f32 %v990, %v2350
  %v2511 = vmul.f32 %v991, %v2351
  %v2512 = vmul.f32 %v992, %v2352
  %v2513 = vmul.f32 %v993, %v2353
  %v2514 = vmul.f32 %v994, %v2354
  %v2515 = vmul.f32 %v995, %v2355
  %v2516 = vmul.f32 %v996, %v2356
  %v2517 = vmul.f32 %v997, %v2357
  %v2518 = vmul.f32 %v998, %v2358
  %v2519 = vmul.f32 %v999, %v2359
  %v2520 = vmul.f32 %v1000, %v2360
  %v2521 = vmul.f32 %v1001, %v2361
  %v2522 = vmul.f32 %v1002, %v2362
  %v2523 = vmul.f32 %v1003, %v2363
  %v2524 = vmul.f32 %v1004, %v2364
  %v2525 = vmul.f32 %v1005, %v2365
  %v2526 = vmul.f32 %v1006, %v2366
  %v2527 = vmul.f32 %v1007, %v2367
  %v2528 = vmul.f32 %v1008, %v2368
  %v2529 = vmul.f32 %v1009, %v2369
  %v2530 = vmul.f32 %v1010, %v2370
  %v2531 = vmul.f32 %v1011, %v2371
  %v2532 = vmul.f32 %v1012, %v2372
  %v2533 = vmul.f32 %v1013, %v2373
  %v2534 = vmul.f32 %v1014, %v2374
  %v2535 = vmul.f32 %v1015, %v2375
  %v2536 = vmul.f32 %v1016, %v2376
  %v2537 = vmul.f32 %v1017, %v2377
  %v2538 = vmul.f32 %v1018, %v2378
  %v2539 = vmul.f32 %v1019, %v2379
  %v2540 = vmul.f32 %v1020, %v2380
  %v2541 = vmul.f32 %v1021, %v2381
  %v2542 = vmul.f32 %v1022, %v2382
  %v2543 = vmul.f32 %v1023, %v2383
  %v2544 = vmul.f32 %v1024, %v2384
  %v2545 = vmul.f32 %v1025, %v2385
  %v2546 = vmul.f32 %v1026, %v2386
  %v2547 = vmul.f32 %v1027, %v2387
  %v2548 = vmul.f32 %v1028, %v2388
  %v2549 = vmul.f32 %v1029, %v2389
  %v2550 = vmul.f32 %v1030, %v2390
  %v2551 = vmul.f32 %v1031, %v2391
  %v2552 = vmul.f32 %v1032, %v2392
  %v2553 = vmul.f32 %v1033, %v2393
  %v2554 = vmul.f32 %v1034, %v2394
  %v2555 = vmul.f32 %v1035, %v2395
  %v2556 = vmul.f32 %v1036, %v2396
  %v2557 = vmul.f32 %v1037, %v2397
  %v2558 = vmul.f32 %v1038, %v2398
  %v2559 = vmul.f32 %v1039, %v2399
  %v2560 = vmul.f32 %v1040, %v2400
  %v2561 = vmul.f32 %v1041, %v2401
  %v2562 = vmul.f32 %v1042, %v2402
  %v2563 = vmul.f32 %v1043, %v2403
  %v2564 = vmul.f32 %v1044, %v2404
  %v2565 = vmul.f32 %v1045, %v2405
  %v2566 = vmul.f32 %v1046, %v2406
  %v2567 = vmul.f32 %v1047, %v2407
  %v2568 = vmul.f32 %v1048, %v2408
  %v2569 = vmul.f32 %v1049, %v2409
  %v2570 = vmul.f32 %v1050, %v2410
  %v2571 = vmul.f32 %v1051, %v2411
  %v2572 = vmul.f32 %v1052, %v2412
  %v2573 = vmul.f32 %v1053, %v2413
  %v2574 = vmul.f32 %v1054, %v2414
  %v2575 = vsub.f32 %v2415, %v2495
  %v2576 = vsub.f32 %v2416, %v2496
  %v2577 = vsub.f32 %v2417, %v2497
  %v2578 = vsub.f32 %v2418, %v2498
  %v2579 = vsub.f32 %v2419, %v2499
  %v2580 = vsub.f32 %v2420, %v2500
  %v2581 = vsub.f32 %v2421, %v2501
  %v2582 = vsub.f32 %v2422, %v2502
  %v2583 = vsub.f32 %v2423, %v2503
  %v2584 = vsub.f32 %v2424, %v2504
  %v2585 = vsub.f32 %v2425, %v2505
  %v2586 = vsub.f32 %v2426, %v2506
  %v2587 = vsub.f32 %v2427, %v2507
  %v2588 = vsub.f32 %v2428, %v2508
  %v2589 = vsub.f32 %v2429, %v2509
  %v2590 = vsub.f32 %v2430, %v2510
  %v2591 = vsub.f32 %v2431, %v2511
  %v2592 = vsub.f32 %v2432, %v2512
  %v2593 = vsub.f32 %v2433, %v2513
  %v2594 = vsub.f32 %v2434, %v2514
  %v2595 = vsub.f32 %v2435, %v2515
  %v2596 = vsub.f32 %v2436, %v2516
  %v2597 = vsub.f32 %v2437, %v2517
  %v2598 = vsub.f32 %v2438, %v2518
  %v2599 = vsub.f32 %v2439, %v2519
  %v2600 = vsub.f32 %v2440, %v2520
  %v2601 = vsub.f32 %v2441, %v2521
  %v2602 = vsub.f32 %v2442, %v2522
  %v2603 = vsub.f32 %v2443, %v2523
  %v2604 = vsub.f32 %v2444, %v2524
  %v2605 = vsub.f32 %v2445, %v2525
  %v2606 = vsub.f32 %v2446, %v2526
  %v2607 = vsub.f32 %v2447, %v2527
  %v2608 = vsub.f32 %v2448, %v2528
  %v2609 = vsub.f32 %v2449, %v2529
  %v2610 = vsub.f32 %v2450, %v2530
  %v2611 = vsub.f32 %v2451, %v2531
  %v2612 = vsub.f32 %v2452, %v2532
  %v2613 = vsub.f32 %v2453, %v2533
  %v2614 = vsub.f32 %v2454, %v2534
  %v2615 = vsub.f32 %v2455, %v2535
  %v2616 = vsub.f32 %v2456, %v2536
  %v2617 = vsub.f32 %v2457, %v2537
  %v2618 = vsub.f32 %v2458, %v2538
  %v2619 = vsub.f32 %v2459, %v2539
  %v2620 = vsub.f32 %v2460, %v2540
  %v2621 = vsub.f32 %v2461, %v2541
  %v2622 = vsub.f32 %v2462, %v2542
  %v2623 = vsub.f32 %v2463, %v2543
  %v2624 = vsub.f32 %v2464, %v2544
  %v2625 = vsub.f32 %v2465, %v2545
  %v2626 = vsub.f32 %v2466, %v2546
  %v2627 = vsub.f32 %v2467, %v2547
  %v2628 = vsub.f32 %v2468, %v2548
  %v2629 = vsub.f32 %v2469, %v2549
  %v2630 = vsub.f32 %v2470, %v2550
  %v2631 = vsub.f32 %v2471, %v2551
  %v2632 = vsub.f32 %v2472, %v2552
  %v2633 = vsub.f32 %v2473, %v2553
  %v2634 = vsub.f32 %v2474, %v2554
  %v2635 = vsub.f32 %v2475, %v2555
  %v2636 = vsub.f32 %v2476, %v2556
  %v2637 = vsub.f32 %v2477, %v2557
  %v2638 = vsub.f32 %v2478, %v2558
  %v2639 = vsub.f32 %v2479, %v2559
  %v2640 = vsub.f32 %v2480, %v2560
  %v2641 = vsub.f32 %v2481, %v2561
  %v2642 = vsub.f32 %v2482, %v2562
  %v2643 = vsub.f32 %v2483, %v2563
  %v2644 = vsub.f32 %v2484, %v2564
  %v2645 = vsub.f32 %v2485, %v2565
  %v2646 = vsub.f32 %v2486, %v2566
  %v2647 = vsub.f32 %v2487, %v2567
  %v2648 = vsub.f32 %v2488, %v2568
  %v2649 = vsub.f32 %v2489, %v2569
  %v2650 = vsub.f32 %v2490, %v2570
  %v2651 = vsub.f32 %v2491, %v2571
  %v2652 = vsub.f32 %v2492, %v2572
  %v2653 = vsub.f32 %v2493, %v2573
  %v2654 = vsub.f32 %v2494, %v2574
  %2656 = vset.pattern.permute.xlu0 0
  %2657 = vperm.xlu0 %2656, %v2335
  %v2658 = vpop.permute.xlu0 %2657
  %2661 = vset.pattern.permute.xlu0 0
  %2662 = vperm.xlu0 %2661, %v2336
  %v2663 = vpop.permute.xlu0 %2662
  %2666 = vset.pattern.permute.xlu0 0
  %2667 = vperm.xlu0 %2666, %v2337
  %v2668 = vpop.permute.xlu0 %2667
  %2671 = vset.pattern.permute.xlu0 0
  %2672 = vperm.xlu0 %2671, %v2338
  %v2673 = vpop.permute.xlu0 %2672
  %2676 = vset.pattern.permute.xlu0 0
  %2677 = vperm.xlu0 %2676, %v2339
  %v2678 = vpop.permute.xlu0 %2677
  %2681 = vset.pattern.permute.xlu0 0
  %2682 = vperm.xlu0 %2681, %v2340
  %v2683 = vpop.permute.xlu0 %2682
  %2686 = vset.pattern.permute.xlu0 0
  %2687 = vperm.xlu0 %2686, %v2341
  %v2688 = vpop.permute.xlu0 %2687
  %2691 = vset.pattern.permute.xlu0 0
  %2692 = vperm.xlu0 %2691, %v2342
  %v2693 = vpop.permute.xlu0 %2692
  %2696 = vset.pattern.permute.xlu0 0
  %2697 = vperm.xlu0 %2696, %v2343
  %v2698 = vpop.permute.xlu0 %2697
  %2701 = vset.pattern.permute.xlu0 0
  %2702 = vperm.xlu0 %2701, %v2344
  %v2703 = vpop.permute.xlu0 %2702
  %2706 = vset.pattern.permute.xlu0 0
  %2707 = vperm.xlu0 %2706, %v2345
  %v2708 = vpop.permute.xlu0 %2707
  %2711 = vset.pattern.permute.xlu0 0
  %2712 = vperm.xlu0 %2711, %v2346
  %v2713 = vpop.permute.xlu0 %2712
  %2716 = vset.pattern.permute.xlu0 0
  %2717 = vperm.xlu0 %2716, %v2347
  %v2718 = vpop.permute.xlu0 %2717
  %2721 = vset.pattern.permute.xlu0 0
  %2722 = vperm.xlu0 %2721, %v2348
  %v2723 = vpop.permute.xlu0 %2722
  %2726 = vset.pattern.permute.xlu0 0
  %2727 = vperm.xlu0 %2726, %v2349
  %v2728 = vpop.permute.xlu0 %2727
  %2731 = vset.pattern.permute.xlu0 0
  %2732 = vperm.xlu0 %2731, %v2350
  %v2733 = vpop.permute.xlu0 %2732
  %2736 = vset.pattern.permute.xlu0 0
  %2737 = vperm.xlu0 %2736, %v2351
  %v2738 = vpop.permute.xlu0 %2737
  %2741 = vset.pattern.permute.xlu0 0
  %2742 = vperm.xlu0 %2741, %v2352
  %v2743 = vpop.permute.xlu0 %2742
  %2746 = vset.pattern.permute.xlu0 0
  %2747 = vperm.xlu0 %2746, %v2353
  %v2748 = vpop.permute.xlu0 %2747
  %2751 = vset.pattern.permute.xlu0 0
  %2752 = vperm.xlu0 %2751, %v2354
  %v2753 = vpop.permute.xlu0 %2752
  %2756 = vset.pattern.permute.xlu0 0
  %2757 = vperm.xlu0 %2756, %v2355
  %v2758 = vpop.permute.xlu0 %2757
  %2761 = vset.pattern.permute.xlu0 0
  %2762 = vperm.xlu0 %2761, %v2356
  %v2763 = vpop.permute.xlu0 %2762
  %2766 = vset.pattern.permute.xlu0 0
  %2767 = vperm.xlu0 %2766, %v2357
  %v2768 = vpop.permute.xlu0 %2767
  %2771 = vset.pattern.permute.xlu0 0
  %2772 = vperm.xlu0 %2771, %v2358
  %v2773 = vpop.permute.xlu0 %2772
  %2776 = vset.pattern.permute.xlu0 0
  %2777 = vperm.xlu0 %2776, %v2359
  %v2778 = vpop.permute.xlu0 %2777
  %2781 = vset.pattern.permute.xlu0 0
  %2782 = vperm.xlu0 %2781, %v2360
  %v2783 = vpop.permute.xlu0 %2782
  %2786 = vset.pattern.permute.xlu0 0
  %2787 = vperm.xlu0 %2786, %v2361
  %v2788 = vpop.permute.xlu0 %2787
  %2791 = vset.pattern.permute.xlu0 0
  %2792 = vperm.xlu0 %2791, %v2362
  %v2793 = vpop.permute.xlu0 %2792
  %2796 = vset.pattern.permute.xlu0 0
  %2797 = vperm.xlu0 %2796, %v2363
  %v2798 = vpop.permute.xlu0 %2797
  %2801 = vset.pattern.permute.xlu0 0
  %2802 = vperm.xlu0 %2801, %v2364
  %v2803 = vpop.permute.xlu0 %2802
  %2806 = vset.pattern.permute.xlu0 0
  %2807 = vperm.xlu0 %2806, %v2365
  %v2808 = vpop.permute.xlu0 %2807
  %2811 = vset.pattern.permute.xlu0 0
  %2812 = vperm.xlu0 %2811, %v2366
  %v2813 = vpop.permute.xlu0 %2812
  %2816 = vset.pattern.permute.xlu0 0
  %2817 = vperm.xlu0 %2816, %v2367
  %v2818 = vpop.permute.xlu0 %2817
  %2821 = vset.pattern.permute.xlu0 0
  %2822 = vperm.xlu0 %2821, %v2368
  %v2823 = vpop.permute.xlu0 %2822
  %2826 = vset.pattern.permute.xlu0 0
  %2827 = vperm.xlu0 %2826, %v2369
  %v2828 = vpop.permute.xlu0 %2827
  %2831 = vset.pattern.permute.xlu0 0
  %2832 = vperm.xlu0 %2831, %v2370
  %v2833 = vpop.permute.xlu0 %2832
  %2836 = vset.pattern.permute.xlu0 0
  %2837 = vperm.xlu0 %2836, %v2371
  %v2838 = vpop.permute.xlu0 %2837
  %2841 = vset.pattern.permute.xlu0 0
  %2842 = vperm.xlu0 %2841, %v2372
  %v2843 = vpop.permute.xlu0 %2842
  %2846 = vset.pattern.permute.xlu0 0
  %2847 = vperm.xlu0 %2846, %v2373
  %v2848 = vpop.permute.xlu0 %2847
  %2851 = vset.pattern.permute.xlu0 0
  %2852 = vperm.xlu0 %2851, %v2374
  %v2853 = vpop.permute.xlu0 %2852
  %2856 = vset.pattern.permute.xlu0 0
  %2857 = vperm.xlu0 %2856, %v2375
  %v2858 = vpop.permute.xlu0 %2857
  %2861 = vset.pattern.permute.xlu0 0
  %2862 = vperm.xlu0 %2861, %v2376
  %v2863 = vpop.permute.xlu0 %2862
  %2866 = vset.pattern.permute.xlu0 0
  %2867 = vperm.xlu0 %2866, %v2377
  %v2868 = vpop.permute.xlu0 %2867
  %2871 = vset.pattern.permute.xlu0 0
  %2872 = vperm.xlu0 %2871, %v2378
  %v2873 = vpop.permute.xlu0 %2872
  %2876 = vset.pattern.permute.xlu0 0
  %2877 = vperm.xlu0 %2876, %v2379
  %v2878 = vpop.permute.xlu0 %2877
  %2881 = vset.pattern.permute.xlu0 0
  %2882 = vperm.xlu0 %2881, %v2380
  %v2883 = vpop.permute.xlu0 %2882
  %2886 = vset.pattern.permute.xlu0 0
  %2887 = vperm.xlu0 %2886, %v2381
  %v2888 = vpop.permute.xlu0 %2887
  %2891 = vset.pattern.permute.xlu0 0
  %2892 = vperm.xlu0 %2891, %v2382
  %v2893 = vpop.permute.xlu0 %2892
  %2896 = vset.pattern.permute.xlu0 0
  %2897 = vperm.xlu0 %2896, %v2383
  %v2898 = vpop.permute.xlu0 %2897
  %2901 = vset.pattern.permute.xlu0 0
  %2902 = vperm.xlu0 %2901, %v2384
  %v2903 = vpop.permute.xlu0 %2902
  %2906 = vset.pattern.permute.xlu0 0
  %2907 = vperm.xlu0 %2906, %v2385
  %v2908 = vpop.permute.xlu0 %2907
  %2911 = vset.pattern.permute.xlu0 0
  %2912 = vperm.xlu0 %2911, %v2386
  %v2913 = vpop.permute.xlu0 %2912
  %2916 = vset.pattern.permute.xlu0 0
  %2917 = vperm.xlu0 %2916, %v2387
  %v2918 = vpop.permute.xlu0 %2917
  %2921 = vset.pattern.permute.xlu0 0
  %2922 = vperm.xlu0 %2921, %v2388
  %v2923 = vpop.permute.xlu0 %2922
  %2926 = vset.pattern.permute.xlu0 0
  %2927 = vperm.xlu0 %2926, %v2389
  %v2928 = vpop.permute.xlu0 %2927
  %2931 = vset.pattern.permute.xlu0 0
  %2932 = vperm.xlu0 %2931, %v2390
  %v2933 = vpop.permute.xlu0 %2932
  %2936 = vset.pattern.permute.xlu0 0
  %2937 = vperm.xlu0 %2936, %v2391
  %v2938 = vpop.permute.xlu0 %2937
  %2941 = vset.pattern.permute.xlu0 0
  %2942 = vperm.xlu0 %2941, %v2392
  %v2943 = vpop.permute.xlu0 %2942
  %2946 = vset.pattern.permute.xlu0 0
  %2947 = vperm.xlu0 %2946, %v2393
  %v2948 = vpop.permute.xlu0 %2947
  %2951 = vset.pattern.permute.xlu0 0
  %2952 = vperm.xlu0 %2951, %v2394
  %v2953 = vpop.permute.xlu0 %2952
  %2956 = vset.pattern.permute.xlu0 0
  %2957 = vperm.xlu0 %2956, %v2395
  %v2958 = vpop.permute.xlu0 %2957
  %2961 = vset.pattern.permute.xlu0 0
  %2962 = vperm.xlu0 %2961, %v2396
  %v2963 = vpop.permute.xlu0 %2962
  %2966 = vset.pattern.permute.xlu0 0
  %2967 = vperm.xlu0 %2966, %v2397
  %v2968 = vpop.permute.xlu0 %2967
  %2971 = vset.pattern.permute.xlu0 0
  %2972 = vperm.xlu0 %2971, %v2398
  %v2973 = vpop.permute.xlu0 %2972
  %2976 = vset.pattern.permute.xlu0 0
  %2977 = vperm.xlu0 %2976, %v2399
  %v2978 = vpop.permute.xlu0 %2977
  %2981 = vset.pattern.permute.xlu0 0
  %2982 = vperm.xlu0 %2981, %v2400
  %v2983 = vpop.permute.xlu0 %2982
  %2986 = vset.pattern.permute.xlu0 0
  %2987 = vperm.xlu0 %2986, %v2401
  %v2988 = vpop.permute.xlu0 %2987
  %2991 = vset.pattern.permute.xlu0 0
  %2992 = vperm.xlu0 %2991, %v2402
  %v2993 = vpop.permute.xlu0 %2992
  %2996 = vset.pattern.permute.xlu0 0
  %2997 = vperm.xlu0 %2996, %v2403
  %v2998 = vpop.permute.xlu0 %2997
  %3001 = vset.pattern.permute.xlu0 0
  %3002 = vperm.xlu0 %3001, %v2404
  %v3003 = vpop.permute.xlu0 %3002
  %3006 = vset.pattern.permute.xlu0 0
  %3007 = vperm.xlu0 %3006, %v2405
  %v3008 = vpop.permute.xlu0 %3007
  %3011 = vset.pattern.permute.xlu0 0
  %3012 = vperm.xlu0 %3011, %v2406
  %v3013 = vpop.permute.xlu0 %3012
  %3016 = vset.pattern.permute.xlu0 0
  %3017 = vperm.xlu0 %3016, %v2407
  %v3018 = vpop.permute.xlu0 %3017
  %3021 = vset.pattern.permute.xlu0 0
  %3022 = vperm.xlu0 %3021, %v2408
  %v3023 = vpop.permute.xlu0 %3022
  %3026 = vset.pattern.permute.xlu0 0
  %3027 = vperm.xlu0 %3026, %v2409
  %v3028 = vpop.permute.xlu0 %3027
  %3031 = vset.pattern.permute.xlu0 0
  %3032 = vperm.xlu0 %3031, %v2410
  %v3033 = vpop.permute.xlu0 %3032
  %3036 = vset.pattern.permute.xlu0 0
  %3037 = vperm.xlu0 %3036, %v2411
  %v3038 = vpop.permute.xlu0 %3037
  %3041 = vset.pattern.permute.xlu0 0
  %3042 = vperm.xlu0 %3041, %v2412
  %v3043 = vpop.permute.xlu0 %3042
  %3046 = vset.pattern.permute.xlu0 0
  %3047 = vperm.xlu0 %3046, %v2413
  %v3048 = vpop.permute.xlu0 %3047
  %3051 = vset.pattern.permute.xlu0 0
  %3052 = vperm.xlu0 %3051, %v2414
  %v3053 = vpop.permute.xlu0 %3052
  %v3055 = vmul.f32 %v14, %v2658
  %v3056 = vmul.f32 %v15, %v2658
  %v3057 = vmul.f32 %v16, %v2663
  %v3058 = vmul.f32 %v17, %v2663
  %v3059 = vmul.f32 %v18, %v2668
  %v3060 = vmul.f32 %v19, %v2668
  %v3061 = vmul.f32 %v20, %v2673
  %v3062 = vmul.f32 %v21, %v2673
  %v3063 = vmul.f32 %v22, %v2678
  %v3064 = vmul.f32 %v23, %v2678
  %v3065 = vmul.f32 %v24, %v2683
  %v3066 = vmul.f32 %v25, %v2683
  %v3067 = vmul.f32 %v26, %v2688
  %v3068 = vmul.f32 %v27, %v2688
  %v3069 = vmul.f32 %v28, %v2693
  %v3070 = vmul.f32 %v29, %v2693
  %v3071 = vmul.f32 %v30, %v2698
  %v3072 = vmul.f32 %v31, %v2698
  %v3073 = vmul.f32 %v32, %v2703
  %v3074 = vmul.f32 %v33, %v2703
  %v3075 = vmul.f32 %v34, %v2708
  %v3076 = vmul.f32 %v35, %v2708
  %v3077 = vmul.f32 %v36, %v2713
  %v3078 = vmul.f32 %v37, %v2713
  %v3079 = vmul.f32 %v38, %v2718
  %v3080 = vmul.f32 %v39, %v2718
  %v3081 = vmul.f32 %v40, %v2723
  %v3082 = vmul.f32 %v41, %v2723
  %v3083 = vmul.f32 %v42, %v2728
  %v3084 = vmul.f32 %v43, %v2728
  %v3085 = vmul.f32 %v44, %v2733
  %v3086 = vmul.f32 %v45, %v2733
  %v3087 = vmul.f32 %v46, %v2738
  %v3088 = vmul.f32 %v47, %v2738
  %v3089 = vmul.f32 %v48, %v2743
  %v3090 = vmul.f32 %v49, %v2743
  %v3091 = vmul.f32 %v50, %v2748
  %v3092 = vmul.f32 %v51, %v2748
  %v3093 = vmul.f32 %v52, %v2753
  %v3094 = vmul.f32 %v53, %v2753
  %v3095 = vmul.f32 %v54, %v2758
  %v3096 = vmul.f32 %v55, %v2758
  %v3097 = vmul.f32 %v56, %v2763
  %v3098 = vmul.f32 %v57, %v2763
  %v3099 = vmul.f32 %v58, %v2768
  %v3100 = vmul.f32 %v59, %v2768
  %v3101 = vmul.f32 %v60, %v2773
  %v3102 = vmul.f32 %v61, %v2773
  %v3103 = vmul.f32 %v62, %v2778
  %v3104 = vmul.f32 %v63, %v2778
  %v3105 = vmul.f32 %v64, %v2783
  %v3106 = vmul.f32 %v65, %v2783
  %v3107 = vmul.f32 %v66, %v2788
  %v3108 = vmul.f32 %v67, %v2788
  %v3109 = vmul.f32 %v68, %v2793
  %v3110 = vmul.f32 %v69, %v2793
  %v3111 = vmul.f32 %v70, %v2798
  %v3112 = vmul.f32 %v71, %v2798
  %v3113 = vmul.f32 %v72, %v2803
  %v3114 = vmul.f32 %v73, %v2803
  %v3115 = vmul.f32 %v74, %v2808
  %v3116 = vmul.f32 %v75, %v2808
  %v3117 = vmul.f32 %v76, %v2813
  %v3118 = vmul.f32 %v77, %v2813
  %v3119 = vmul.f32 %v78, %v2818
  %v3120 = vmul.f32 %v79, %v2818
  %v3121 = vmul.f32 %v80, %v2823
  %v3122 = vmul.f32 %v81, %v2823
  %v3123 = vmul.f32 %v82, %v2828
  %v3124 = vmul.f32 %v83, %v2828
  %v3125 = vmul.f32 %v84, %v2833
  %v3126 = vmul.f32 %v85, %v2833
  %v3127 = vmul.f32 %v86, %v2838
  %v3128 = vmul.f32 %v87, %v2838
  %v3129 = vmul.f32 %v88, %v2843
  %v3130 = vmul.f32 %v89, %v2843
  %v3131 = vmul.f32 %v90, %v2848
  %v3132 = vmul.f32 %v91, %v2848
  %v3133 = vmul.f32 %v92, %v2853
  %v3134 = vmul.f32 %v93, %v2853
  %v3135 = vmul.f32 %v94, %v2858
  %v3136 = vmul.f32 %v95, %v2858
  %v3137 = vmul.f32 %v96, %v2863
  %v3138 = vmul.f32 %v97, %v2863
  %v3139 = vmul.f32 %v98, %v2868
  %v3140 = vmul.f32 %v99, %v2868
  %v3141 = vmul.f32 %v100, %v2873
  %v3142 = vmul.f32 %v101, %v2873
  %v3143 = vmul.f32 %v102, %v2878
  %v3144 = vmul.f32 %v103, %v2878
  %v3145 = vmul.f32 %v104, %v2883
  %v3146 = vmul.f32 %v105, %v2883
  %v3147 = vmul.f32 %v106, %v2888
  %v3148 = vmul.f32 %v107, %v2888
  %v3149 = vmul.f32 %v108, %v2893
  %v3150 = vmul.f32 %v109, %v2893
  %v3151 = vmul.f32 %v110, %v2898
  %v3152 = vmul.f32 %v111, %v2898
  %v3153 = vmul.f32 %v112, %v2903
  %v3154 = vmul.f32 %v113, %v2903
  %v3155 = vmul.f32 %v114, %v2908
  %v3156 = vmul.f32 %v115, %v2908
  %v3157 = vmul.f32 %v116, %v2913
  %v3158 = vmul.f32 %v117, %v2913
  %v3159 = vmul.f32 %v118, %v2918
  %v3160 = vmul.f32 %v119, %v2918
  %v3161 = vmul.f32 %v120, %v2923
  %v3162 = vmul.f32 %v121, %v2923
  %v3163 = vmul.f32 %v122, %v2928
  %v3164 = vmul.f32 %v123, %v2928
  %v3165 = vmul.f32 %v124, %v2933
  %v3166 = vmul.f32 %v125, %v2933
  %v3167 = vmul.f32 %v126, %v2938
  %v3168 = vmul.f32 %v127, %v2938
  %v3169 = vmul.f32 %v128, %v2943
  %v3170 = vmul.f32 %v129, %v2943
  %v3171 = vmul.f32 %v130, %v2948
  %v3172 = vmul.f32 %v131, %v2948
  %v3173 = vmul.f32 %v132, %v2953
  %v3174 = vmul.f32 %v133, %v2953
  %v3175 = vmul.f32 %v134, %v2958
  %v3176 = vmul.f32 %v135, %v2958
  %v3177 = vmul.f32 %v136, %v2963
  %v3178 = vmul.f32 %v137, %v2963
  %v3179 = vmul.f32 %v138, %v2968
  %v3180 = vmul.f32 %v139, %v2968
  %v3181 = vmul.f32 %v140, %v2973
  %v3182 = vmul.f32 %v141, %v2973
  %v3183 = vmul.f32 %v142, %v2978
  %v3184 = vmul.f32 %v143, %v2978
  %v3185 = vmul.f32 %v144, %v2983
  %v3186 = vmul.f32 %v145, %v2983
  %v3187 = vmul.f32 %v146, %v2988
  %v3188 = vmul.f32 %v147, %v2988
  %v3189 = vmul.f32 %v148, %v2993
  %v3190 = vmul.f32 %v149, %v2993
  %v3191 = vmul.f32 %v150, %v2998
  %v3192 = vmul.f32 %v151, %v2998
  %v3193 = vmul.f32 %v152, %v3003
  %v3194 = vmul.f32 %v153, %v3003
  %v3195 = vmul.f32 %v154, %v3008
  %v3196 = vmul.f32 %v155, %v3008
  %v3197 = vmul.f32 %v156, %v3013
  %v3198 = vmul.f32 %v157, %v3013
  %v3199 = vmul.f32 %v158, %v3018
  %v3200 = vmul.f32 %v159, %v3018
  %v3201 = vmul.f32 %v160, %v3023
  %v3202 = vmul.f32 %v161, %v3023
  %v3203 = vmul.f32 %v162, %v3028
  %v3204 = vmul.f32 %v163, %v3028
  %v3205 = vmul.f32 %v164, %v3033
  %v3206 = vmul.f32 %v165, %v3033
  %v3207 = vmul.f32 %v166, %v3038
  %v3208 = vmul.f32 %v167, %v3038
  %v3209 = vmul.f32 %v168, %v3043
  %v3210 = vmul.f32 %v169, %v3043
  %v3211 = vmul.f32 %v170, %v3048
  %v3212 = vmul.f32 %v171, %v3048
  %v3213 = vmul.f32 %v172, %v3053
  %v3214 = vmul.f32 %v173, %v3053
  %3216 = vset.pattern.permute.xlu0 0
  %3217 = vperm.xlu0 %3216, %v2575
  %v3218 = vpop.permute.xlu0 %3217
  %3221 = vset.pattern.permute.xlu0 0
  %3222 = vperm.xlu0 %3221, %v2576
  %v3223 = vpop.permute.xlu0 %3222
  %3226 = vset.pattern.permute.xlu0 0
  %3227 = vperm.xlu0 %3226, %v2577
  %v3228 = vpop.permute.xlu0 %3227
  %3231 = vset.pattern.permute.xlu0 0
  %3232 = vperm.xlu0 %3231, %v2578
  %v3233 = vpop.permute.xlu0 %3232
  %3236 = vset.pattern.permute.xlu0 0
  %3237 = vperm.xlu0 %3236, %v2579
  %v3238 = vpop.permute.xlu0 %3237
  %3241 = vset.pattern.permute.xlu0 0
  %3242 = vperm.xlu0 %3241, %v2580
  %v3243 = vpop.permute.xlu0 %3242
  %3246 = vset.pattern.permute.xlu0 0
  %3247 = vperm.xlu0 %3246, %v2581
  %v3248 = vpop.permute.xlu0 %3247
  %3251 = vset.pattern.permute.xlu0 0
  %3252 = vperm.xlu0 %3251, %v2582
  %v3253 = vpop.permute.xlu0 %3252
  %3256 = vset.pattern.permute.xlu0 0
  %3257 = vperm.xlu0 %3256, %v2583
  %v3258 = vpop.permute.xlu0 %3257
  %3261 = vset.pattern.permute.xlu0 0
  %3262 = vperm.xlu0 %3261, %v2584
  %v3263 = vpop.permute.xlu0 %3262
  %3266 = vset.pattern.permute.xlu0 0
  %3267 = vperm.xlu0 %3266, %v2585
  %v3268 = vpop.permute.xlu0 %3267
  %3271 = vset.pattern.permute.xlu0 0
  %3272 = vperm.xlu0 %3271, %v2586
  %v3273 = vpop.permute.xlu0 %3272
  %3276 = vset.pattern.permute.xlu0 0
  %3277 = vperm.xlu0 %3276, %v2587
  %v3278 = vpop.permute.xlu0 %3277
  %3281 = vset.pattern.permute.xlu0 0
  %3282 = vperm.xlu0 %3281, %v2588
  %v3283 = vpop.permute.xlu0 %3282
  %3286 = vset.pattern.permute.xlu0 0
  %3287 = vperm.xlu0 %3286, %v2589
  %v3288 = vpop.permute.xlu0 %3287
  %3291 = vset.pattern.permute.xlu0 0
  %3292 = vperm.xlu0 %3291, %v2590
  %v3293 = vpop.permute.xlu0 %3292
  %3296 = vset.pattern.permute.xlu0 0
  %3297 = vperm.xlu0 %3296, %v2591
  %v3298 = vpop.permute.xlu0 %3297
  %3301 = vset.pattern.permute.xlu0 0
  %3302 = vperm.xlu0 %3301, %v2592
  %v3303 = vpop.permute.xlu0 %3302
  %3306 = vset.pattern.permute.xlu0 0
  %3307 = vperm.xlu0 %3306, %v2593
  %v3308 = vpop.permute.xlu0 %3307
  %3311 = vset.pattern.permute.xlu0 0
  %3312 = vperm.xlu0 %3311, %v2594
  %v3313 = vpop.permute.xlu0 %3312
  %3316 = vset.pattern.permute.xlu0 0
  %3317 = vperm.xlu0 %3316, %v2595
  %v3318 = vpop.permute.xlu0 %3317
  %3321 = vset.pattern.permute.xlu0 0
  %3322 = vperm.xlu0 %3321, %v2596
  %v3323 = vpop.permute.xlu0 %3322
  %3326 = vset.pattern.permute.xlu0 0
  %3327 = vperm.xlu0 %3326, %v2597
  %v3328 = vpop.permute.xlu0 %3327
  %3331 = vset.pattern.permute.xlu0 0
  %3332 = vperm.xlu0 %3331, %v2598
  %v3333 = vpop.permute.xlu0 %3332
  %3336 = vset.pattern.permute.xlu0 0
  %3337 = vperm.xlu0 %3336, %v2599
  %v3338 = vpop.permute.xlu0 %3337
  %3341 = vset.pattern.permute.xlu0 0
  %3342 = vperm.xlu0 %3341, %v2600
  %v3343 = vpop.permute.xlu0 %3342
  %3346 = vset.pattern.permute.xlu0 0
  %3347 = vperm.xlu0 %3346, %v2601
  %v3348 = vpop.permute.xlu0 %3347
  %3351 = vset.pattern.permute.xlu0 0
  %3352 = vperm.xlu0 %3351, %v2602
  %v3353 = vpop.permute.xlu0 %3352
  %3356 = vset.pattern.permute.xlu0 0
  %3357 = vperm.xlu0 %3356, %v2603
  %v3358 = vpop.permute.xlu0 %3357
  %3361 = vset.pattern.permute.xlu0 0
  %3362 = vperm.xlu0 %3361, %v2604
  %v3363 = vpop.permute.xlu0 %3362
  %3366 = vset.pattern.permute.xlu0 0
  %3367 = vperm.xlu0 %3366, %v2605
  %v3368 = vpop.permute.xlu0 %3367
  %3371 = vset.pattern.permute.xlu0 0
  %3372 = vperm.xlu0 %3371, %v2606
  %v3373 = vpop.permute.xlu0 %3372
  %3376 = vset.pattern.permute.xlu0 0
  %3377 = vperm.xlu0 %3376, %v2607
  %v3378 = vpop.permute.xlu0 %3377
  %3381 = vset.pattern.permute.xlu0 0
  %3382 = vperm.xlu0 %3381, %v2608
  %v3383 = vpop.permute.xlu0 %3382
  %3386 = vset.pattern.permute.xlu0 0
  %3387 = vperm.xlu0 %3386, %v2609
  %v3388 = vpop.permute.xlu0 %3387
  %3391 = vset.pattern.permute.xlu0 0
  %3392 = vperm.xlu0 %3391, %v2610
  %v3393 = vpop.permute.xlu0 %3392
  %3396 = vset.pattern.permute.xlu0 0
  %3397 = vperm.xlu0 %3396, %v2611
  %v3398 = vpop.permute.xlu0 %3397
  %3401 = vset.pattern.permute.xlu0 0
  %3402 = vperm.xlu0 %3401, %v2612
  %v3403 = vpop.permute.xlu0 %3402
  %3406 = vset.pattern.permute.xlu0 0
  %3407 = vperm.xlu0 %3406, %v2613
  %v3408 = vpop.permute.xlu0 %3407
  %3411 = vset.pattern.permute.xlu0 0
  %3412 = vperm.xlu0 %3411, %v2614
  %v3413 = vpop.permute.xlu0 %3412
  %3416 = vset.pattern.permute.xlu0 0
  %3417 = vperm.xlu0 %3416, %v2615
  %v3418 = vpop.permute.xlu0 %3417
  %3421 = vset.pattern.permute.xlu0 0
  %3422 = vperm.xlu0 %3421, %v2616
  %v3423 = vpop.permute.xlu0 %3422
  %3426 = vset.pattern.permute.xlu0 0
  %3427 = vperm.xlu0 %3426, %v2617
  %v3428 = vpop.permute.xlu0 %3427
  %3431 = vset.pattern.permute.xlu0 0
  %3432 = vperm.xlu0 %3431, %v2618
  %v3433 = vpop.permute.xlu0 %3432
  %3436 = vset.pattern.permute.xlu0 0
  %3437 = vperm.xlu0 %3436, %v2619
  %v3438 = vpop.permute.xlu0 %3437
  %3441 = vset.pattern.permute.xlu0 0
  %3442 = vperm.xlu0 %3441, %v2620
  %v3443 = vpop.permute.xlu0 %3442
  %3446 = vset.pattern.permute.xlu0 0
  %3447 = vperm.xlu0 %3446, %v2621
  %v3448 = vpop.permute.xlu0 %3447
  %3451 = vset.pattern.permute.xlu0 0
  %3452 = vperm.xlu0 %3451, %v2622
  %v3453 = vpop.permute.xlu0 %3452
  %3456 = vset.pattern.permute.xlu0 0
  %3457 = vperm.xlu0 %3456, %v2623
  %v3458 = vpop.permute.xlu0 %3457
  %3461 = vset.pattern.permute.xlu0 0
  %3462 = vperm.xlu0 %3461, %v2624
  %v3463 = vpop.permute.xlu0 %3462
  %3466 = vset.pattern.permute.xlu0 0
  %3467 = vperm.xlu0 %3466, %v2625
  %v3468 = vpop.permute.xlu0 %3467
  %3471 = vset.pattern.permute.xlu0 0
  %3472 = vperm.xlu0 %3471, %v2626
  %v3473 = vpop.permute.xlu0 %3472
  %3476 = vset.pattern.permute.xlu0 0
  %3477 = vperm.xlu0 %3476, %v2627
  %v3478 = vpop.permute.xlu0 %3477
  %3481 = vset.pattern.permute.xlu0 0
  %3482 = vperm.xlu0 %3481, %v2628
  %v3483 = vpop.permute.xlu0 %3482
  %3486 = vset.pattern.permute.xlu0 0
  %3487 = vperm.xlu0 %3486, %v2629
  %v3488 = vpop.permute.xlu0 %3487
  %3491 = vset.pattern.permute.xlu0 0
  %3492 = vperm.xlu0 %3491, %v2630
  %v3493 = vpop.permute.xlu0 %3492
  %3496 = vset.pattern.permute.xlu0 0
  %3497 = vperm.xlu0 %3496, %v2631
  %v3498 = vpop.permute.xlu0 %3497
  %3501 = vset.pattern.permute.xlu0 0
  %3502 = vperm.xlu0 %3501, %v2632
  %v3503 = vpop.permute.xlu0 %3502
  %3506 = vset.pattern.permute.xlu0 0
  %3507 = vperm.xlu0 %3506, %v2633
  %v3508 = vpop.permute.xlu0 %3507
  %3511 = vset.pattern.permute.xlu0 0
  %3512 = vperm.xlu0 %3511, %v2634
  %v3513 = vpop.permute.xlu0 %3512
  %3516 = vset.pattern.permute.xlu0 0
  %3517 = vperm.xlu0 %3516, %v2635
  %v3518 = vpop.permute.xlu0 %3517
  %3521 = vset.pattern.permute.xlu0 0
  %3522 = vperm.xlu0 %3521, %v2636
  %v3523 = vpop.permute.xlu0 %3522
  %3526 = vset.pattern.permute.xlu0 0
  %3527 = vperm.xlu0 %3526, %v2637
  %v3528 = vpop.permute.xlu0 %3527
  %3531 = vset.pattern.permute.xlu0 0
  %3532 = vperm.xlu0 %3531, %v2638
  %v3533 = vpop.permute.xlu0 %3532
  %3536 = vset.pattern.permute.xlu0 0
  %3537 = vperm.xlu0 %3536, %v2639
  %v3538 = vpop.permute.xlu0 %3537
  %3541 = vset.pattern.permute.xlu0 0
  %3542 = vperm.xlu0 %3541, %v2640
  %v3543 = vpop.permute.xlu0 %3542
  %3546 = vset.pattern.permute.xlu0 0
  %3547 = vperm.xlu0 %3546, %v2641
  %v3548 = vpop.permute.xlu0 %3547
  %3551 = vset.pattern.permute.xlu0 0
  %3552 = vperm.xlu0 %3551, %v2642
  %v3553 = vpop.permute.xlu0 %3552
  %3556 = vset.pattern.permute.xlu0 0
  %3557 = vperm.xlu0 %3556, %v2643
  %v3558 = vpop.permute.xlu0 %3557
  %3561 = vset.pattern.permute.xlu0 0
  %3562 = vperm.xlu0 %3561, %v2644
  %v3563 = vpop.permute.xlu0 %3562
  %3566 = vset.pattern.permute.xlu0 0
  %3567 = vperm.xlu0 %3566, %v2645
  %v3568 = vpop.permute.xlu0 %3567
  %3571 = vset.pattern.permute.xlu0 0
  %3572 = vperm.xlu0 %3571, %v2646
  %v3573 = vpop.permute.xlu0 %3572
  %3576 = vset.pattern.permute.xlu0 0
  %3577 = vperm.xlu0 %3576, %v2647
  %v3578 = vpop.permute.xlu0 %3577
  %3581 = vset.pattern.permute.xlu0 0
  %3582 = vperm.xlu0 %3581, %v2648
  %v3583 = vpop.permute.xlu0 %3582
  %3586 = vset.pattern.permute.xlu0 0
  %3587 = vperm.xlu0 %3586, %v2649
  %v3588 = vpop.permute.xlu0 %3587
  %3591 = vset.pattern.permute.xlu0 0
  %3592 = vperm.xlu0 %3591, %v2650
  %v3593 = vpop.permute.xlu0 %3592
  %3596 = vset.pattern.permute.xlu0 0
  %3597 = vperm.xlu0 %3596, %v2651
  %v3598 = vpop.permute.xlu0 %3597
  %3601 = vset.pattern.permute.xlu0 0
  %3602 = vperm.xlu0 %3601, %v2652
  %v3603 = vpop.permute.xlu0 %3602
  %3606 = vset.pattern.permute.xlu0 0
  %3607 = vperm.xlu0 %3606, %v2653
  %v3608 = vpop.permute.xlu0 %3607
  %3611 = vset.pattern.permute.xlu0 0
  %3612 = vperm.xlu0 %3611, %v2654
  %v3613 = vpop.permute.xlu0 %3612
  %v3615 = vadd.f32 %v3055, %v3218
  %v3616 = vadd.f32 %v3056, %v3218
  %v3617 = vadd.f32 %v3057, %v3223
  %v3618 = vadd.f32 %v3058, %v3223
  %v3619 = vadd.f32 %v3059, %v3228
  %v3620 = vadd.f32 %v3060, %v3228
  %v3621 = vadd.f32 %v3061, %v3233
  %v3622 = vadd.f32 %v3062, %v3233
  %v3623 = vadd.f32 %v3063, %v3238
  %v3624 = vadd.f32 %v3064, %v3238
  %v3625 = vadd.f32 %v3065, %v3243
  %v3626 = vadd.f32 %v3066, %v3243
  %v3627 = vadd.f32 %v3067, %v3248
  %v3628 = vadd.f32 %v3068, %v3248
  %v3629 = vadd.f32 %v3069, %v3253
  %v3630 = vadd.f32 %v3070, %v3253
  %v3631 = vadd.f32 %v3071, %v3258
  %v3632 = vadd.f32 %v3072, %v3258
  %v3633 = vadd.f32 %v3073, %v3263
  %v3634 = vadd.f32 %v3074, %v3263
  %v3635 = vadd.f32 %v3075, %v3268
  %v3636 = vadd.f32 %v3076, %v3268
  %v3637 = vadd.f32 %v3077, %v3273
  %v3638 = vadd.f32 %v3078, %v3273
  %v3639 = vadd.f32 %v3079, %v3278
  %v3640 = vadd.f32 %v3080, %v3278
  %v3641 = vadd.f32 %v3081, %v3283
  %v3642 = vadd.f32 %v3082, %v3283
  %v3643 = vadd.f32 %v3083, %v3288
  %v3644 = vadd.f32 %v3084, %v3288
  %v3645 = vadd.f32 %v3085, %v3293
  %v3646 = vadd.f32 %v3086, %v3293
  %v3647 = vadd.f32 %v3087, %v3298
  %v3648 = vadd.f32 %v3088, %v3298
  %v3649 = vadd.f32 %v3089, %v3303
  %v3650 = vadd.f32 %v3090, %v3303
  %v3651 = vadd.f32 %v3091, %v3308
  %v3652 = vadd.f32 %v3092, %v3308
  %v3653 = vadd.f32 %v3093, %v3313
  %v3654 = vadd.f32 %v3094, %v3313
  %v3655 = vadd.f32 %v3095, %v3318
  %v3656 = vadd.f32 %v3096, %v3318
  %v3657 = vadd.f32 %v3097, %v3323
  %v3658 = vadd.f32 %v3098, %v3323
  %v3659 = vadd.f32 %v3099, %v3328
  %v3660 = vadd.f32 %v3100, %v3328
  %v3661 = vadd.f32 %v3101, %v3333
  %v3662 = vadd.f32 %v3102, %v3333
  %v3663 = vadd.f32 %v3103, %v3338
  %v3664 = vadd.f32 %v3104, %v3338
  %v3665 = vadd.f32 %v3105, %v3343
  %v3666 = vadd.f32 %v3106, %v3343
  %v3667 = vadd.f32 %v3107, %v3348
  %v3668 = vadd.f32 %v3108, %v3348
  %v3669 = vadd.f32 %v3109, %v3353
  %v3670 = vadd.f32 %v3110, %v3353
  %v3671 = vadd.f32 %v3111, %v3358
  %v3672 = vadd.f32 %v3112, %v3358
  %v3673 = vadd.f32 %v3113, %v3363
  %v3674 = vadd.f32 %v3114, %v3363
  %v3675 = vadd.f32 %v3115, %v3368
  %v3676 = vadd.f32 %v3116, %v3368
  %v3677 = vadd.f32 %v3117, %v3373
  %v3678 = vadd.f32 %v3118, %v3373
  %v3679 = vadd.f32 %v3119, %v3378
  %v3680 = vadd.f32 %v3120, %v3378
  %v3681 = vadd.f32 %v3121, %v3383
  %v3682 = vadd.f32 %v3122, %v3383
  %v3683 = vadd.f32 %v3123, %v3388
  %v3684 = vadd.f32 %v3124, %v3388
  %v3685 = vadd.f32 %v3125, %v3393
  %v3686 = vadd.f32 %v3126, %v3393
  %v3687 = vadd.f32 %v3127, %v3398
  %v3688 = vadd.f32 %v3128, %v3398
  %v3689 = vadd.f32 %v3129, %v3403
  %v3690 = vadd.f32 %v3130, %v3403
  %v3691 = vadd.f32 %v3131, %v3408
  %v3692 = vadd.f32 %v3132, %v3408
  %v3693 = vadd.f32 %v3133, %v3413
  %v3694 = vadd.f32 %v3134, %v3413
  %v3695 = vadd.f32 %v3135, %v3418
  %v3696 = vadd.f32 %v3136, %v3418
  %v3697 = vadd.f32 %v3137, %v3423
  %v3698 = vadd.f32 %v3138, %v3423
  %v3699 = vadd.f32 %v3139, %v3428
  %v3700 = vadd.f32 %v3140, %v3428
  %v3701 = vadd.f32 %v3141, %v3433
  %v3702 = vadd.f32 %v3142, %v3433
  %v3703 = vadd.f32 %v3143, %v3438
  %v3704 = vadd.f32 %v3144, %v3438
  %v3705 = vadd.f32 %v3145, %v3443
  %v3706 = vadd.f32 %v3146, %v3443
  %v3707 = vadd.f32 %v3147, %v3448
  %v3708 = vadd.f32 %v3148, %v3448
  %v3709 = vadd.f32 %v3149, %v3453
  %v3710 = vadd.f32 %v3150, %v3453
  %v3711 = vadd.f32 %v3151, %v3458
  %v3712 = vadd.f32 %v3152, %v3458
  %v3713 = vadd.f32 %v3153, %v3463
  %v3714 = vadd.f32 %v3154, %v3463
  %v3715 = vadd.f32 %v3155, %v3468
  %v3716 = vadd.f32 %v3156, %v3468
  %v3717 = vadd.f32 %v3157, %v3473
  %v3718 = vadd.f32 %v3158, %v3473
  %v3719 = vadd.f32 %v3159, %v3478
  %v3720 = vadd.f32 %v3160, %v3478
  %v3721 = vadd.f32 %v3161, %v3483
  %v3722 = vadd.f32 %v3162, %v3483
  %v3723 = vadd.f32 %v3163, %v3488
  %v3724 = vadd.f32 %v3164, %v3488
  %v3725 = vadd.f32 %v3165, %v3493
  %v3726 = vadd.f32 %v3166, %v3493
  %v3727 = vadd.f32 %v3167, %v3498
  %v3728 = vadd.f32 %v3168, %v3498
  %v3729 = vadd.f32 %v3169, %v3503
  %v3730 = vadd.f32 %v3170, %v3503
  %v3731 = vadd.f32 %v3171, %v3508
  %v3732 = vadd.f32 %v3172, %v3508
  %v3733 = vadd.f32 %v3173, %v3513
  %v3734 = vadd.f32 %v3174, %v3513
  %v3735 = vadd.f32 %v3175, %v3518
  %v3736 = vadd.f32 %v3176, %v3518
  %v3737 = vadd.f32 %v3177, %v3523
  %v3738 = vadd.f32 %v3178, %v3523
  %v3739 = vadd.f32 %v3179, %v3528
  %v3740 = vadd.f32 %v3180, %v3528
  %v3741 = vadd.f32 %v3181, %v3533
  %v3742 = vadd.f32 %v3182, %v3533
  %v3743 = vadd.f32 %v3183, %v3538
  %v3744 = vadd.f32 %v3184, %v3538
  %v3745 = vadd.f32 %v3185, %v3543
  %v3746 = vadd.f32 %v3186, %v3543
  %v3747 = vadd.f32 %v3187, %v3548
  %v3748 = vadd.f32 %v3188, %v3548
  %v3749 = vadd.f32 %v3189, %v3553
  %v3750 = vadd.f32 %v3190, %v3553
  %v3751 = vadd.f32 %v3191, %v3558
  %v3752 = vadd.f32 %v3192, %v3558
  %v3753 = vadd.f32 %v3193, %v3563
  %v3754 = vadd.f32 %v3194, %v3563
  %v3755 = vadd.f32 %v3195, %v3568
  %v3756 = vadd.f32 %v3196, %v3568
  %v3757 = vadd.f32 %v3197, %v3573
  %v3758 = vadd.f32 %v3198, %v3573
  %v3759 = vadd.f32 %v3199, %v3578
  %v3760 = vadd.f32 %v3200, %v3578
  %v3761 = vadd.f32 %v3201, %v3583
  %v3762 = vadd.f32 %v3202, %v3583
  %v3763 = vadd.f32 %v3203, %v3588
  %v3764 = vadd.f32 %v3204, %v3588
  %v3765 = vadd.f32 %v3205, %v3593
  %v3766 = vadd.f32 %v3206, %v3593
  %v3767 = vadd.f32 %v3207, %v3598
  %v3768 = vadd.f32 %v3208, %v3598
  %v3769 = vadd.f32 %v3209, %v3603
  %v3770 = vadd.f32 %v3210, %v3603
  %v3771 = vadd.f32 %v3211, %v3608
  %v3772 = vadd.f32 %v3212, %v3608
  %v3773 = vadd.f32 %v3213, %v3613
  %v3774 = vadd.f32 %v3214, %v3613
  %3775 = vst [vmem:[%s3] sm:$0xff] %v3615
  %3776 = vst.msk [vmem:[%s3 + $0x8] sm:$0xff] %vm174, %v3616
  %3777 = vst [vmem:[%s3 + $0x10] sm:$0xff] %v3617
  %3778 = vst.msk [vmem:[%s3 + $0x18] sm:$0xff] %vm174, %v3618
  %3779 = vst [vmem:[%s3 + $0x20] sm:$0xff] %v3619
  %3780 = vst.msk [vmem:[%s3 + $0x28] sm:$0xff] %vm174, %v3620
  %3781 = vst [vmem:[%s3 + $0x30] sm:$0xff] %v3621
  %3782 = vst.msk [vmem:[%s3 + $0x38] sm:$0xff] %vm174, %v3622
  %3783 = vst [vmem:[%s3 + $0x40] sm:$0xff] %v3623
  %3784 = vst.msk [vmem:[%s3 + $0x48] sm:$0xff] %vm174, %v3624
  %3785 = vst [vmem:[%s3 + $0x50] sm:$0xff] %v3625
  %3786 = vst.msk [vmem:[%s3 + $0x58] sm:$0xff] %vm174, %v3626
  %3787 = vst [vmem:[%s3 + $0x60] sm:$0xff] %v3627
  %3788 = vst.msk [vmem:[%s3 + $0x68] sm:$0xff] %vm174, %v3628
  %3789 = vst [vmem:[%s3 + $0x70] sm:$0xff] %v3629
  %3790 = vst.msk [vmem:[%s3 + $0x78] sm:$0xff] %vm174, %v3630
  %3791 = vst [vmem:[%s3 + $0x80] sm:$0xff] %v3631
  %3792 = vst.msk [vmem:[%s3 + $0x88] sm:$0xff] %vm174, %v3632
  %3793 = vst [vmem:[%s3 + $0x90] sm:$0xff] %v3633
  %3794 = vst.msk [vmem:[%s3 + $0x98] sm:$0xff] %vm174, %v3634
  %3795 = vst [vmem:[%s3 + $0xa0] sm:$0xff] %v3635
  %3796 = vst.msk [vmem:[%s3 + $0xa8] sm:$0xff] %vm174, %v3636
  %3797 = vst [vmem:[%s3 + $0xb0] sm:$0xff] %v3637
  %3798 = vst.msk [vmem:[%s3 + $0xb8] sm:$0xff] %vm174, %v3638
  %3799 = vst [vmem:[%s3 + $0xc0] sm:$0xff] %v3639
  %3800 = vst.msk [vmem:[%s3 + $0xc8] sm:$0xff] %vm174, %v3640
  %3801 = vst [vmem:[%s3 + $0xd0] sm:$0xff] %v3641
  %3802 = vst.msk [vmem:[%s3 + $0xd8] sm:$0xff] %vm174, %v3642
  %3803 = vst [vmem:[%s3 + $0xe0] sm:$0xff] %v3643
  %3804 = vst.msk [vmem:[%s3 + $0xe8] sm:$0xff] %vm174, %v3644
  %3805 = vst [vmem:[%s3 + $0xf0] sm:$0xff] %v3645
  %3806 = vst.msk [vmem:[%s3 + $0xf8] sm:$0xff] %vm174, %v3646
  %3807 = vst [vmem:[%s3 + $0x100] sm:$0xff] %v3647
  %3808 = vst.msk [vmem:[%s3 + $0x108] sm:$0xff] %vm174, %v3648
  %3809 = vst [vmem:[%s3 + $0x110] sm:$0xff] %v3649
  %3810 = vst.msk [vmem:[%s3 + $0x118] sm:$0xff] %vm174, %v3650
  %3811 = vst [vmem:[%s3 + $0x120] sm:$0xff] %v3651
  %3812 = vst.msk [vmem:[%s3 + $0x128] sm:$0xff] %vm174, %v3652
  %3813 = vst [vmem:[%s3 + $0x130] sm:$0xff] %v3653
  %3814 = vst.msk [vmem:[%s3 + $0x138] sm:$0xff] %vm174, %v3654
  %3815 = vst [vmem:[%s3 + $0x140] sm:$0xff] %v3655
  %3816 = vst.msk [vmem:[%s3 + $0x148] sm:$0xff] %vm174, %v3656
  %3817 = vst [vmem:[%s3 + $0x150] sm:$0xff] %v3657
  %3818 = vst.msk [vmem:[%s3 + $0x158] sm:$0xff] %vm174, %v3658
  %3819 = vst [vmem:[%s3 + $0x160] sm:$0xff] %v3659
  %3820 = vst.msk [vmem:[%s3 + $0x168] sm:$0xff] %vm174, %v3660
  %3821 = vst [vmem:[%s3 + $0x170] sm:$0xff] %v3661
  %3822 = vst.msk [vmem:[%s3 + $0x178] sm:$0xff] %vm174, %v3662
  %3823 = vst [vmem:[%s3 + $0x180] sm:$0xff] %v3663
  %3824 = vst.msk [vmem:[%s3 + $0x188] sm:$0xff] %vm174, %v3664
  %3825 = vst [vmem:[%s3 + $0x190] sm:$0xff] %v3665
  %3826 = vst.msk [vmem:[%s3 + $0x198] sm:$0xff] %vm174, %v3666
  %3827 = vst [vmem:[%s3 + $0x1a0] sm:$0xff] %v3667
  %3828 = vst.msk [vmem:[%s3 + $0x1a8] sm:$0xff] %vm174, %v3668
  %3829 = vst [vmem:[%s3 + $0x1b0] sm:$0xff] %v3669
  %3830 = vst.msk [vmem:[%s3 + $0x1b8] sm:$0xff] %vm174, %v3670
  %3831 = vst [vmem:[%s3 + $0x1c0] sm:$0xff] %v3671
  %3832 = vst.msk [vmem:[%s3 + $0x1c8] sm:$0xff] %vm174, %v3672
  %3833 = vst [vmem:[%s3 + $0x1d0] sm:$0xff] %v3673
  %3834 = vst.msk [vmem:[%s3 + $0x1d8] sm:$0xff] %vm174, %v3674
  %3835 = vst [vmem:[%s3 + $0x1e0] sm:$0xff] %v3675
  %3836 = vst.msk [vmem:[%s3 + $0x1e8] sm:$0xff] %vm174, %v3676
  %3837 = vst [vmem:[%s3 + $0x1f0] sm:$0xff] %v3677
  %3838 = vst.msk [vmem:[%s3 + $0x1f8] sm:$0xff] %vm174, %v3678
  %3839 = vst [vmem:[%s3 + $0x200] sm:$0xff] %v3679
  %3840 = vst.msk [vmem:[%s3 + $0x208] sm:$0xff] %vm174, %v3680
  %3841 = vst [vmem:[%s3 + $0x210] sm:$0xff] %v3681
  %3842 = vst.msk [vmem:[%s3 + $0x218] sm:$0xff] %vm174, %v3682
  %3843 = vst [vmem:[%s3 + $0x220] sm:$0xff] %v3683
  %3844 = vst.msk [vmem:[%s3 + $0x228] sm:$0xff] %vm174, %v3684
  %3845 = vst [vmem:[%s3 + $0x230] sm:$0xff] %v3685
  %3846 = vst.msk [vmem:[%s3 + $0x238] sm:$0xff] %vm174, %v3686
  %3847 = vst [vmem:[%s3 + $0x240] sm:$0xff] %v3687
  %3848 = vst.msk [vmem:[%s3 + $0x248] sm:$0xff] %vm174, %v3688
  %3849 = vst [vmem:[%s3 + $0x250] sm:$0xff] %v3689
  %3850 = vst.msk [vmem:[%s3 + $0x258] sm:$0xff] %vm174, %v3690
  %3851 = vst [vmem:[%s3 + $0x260] sm:$0xff] %v3691
  %3852 = vst.msk [vmem:[%s3 + $0x268] sm:$0xff] %vm174, %v3692
  %3853 = vst [vmem:[%s3 + $0x270] sm:$0xff] %v3693
  %3854 = vst.msk [vmem:[%s3 + $0x278] sm:$0xff] %vm174, %v3694
  %3855 = vst [vmem:[%s3 + $0x280] sm:$0xff] %v3695
  %3856 = vst.msk [vmem:[%s3 + $0x288] sm:$0xff] %vm174, %v3696
  %3857 = vst [vmem:[%s3 + $0x290] sm:$0xff] %v3697
  %3858 = vst.msk [vmem:[%s3 + $0x298] sm:$0xff] %vm174, %v3698
  %3859 = vst [vmem:[%s3 + $0x2a0] sm:$0xff] %v3699
  %3860 = vst.msk [vmem:[%s3 + $0x2a8] sm:$0xff] %vm174, %v3700
  %3861 = vst [vmem:[%s3 + $0x2b0] sm:$0xff] %v3701
  %3862 = vst.msk [vmem:[%s3 + $0x2b8] sm:$0xff] %vm174, %v3702
  %3863 = vst [vmem:[%s3 + $0x2c0] sm:$0xff] %v3703
  %3864 = vst.msk [vmem:[%s3 + $0x2c8] sm:$0xff] %vm174, %v3704
  %3865 = vst [vmem:[%s3 + $0x2d0] sm:$0xff] %v3705
  %3866 = vst.msk [vmem:[%s3 + $0x2d8] sm:$0xff] %vm174, %v3706
  %3867 = vst [vmem:[%s3 + $0x2e0] sm:$0xff] %v3707
  %3868 = vst.msk [vmem:[%s3 + $0x2e8] sm:$0xff] %vm174, %v3708
  %3869 = vst [vmem:[%s3 + $0x2f0] sm:$0xff] %v3709
  %3870 = vst.msk [vmem:[%s3 + $0x2f8] sm:$0xff] %vm174, %v3710
  %3871 = vst [vmem:[%s3 + $0x300] sm:$0xff] %v3711
  %3872 = vst.msk [vmem:[%s3 + $0x308] sm:$0xff] %vm174, %v3712
  %3873 = vst [vmem:[%s3 + $0x310] sm:$0xff] %v3713
  %3874 = vst.msk [vmem:[%s3 + $0x318] sm:$0xff] %vm174, %v3714
  %3875 = vst [vmem:[%s3 + $0x320] sm:$0xff] %v3715
  %3876 = vst.msk [vmem:[%s3 + $0x328] sm:$0xff] %vm174, %v3716
  %3877 = vst [vmem:[%s3 + $0x330] sm:$0xff] %v3717
  %3878 = vst.msk [vmem:[%s3 + $0x338] sm:$0xff] %vm174, %v3718
  %3879 = vst [vmem:[%s3 + $0x340] sm:$0xff] %v3719
  %3880 = vst.msk [vmem:[%s3 + $0x348] sm:$0xff] %vm174, %v3720
  %3881 = vst [vmem:[%s3 + $0x350] sm:$0xff] %v3721
  %3882 = vst.msk [vmem:[%s3 + $0x358] sm:$0xff] %vm174, %v3722
  %3883 = vst [vmem:[%s3 + $0x360] sm:$0xff] %v3723
  %3884 = vst.msk [vmem:[%s3 + $0x368] sm:$0xff] %vm174, %v3724
  %3885 = vst [vmem:[%s3 + $0x370] sm:$0xff] %v3725
  %3886 = vst.msk [vmem:[%s3 + $0x378] sm:$0xff] %vm174, %v3726
  %3887 = vst [vmem:[%s3 + $0x380] sm:$0xff] %v3727
  %3888 = vst.msk [vmem:[%s3 + $0x388] sm:$0xff] %vm174, %v3728
  %3889 = vst [vmem:[%s3 + $0x390] sm:$0xff] %v3729
  %3890 = vst.msk [vmem:[%s3 + $0x398] sm:$0xff] %vm174, %v3730
  %3891 = vst [vmem:[%s3 + $0x3a0] sm:$0xff] %v3731
  %3892 = vst.msk [vmem:[%s3 + $0x3a8] sm:$0xff] %vm174, %v3732
  %3893 = vst [vmem:[%s3 + $0x3b0] sm:$0xff] %v3733
  %3894 = vst.msk [vmem:[%s3 + $0x3b8] sm:$0xff] %vm174, %v3734
  %3895 = vst [vmem:[%s3 + $0x3c0] sm:$0xff] %v3735
  %3896 = vst.msk [vmem:[%s3 + $0x3c8] sm:$0xff] %vm174, %v3736
  %3897 = vst [vmem:[%s3 + $0x3d0] sm:$0xff] %v3737
  %3898 = vst.msk [vmem:[%s3 + $0x3d8] sm:$0xff] %vm174, %v3738
  %3899 = vst [vmem:[%s3 + $0x3e0] sm:$0xff] %v3739
  %3900 = vst.msk [vmem:[%s3 + $0x3e8] sm:$0xff] %vm174, %v3740
  %3901 = vst [vmem:[%s3 + $0x3f0] sm:$0xff] %v3741
  %3902 = vst.msk [vmem:[%s3 + $0x3f8] sm:$0xff] %vm174, %v3742
  %3903 = vst [vmem:[%s3 + $0x400] sm:$0xff] %v3743
  %3904 = vst.msk [vmem:[%s3 + $0x408] sm:$0xff] %vm174, %v3744
  %3905 = vst [vmem:[%s3 + $0x410] sm:$0xff] %v3745
  %3906 = vst.msk [vmem:[%s3 + $0x418] sm:$0xff] %vm174, %v3746
  %3907 = vst [vmem:[%s3 + $0x420] sm:$0xff] %v3747
  %3908 = vst.msk [vmem:[%s3 + $0x428] sm:$0xff] %vm174, %v3748
  %3909 = vst [vmem:[%s3 + $0x430] sm:$0xff] %v3749
  %3910 = vst.msk [vmem:[%s3 + $0x438] sm:$0xff] %vm174, %v3750
  %3911 = vst [vmem:[%s3 + $0x440] sm:$0xff] %v3751
  %3912 = vst.msk [vmem:[%s3 + $0x448] sm:$0xff] %vm174, %v3752
  %3913 = vst [vmem:[%s3 + $0x450] sm:$0xff] %v3753
  %3914 = vst.msk [vmem:[%s3 + $0x458] sm:$0xff] %vm174, %v3754
  %3915 = vst [vmem:[%s3 + $0x460] sm:$0xff] %v3755
  %3916 = vst.msk [vmem:[%s3 + $0x468] sm:$0xff] %vm174, %v3756
  %3917 = vst [vmem:[%s3 + $0x470] sm:$0xff] %v3757
  %3918 = vst.msk [vmem:[%s3 + $0x478] sm:$0xff] %vm174, %v3758
  %3919 = vst [vmem:[%s3 + $0x480] sm:$0xff] %v3759
  %3920 = vst.msk [vmem:[%s3 + $0x488] sm:$0xff] %vm174, %v3760
  %3921 = vst [vmem:[%s3 + $0x490] sm:$0xff] %v3761
  %3922 = vst.msk [vmem:[%s3 + $0x498] sm:$0xff] %vm174, %v3762
  %3923 = vst [vmem:[%s3 + $0x4a0] sm:$0xff] %v3763
  %3924 = vst.msk [vmem:[%s3 + $0x4a8] sm:$0xff] %vm174, %v3764
  %3925 = vst [vmem:[%s3 + $0x4b0] sm:$0xff] %v3765
  %3926 = vst.msk [vmem:[%s3 + $0x4b8] sm:$0xff] %vm174, %v3766
  %3927 = vst [vmem:[%s3 + $0x4c0] sm:$0xff] %v3767
  %3928 = vst.msk [vmem:[%s3 + $0x4c8] sm:$0xff] %vm174, %v3768
  %3929 = vst [vmem:[%s3 + $0x4d0] sm:$0xff] %v3769
  %3930 = vst.msk [vmem:[%s3 + $0x4d8] sm:$0xff] %vm174, %v3770
  %3931 = vst [vmem:[%s3 + $0x4e0] sm:$0xff] %v3771
  %3932 = vst.msk [vmem:[%s3 + $0x4e8] sm:$0xff] %vm174, %v3772
  %3933 = vst [vmem:[%s3 + $0x4f0] sm:$0xff] %v3773
  %3934 = vst.msk [vmem:[%s3 + $0x4f8] sm:$0xff] %vm174, %v3774
  // Predicated region
  $region14: #{tpu_custom_call.1} parent=0 // pred_check
    _
  $region15: #{tpu_custom_call.1} parent=0 // pred_check_branch
    %3936 = sbr.rel (0) target = $region17
  $region16: #{tpu_custom_call.1} parent=0 // pred_region
    _
  $region17: #{tpu_custom_call.1} parent=0 // pred_fallthru
    _
  // Predicated region
  $region18: #{tpu_custom_call.1} parent=0 // pred_check
    _
  $region19: #{tpu_custom_call.1} parent=0 // pred_check_branch
    %3938 = sbr.rel (0) target = $region21
  $region20: #{tpu_custom_call.1} parent=0 // pred_region
    _
  $region21: #{tpu_custom_call.1} parent=0 // pred_fallthru
    _

</llo_original>
